<compile_context>
chip_gen: v5e
topology: v5e:2x2
jax: 0.10.0
libtpu: 0.0.40
codegen_flags: <defaults>
</compile_context>

<pallas_src>
import functools

import jax
import jax.numpy as jnp
from jax.experimental import pallas as pl
from jax.experimental.pallas import tpu as pltpu


# ---------------------------------------------------------------------------
# Pallas kernels
# ---------------------------------------------------------------------------
def _matmul_bias_relu_kernel(x_ref, w_ref, b_ref, o_ref):
    # x: (TM, K) bf16, w: (K, N) bf16, b: (1, N) f32 -> relu(x @ w + b) in o_ref.dtype
    acc = jnp.dot(x_ref[...], w_ref[...], preferred_element_type=jnp.float32)
    o_ref[...] = jnp.maximum(acc + b_ref[...], 0.0).astype(o_ref.dtype)


def _dueling_head_kernel(x_ref, w1_ref, b1_ref, w2_ref, b2_ref, q_ref):
    # x: (TB, Kp) bf16
    # w1: (Kp, 2H) bf16 = [wv1 | wa1]      b1: (1, 2H) f32 = [bv1 | ba1]
    # w2: (2H, 1+A) bf16 block-diag(wv2, wa2)   b2: (1, 1+A) f32 = [bv2 | ba2]
    h = jnp.dot(x_ref[...], w1_ref[...], preferred_element_type=jnp.float32)
    h = jnp.maximum(h + b1_ref[...], 0.0)                      # (TB, 2H) f32
    va = jnp.dot(h.astype(w2_ref.dtype), w2_ref[...],
                 preferred_element_type=jnp.float32) + b2_ref[...]   # (TB, 1+A)
    v = va[:, 0:1]
    a = va[:, 1:]
    q_ref[...] = (v + a - jnp.mean(a, axis=1, keepdims=True)).astype(q_ref.dtype)


# ---------------------------------------------------------------------------
# Small helpers
# ---------------------------------------------------------------------------
def _round_up(x, m):
    return ((x + m - 1) // m) * m


def _choose_tile(m, max_tile):
    """Even tile size over m, multiple of 8, <= round_up(max_tile, 8)."""
    n_tiles = max(1, pl.cdiv(m, max_tile))
    return _round_up(pl.cdiv(m, n_tiles), 8)


def _pad_rows(mat, mult=128):
    k = mat.shape[0]
    kp = _round_up(k, mult)
    if kp != k:
        mat = jnp.pad(mat, ((0, kp - k), (0, 0)))
    return mat


# ---------------------------------------------------------------------------
# Pallas wrappers
# ---------------------------------------------------------------------------
def matmul_bias_relu(x, w, b, *, out_dtype=jnp.bfloat16, max_tile=512):
    """relu(x @ w + b), tiled over rows of x with a parallel 1-D grid."""
    M, K = x.shape
    N = w.shape[1]
    tm = _choose_tile(M, max_tile)
    Mp = _round_up(M, tm)
    if Mp != M:
        x = jnp.pad(x, ((0, Mp - M), (0, 0)))

    out = pl.pallas_call(
        _matmul_bias_relu_kernel,
        out_shape=jax.ShapeDtypeStruct((Mp, N), out_dtype),
        grid_spec=pltpu.PrefetchScalarGridSpec(
            num_scalar_prefetch=0,
            grid=(Mp // tm,),
            in_specs=[pl.BlockSpec((tm, K), lambda i: (i, 0)),
                      pl.BlockSpec((K, N), lambda i: (0, 0)),   # VMEM-resident
                      pl.BlockSpec((1, N), lambda i: (0, 0))],  # VMEM-resident
            out_specs=pl.BlockSpec((tm, N), lambda i: (i, 0)),
        ),
        compiler_params=pltpu.CompilerParams(
            dimension_semantics=("parallel",)),
    )(x.astype(jnp.bfloat16), w, b)
    return out[:M] if Mp != M else out


def dueling_head(feat, w1, b1, w2, b2, *, max_tile=256):
    """Fused dueling head: q = v + a - mean(a)."""
    B, K = feat.shape
    Kp = w1.shape[0]
    if Kp != K:
        feat = jnp.pad(feat, ((0, 0), (0, Kp - K)))
    H2 = w1.shape[1]          # 2 * hidden
    NA = w2.shape[1]          # 1 + n_actions
    n_actions = NA - 1

    tb = _choose_tile(B, max_tile)
    Bp = _round_up(B, tb)
    if Bp != B:
        feat = jnp.pad(feat, ((0, Bp - B), (0, 0)))

    out = pl.pallas_call(
        _dueling_head_kernel,
        out_shape=jax.ShapeDtypeStruct((Bp, n_actions), jnp.float32),
        grid_spec=pltpu.PrefetchScalarGridSpec(
            num_scalar_prefetch=0,
            grid=(Bp // tb,),
            in_specs=[pl.BlockSpec((tb, Kp), lambda i: (i, 0)),
                      pl.BlockSpec((Kp, H2), lambda i: (0, 0)),
                      pl.BlockSpec((1, H2), lambda i: (0, 0)),
                      pl.BlockSpec((H2, NA), lambda i: (0, 0)),
                      pl.BlockSpec((1, NA), lambda i: (0, 0))],
            out_specs=pl.BlockSpec((tb, n_actions), lambda i: (i, 0)),
        ),
        compiler_params=pltpu.CompilerParams(
            dimension_semantics=("parallel",)),
    )(feat.astype(jnp.bfloat16), w1, b1, w2, b2)
    return out[:B] if Bp != B else out


# ---------------------------------------------------------------------------
# Conv as NHWC im2col + Pallas matmul
# ---------------------------------------------------------------------------
def conv2d_relu(x, wmat, b, k, stride):
    """x NHWC (B,H,W,C) bf16; wmat (Kpad, Cout) bf16 rows ordered (KH,KW,Cin); b (1,Cout) f32."""
    B, H, W, C = x.shape
    oh = (H - k) // stride + 1
    ow = (W - k) // stride + 1
    # TODO(synk): at training batch sizes, move patch extraction into the Pallas
    # kernel (manual strided slices on a VMEM-resident image block) to avoid the
    # 4-9x duplicated im2col round trip through HBM; negligible at B=2.
    cols = []
    for i in range(k):
        for j in range(k):
            cols.append(x[:, i:i + stride * oh:stride, j:j + stride * ow:stride, :])
    p = jnp.stack(cols, axis=3)                       # (B, OH, OW, KH*KW, C)
    p = p.reshape(B * oh * ow, k * k * C)             # columns ordered (KH, KW, Cin)
    Kdim = p.shape[1]
    Kpad = wmat.shape[0]
    if Kpad != Kdim:
        p = jnp.pad(p, ((0, 0), (0, Kpad - Kdim)))
    y = matmul_bias_relu(p, wmat, b)                  # (B*OH*OW, Cout) bf16
    return y.reshape(B, oh, ow, wmat.shape[1])        # NHWC, no transpose needed


# ---------------------------------------------------------------------------
# QNet parameters (torch layout), kernel-layout packing, forward, reference
# ---------------------------------------------------------------------------
def init_params(key, n_actions, hidden):
    ks = jax.random.split(key, 14)

    def w(k, shape, fan_in):
        return (jax.random.normal(k, shape, jnp.float32) / jnp.sqrt(fan_in)).astype(jnp.float32)

    p = {}
    p["w1"] = w(ks[0], (32, 4, 8, 8), 4 * 8 * 8)
    p["b1"] = w(ks[1], (32,), 4 * 8 * 8)
    p["w2"] = w(ks[2], (64, 32, 4, 4), 32 * 4 * 4)
    p["b2"] = w(ks[3], (64,), 32 * 4 * 4)
    p["w3"] = w(ks[4], (64, 64, 3, 3), 64 * 3 * 3)
    p["b3"] = w(ks[5], (64,), 64 * 3 * 3)
    F_in = 64 * 7 * 7
    # linear weights stored as (in, out) == torch weight.T
    p["wv1"] = w(ks[6], (F_in, hidden), F_in)
    p["bv1"] = w(ks[7], (1, hidden), F_in)
    p["wv2"] = w(ks[8], (hidden, 1), hidden)
    p["bv2"] = w(ks[9], (1, 1), hidden)
    p["wa1"] = w(ks[10], (F_in, hidden), F_in)
    p["ba1"] = w(ks[11], (1, hidden), F_in)
    p["wa2"] = w(ks[12], (hidden, n_actions), hidden)
    p["ba2"] = w(ks[13], (1, n_actions), hidden)
    return p


def pack_params(p):
    """One-time host-side repack: NHWC weight order, bf16, fused dueling head."""
    hidden = p["wv1"].shape[1]
    n_actions = p["wa2"].shape[1]

    def conv_w(w):
        cout, cin, kh, kw = w.shape
        m = w.transpose(2, 3, 1, 0).reshape(kh * kw * cin, cout)   # rows (KH,KW,Cin)
        return _pad_rows(m).astype(jnp.bfloat16)

    def conv_b(b):
        return b.reshape(1, -1).astype(jnp.float32)

    # Head layer 1: reorder rows from torch (C,H,W) flatten to NHWC (H,W,C),
    # then concatenate value/advantage branches into one lane-dense GEMM.
    def head_w1(w):
        return w.reshape(64, 7, 7, hidden).transpose(1, 2, 0, 3).reshape(64 * 7 * 7, hidden)

    w1 = jnp.concatenate([head_w1(p["wv1"]), head_w1(p["wa1"])], axis=1)   # (3136, 2H)
    b1 = jnp.concatenate([p["bv1"], p["ba1"]], axis=1).astype(jnp.float32)

    # Head layer 2: block-diagonal so one matmul produces [v | a].
    w2 = jnp.zeros((2 * hidden, 1 + n_actions), jnp.float32)
    w2 = w2.at[:hidden, 0:1].set(p["wv2"])
    w2 = w2.at[hidden:, 1:].set(p["wa2"])
    b2 = jnp.concatenate([p["bv2"], p["ba2"]], axis=1).astype(jnp.float32)

    return {
        "w1": conv_w(p["w1"]), "b1": conv_b(p["b1"]),
        "w2": conv_w(p["w2"]), "b2": conv_b(p["b2"]),
        "w3": conv_w(p["w3"]), "b3": conv_b(p["b3"]),
        "wh1": _pad_rows(w1).astype(jnp.bfloat16), "bh1": b1,
        "wh2": w2.astype(jnp.bfloat16), "bh2": b2,
    }


def qnet_forward(x, pp):
    # x: (B, 1, 4, 84, 84) -> squeeze(1) -> NHWC bf16 once
    x = x[:, 0].transpose(0, 2, 3, 1).astype(jnp.bfloat16)     # (B, 84, 84, 4)
    x = conv2d_relu(x, pp["w1"], pp["b1"], k=8, stride=4)      # (B, 20, 20, 32)
    x = conv2d_relu(x, pp["w2"], pp["b2"], k=4, stride=2)      # (B, 9, 9, 64)
    x = conv2d_relu(x, pp["w3"], pp["b3"], k=3, stride=1)      # (B, 7, 7, 64)
    feat = x.reshape(x.shape[0], -1)                           # (B, 3136) in (H,W,C) order
    return dueling_head(feat, pp["wh1"], pp["bh1"], pp["wh2"], pp["bh2"])


def qnet_reference(x, p):
    """Pure-JAX f32 reference (XLA conv, torch layouts) for a sanity check."""
    x = x[:, 0]

    def conv(x, w, b, s):
        y = jax.lax.conv_general_dilated(
            x, w, (s, s), "VALID", dimension_numbers=("NCHW", "OIHW", "NCHW"))
        return jax.nn.relu(y + b[None, :, None, None])

    x = conv(x, p["w1"], p["b1"], 4)
    x = conv(x, p["w2"], p["b2"], 2)
    x = conv(x, p["w3"], p["b3"], 1)
    f = x.reshape(x.shape[0], -1)
    hv = jax.nn.relu(f @ p["wv1"] + p["bv1"])
    v = hv @ p["wv2"] + p["bv2"]
    ha = jax.nn.relu(f @ p["wa1"] + p["ba1"])
    a = ha @ p["wa2"] + p["ba2"]
    return v + a - a.mean(axis=1, keepdims=True)


if __name__ == "__main__":
    B, n_actions, hidden = 2, 6, 32   # spatial 84x84 is forced by Linear(64*7*7, ...)
    key = jax.random.PRNGKey(0)
    kx, kp = jax.random.split(key)

    x = jax.random.normal(kx, (B, 1, 4, 84, 84), jnp.float32)
    params = init_params(kp, n_actions, hidden)
    packed = pack_params(params)

    q = jax.block_until_ready(jax.jit(qnet_forward)(x, packed))
    assert q.shape == (B, n_actions), q.shape

    q_ref = jax.block_until_ready(jax.jit(qnet_reference)(x, params))
    # bf16 MXU path vs f32 XLA reference: expect ~1e-2-level deviation (intentional).
    if not jnp.allclose(q, q_ref, rtol=1e-1, atol=1e-1):
        raise AssertionError("Pallas QNet output diverges from JAX reference")

    print("KERNEL_OK")
</pallas_src>

<mosaic_0001>
module attributes {stable_mosaic.version = 11 : i64} {
  func.func @_matmul_bias_relu_kernel(%arg0: i32, %arg1: memref<400x256xbf16, #tpu.memory_space<vmem>>, %arg2: memref<256x32xbf16, #tpu.memory_space<vmem>>, %arg3: memref<1x32xf32, #tpu.memory_space<vmem>>, %arg4: memref<400x32xbf16, #tpu.memory_space<vmem>>) attributes {dimension_semantics = [#tpu.dimension_semantics<parallel>], iteration_bounds = array<i64: 2>, scalar_prefetch = 0 : i64, scratch_operands = 0 : i64, tpu.core_type = #tpu.core_type<tc>, window_params = [{transform_indices = @transform_0, window_bounds = array<i64: 400, 256>}, {pipeline_mode = #tpu.pipeline_mode<synchronous>, transform_indices = @transform_1, window_bounds = array<i64: 256, 32>}, {pipeline_mode = #tpu.pipeline_mode<synchronous>, transform_indices = @transform_2, window_bounds = array<i64: 1, 32>}, {transform_indices = @transform_3, window_bounds = array<i64: 400, 32>}]} {
    %c0 = arith.constant 0 : index
    %c0_0 = arith.constant 0 : index
    %0 = vector.load %arg1[%c0, %c0_0] : memref<400x256xbf16, #tpu.memory_space<vmem>>, vector<400x256xbf16>
    %c0_1 = arith.constant 0 : index
    %c0_2 = arith.constant 0 : index
    %1 = vector.load %arg2[%c0_1, %c0_2] : memref<256x32xbf16, #tpu.memory_space<vmem>>, vector<256x32xbf16>
    %cst = arith.constant dense<0.000000e+00> : vector<400x32xf32>
    %2 = tpu.matmul %0, %1, %cst {dimension_numbers = #tpu.dot_dimension_numbers<[1], [0], [0], [1], [0, 0, 1, 1], [], []>} : vector<400x256xbf16>, vector<256x32xbf16>, vector<400x32xf32> -> vector<400x32xf32>
    %c0_3 = arith.constant 0 : index
    %c0_4 = arith.constant 0 : index
    %3 = vector.load %arg3[%c0_3, %c0_4] : memref<1x32xf32, #tpu.memory_space<vmem>>, vector<1x32xf32>
    %4 = vector.broadcast %3 : vector<1x32xf32> to vector<400x32xf32>
    %5 = arith.addf %2, %4 : vector<400x32xf32>
    %cst_5 = arith.constant 0.000000e+00 : f32
    %6 = vector.broadcast %cst_5 : f32 to vector<400x32xf32>
    %7 = arith.maximumf %5, %6 : vector<400x32xf32>
    %8 = arith.truncf %7 : vector<400x32xf32> to vector<400x32xbf16>
    %c0_6 = arith.constant 0 : index
    %c0_7 = arith.constant 0 : index
    %9 = vector.load %arg4[%c0_6, %c0_7] : memref<400x32xbf16, #tpu.memory_space<vmem>>, vector<400x32xbf16>
    tpu.vector_store %arg4[%c0_6, %c0_7], %8 {strides = array<i32>} : memref<400x32xbf16, #tpu.memory_space<vmem>>, vector<400x32xbf16>,
    return
  }
  func.func @transform_0(%arg0: i32) -> (i32, i32) {
    %c0_i32 = arith.constant 0 : i32
    %c0_i32_0 = arith.constant 0 : i32
    return %arg0, %c0_i32 : i32, i32
  }
  func.func @transform_1(%arg0: i32) -> (i32, i32) {
    %c0_i32 = arith.constant 0 : i32
    %c0_i32_0 = arith.constant 0 : i32
    %c0_i32_1 = arith.constant 0 : i32
    return %c0_i32, %c0_i32_0 : i32, i32
  }
  func.func @transform_2(%arg0: i32) -> (i32, i32) {
    %c0_i32 = arith.constant 0 : i32
    %c0_i32_0 = arith.constant 0 : i32
    %c0_i32_1 = arith.constant 0 : i32
    return %c0_i32, %c0_i32_0 : i32, i32
  }
  func.func @transform_3(%arg0: i32) -> (i32, i32) {
    %c0_i32 = arith.constant 0 : i32
    %c0_i32_0 = arith.constant 0 : i32
    return %arg0, %c0_i32 : i32, i32
  }
}

module attributes {stable_mosaic.version = 11 : i64} {
  func.func @_matmul_bias_relu_kernel(%arg0: i32, %arg1: memref<168x512xbf16, #tpu.memory_space<vmem>>, %arg2: memref<512x64xbf16, #tpu.memory_space<vmem>>, %arg3: memref<1x64xf32, #tpu.memory_space<vmem>>, %arg4: memref<168x64xbf16, #tpu.memory_space<vmem>>) attributes {dimension_semantics = [#tpu.dimension_semantics<parallel>], iteration_bounds = array<i64: 1>, scalar_prefetch = 0 : i64, scratch_operands = 0 : i64, tpu.core_type = #tpu.core_type<tc>, window_params = [{transform_indices = @transform_0, window_bounds = array<i64: 168, 512>}, {pipeline_mode = #tpu.pipeline_mode<synchronous>, transform_indices = @transform_1, window_bounds = array<i64: 512, 64>}, {pipeline_mode = #tpu.pipeline_mode<synchronous>, transform_indices = @transform_2, window_bounds = array<i64: 1, 64>}, {transform_indices = @transform_3, window_bounds = array<i64: 168, 64>}]} {
    %c0 = arith.constant 0 : index
    %c0_0 = arith.constant 0 : index
    %0 = vector.load %arg1[%c0, %c0_0] : memref<168x512xbf16, #tpu.memory_space<vmem>>, vector<168x512xbf16>
    %c0_1 = arith.constant 0 : index
    %c0_2 = arith.constant 0 : index
    %1 = vector.load %arg2[%c0_1, %c0_2] : memref<512x64xbf16, #tpu.memory_space<vmem>>, vector<512x64xbf16>
    %cst = arith.constant dense<0.000000e+00> : vector<168x64xf32>
    %2 = tpu.matmul %0, %1, %cst {dimension_numbers = #tpu.dot_dimension_numbers<[1], [0], [0], [1], [0, 0, 1, 1], [], []>} : vector<168x512xbf16>, vector<512x64xbf16>, vector<168x64xf32> -> vector<168x64xf32>
    %c0_3 = arith.constant 0 : index
    %c0_4 = arith.constant 0 : index
    %3 = vector.load %arg3[%c0_3, %c0_4] : memref<1x64xf32, #tpu.memory_space<vmem>>, vector<1x64xf32>
    %4 = vector.broadcast %3 : vector<1x64xf32> to vector<168x64xf32>
    %5 = arith.addf %2, %4 : vector<168x64xf32>
    %cst_5 = arith.constant 0.000000e+00 : f32
    %6 = vector.broadcast %cst_5 : f32 to vector<168x64xf32>
    %7 = arith.maximumf %5, %6 : vector<168x64xf32>
    %8 = arith.truncf %7 : vector<168x64xf32> to vector<168x64xbf16>
    %c0_6 = arith.constant 0 : index
    %c0_7 = arith.constant 0 : index
    %9 = vector.load %arg4[%c0_6, %c0_7] : memref<168x64xbf16, #tpu.memory_space<vmem>>, vector<168x64xbf16>
    tpu.vector_store %arg4[%c0_6, %c0_7], %8 {strides = array<i32>} : memref<168x64xbf16, #tpu.memory_space<vmem>>, vector<168x64xbf16>,
    return
  }
  func.func @transform_0(%arg0: i32) -> (i32, i32) {
    %c0_i32 = arith.constant 0 : i32
    %c0_i32_0 = arith.constant 0 : i32
    return %arg0, %c0_i32 : i32, i32
  }
  func.func @transform_1(%arg0: i32) -> (i32, i32) {
    %c0_i32 = arith.constant 0 : i32
    %c0_i32_0 = arith.constant 0 : i32
    %c0_i32_1 = arith.constant 0 : i32
    return %c0_i32, %c0_i32_0 : i32, i32
  }
  func.func @transform_2(%arg0: i32) -> (i32, i32) {
    %c0_i32 = arith.constant 0 : i32
    %c0_i32_0 = arith.constant 0 : i32
    %c0_i32_1 = arith.constant 0 : i32
    return %c0_i32, %c0_i32_0 : i32, i32
  }
  func.func @transform_3(%arg0: i32) -> (i32, i32) {
    %c0_i32 = arith.constant 0 : i32
    %c0_i32_0 = arith.constant 0 : i32
    return %arg0, %c0_i32 : i32, i32
  }
}

module attributes {stable_mosaic.version = 11 : i64} {
  func.func @_matmul_bias_relu_kernel(%arg0: i32, %arg1: memref<104x640xbf16, #tpu.memory_space<vmem>>, %arg2: memref<640x64xbf16, #tpu.memory_space<vmem>>, %arg3: memref<1x64xf32, #tpu.memory_space<vmem>>, %arg4: memref<104x64xbf16, #tpu.memory_space<vmem>>) attributes {dimension_semantics = [#tpu.dimension_semantics<parallel>], iteration_bounds = array<i64: 1>, scalar_prefetch = 0 : i64, scratch_operands = 0 : i64, tpu.core_type = #tpu.core_type<tc>, window_params = [{transform_indices = @transform_0, window_bounds = array<i64: 104, 640>}, {pipeline_mode = #tpu.pipeline_mode<synchronous>, transform_indices = @transform_1, window_bounds = array<i64: 640, 64>}, {pipeline_mode = #tpu.pipeline_mode<synchronous>, transform_indices = @transform_2, window_bounds = array<i64: 1, 64>}, {transform_indices = @transform_3, window_bounds = array<i64: 104, 64>}]} {
    %c0 = arith.constant 0 : index
    %c0_0 = arith.constant 0 : index
    %0 = vector.load %arg1[%c0, %c0_0] : memref<104x640xbf16, #tpu.memory_space<vmem>>, vector<104x640xbf16>
    %c0_1 = arith.constant 0 : index
    %c0_2 = arith.constant 0 : index
    %1 = vector.load %arg2[%c0_1, %c0_2] : memref<640x64xbf16, #tpu.memory_space<vmem>>, vector<640x64xbf16>
    %cst = arith.constant dense<0.000000e+00> : vector<104x64xf32>
    %2 = tpu.matmul %0, %1, %cst {dimension_numbers = #tpu.dot_dimension_numbers<[1], [0], [0], [1], [0, 0, 1, 1], [], []>} : vector<104x640xbf16>, vector<640x64xbf16>, vector<104x64xf32> -> vector<104x64xf32>
    %c0_3 = arith.constant 0 : index
    %c0_4 = arith.constant 0 : index
    %3 = vector.load %arg3[%c0_3, %c0_4] : memref<1x64xf32, #tpu.memory_space<vmem>>, vector<1x64xf32>
    %4 = vector.broadcast %3 : vector<1x64xf32> to vector<104x64xf32>
    %5 = arith.addf %2, %4 : vector<104x64xf32>
    %cst_5 = arith.constant 0.000000e+00 : f32
    %6 = vector.broadcast %cst_5 : f32 to vector<104x64xf32>
    %7 = arith.maximumf %5, %6 : vector<104x64xf32>
    %8 = arith.truncf %7 : vector<104x64xf32> to vector<104x64xbf16>
    %c0_6 = arith.constant 0 : index
    %c0_7 = arith.constant 0 : index
    %9 = vector.load %arg4[%c0_6, %c0_7] : memref<104x64xbf16, #tpu.memory_space<vmem>>, vector<104x64xbf16>
    tpu.vector_store %arg4[%c0_6, %c0_7], %8 {strides = array<i32>} : memref<104x64xbf16, #tpu.memory_space<vmem>>, vector<104x64xbf16>,
    return
  }
  func.func @transform_0(%arg0: i32) -> (i32, i32) {
    %c0_i32 = arith.constant 0 : i32
    %c0_i32_0 = arith.constant 0 : i32
    return %arg0, %c0_i32 : i32, i32
  }
  func.func @transform_1(%arg0: i32) -> (i32, i32) {
    %c0_i32 = arith.constant 0 : i32
    %c0_i32_0 = arith.constant 0 : i32
    %c0_i32_1 = arith.constant 0 : i32
    return %c0_i32, %c0_i32_0 : i32, i32
  }
  func.func @transform_2(%arg0: i32) -> (i32, i32) {
    %c0_i32 = arith.constant 0 : i32
    %c0_i32_0 = arith.constant 0 : i32
    %c0_i32_1 = arith.constant 0 : i32
    return %c0_i32, %c0_i32_0 : i32, i32
  }
  func.func @transform_3(%arg0: i32) -> (i32, i32) {
    %c0_i32 = arith.constant 0 : i32
    %c0_i32_0 = arith.constant 0 : i32
    return %arg0, %c0_i32 : i32, i32
  }
}

module attributes {stable_mosaic.version = 11 : i64} {
  func.func @_dueling_head_kernel(%arg0: i32, %arg1: memref<8x3200xbf16, #tpu.memory_space<vmem>>, %arg2: memref<3200x64xbf16, #tpu.memory_space<vmem>>, %arg3: memref<1x64xf32, #tpu.memory_space<vmem>>, %arg4: memref<64x7xbf16, #tpu.memory_space<vmem>>, %arg5: memref<1x7xf32, #tpu.memory_space<vmem>>, %arg6: memref<8x6xf32, #tpu.memory_space<vmem>>) attributes {dimension_semantics = [#tpu.dimension_semantics<parallel>], iteration_bounds = array<i64: 1>, scalar_prefetch = 0 : i64, scratch_operands = 0 : i64, tpu.core_type = #tpu.core_type<tc>, window_params = [{transform_indices = @transform_0, window_bounds = array<i64: 8, 3200>}, {pipeline_mode = #tpu.pipeline_mode<synchronous>, transform_indices = @transform_1, window_bounds = array<i64: 3200, 64>}, {pipeline_mode = #tpu.pipeline_mode<synchronous>, transform_indices = @transform_2, window_bounds = array<i64: 1, 64>}, {pipeline_mode = #tpu.pipeline_mode<synchronous>, transform_indices = @transform_3, window_bounds = array<i64: 64, 7>}, {pipeline_mode = #tpu.pipeline_mode<synchronous>, transform_indices = @transform_4, window_bounds = array<i64: 1, 7>}, {transform_indices = @transform_5, window_bounds = array<i64: 8, 6>}]} {
    %c0 = arith.constant 0 : index
    %c0_0 = arith.constant 0 : index
    %0 = vector.load %arg1[%c0, %c0_0] : memref<8x3200xbf16, #tpu.memory_space<vmem>>, vector<8x3200xbf16>
    %c0_1 = arith.constant 0 : index
    %c0_2 = arith.constant 0 : index
    %1 = vector.load %arg2[%c0_1, %c0_2] : memref<3200x64xbf16, #tpu.memory_space<vmem>>, vector<3200x64xbf16>
    %cst = arith.constant dense<0.000000e+00> : vector<8x64xf32>
    %2 = tpu.matmul %0, %1, %cst {dimension_numbers = #tpu.dot_dimension_numbers<[1], [0], [0], [1], [0, 0, 1, 1], [], []>} : vector<8x3200xbf16>, vector<3200x64xbf16>, vector<8x64xf32> -> vector<8x64xf32>
    %c0_3 = arith.constant 0 : index
    %c0_4 = arith.constant 0 : index
    %3 = vector.load %arg3[%c0_3, %c0_4] : memref<1x64xf32, #tpu.memory_space<vmem>>, vector<1x64xf32>
    %4 = vector.broadcast %3 : vector<1x64xf32> to vector<8x64xf32>
    %5 = arith.addf %2, %4 : vector<8x64xf32>
    %cst_5 = arith.constant 0.000000e+00 : f32
    %6 = vector.broadcast %cst_5 : f32 to vector<8x64xf32>
    %7 = arith.maximumf %5, %6 : vector<8x64xf32>
    %8 = arith.truncf %7 : vector<8x64xf32> to vector<8x64xbf16>
    %c0_6 = arith.constant 0 : index
    %c0_7 = arith.constant 0 : index
    %9 = vector.load %arg4[%c0_6, %c0_7] : memref<64x7xbf16, #tpu.memory_space<vmem>>, vector<64x7xbf16>
    %cst_8 = arith.constant dense<0.000000e+00> : vector<8x7xf32>
    %10 = tpu.matmul %8, %9, %cst_8 {dimension_numbers = #tpu.dot_dimension_numbers<[1], [0], [0], [1], [0, 0, 1, 1], [], []>} : vector<8x64xbf16>, vector<64x7xbf16>, vector<8x7xf32> -> vector<8x7xf32>
    %c0_9 = arith.constant 0 : index
    %c0_10 = arith.constant 0 : index
    %11 = vector.load %arg5[%c0_9, %c0_10] : memref<1x7xf32, #tpu.memory_space<vmem>>, vector<1x7xf32>
    %12 = vector.broadcast %11 : vector<1x7xf32> to vector<8x7xf32>
    %13 = arith.addf %10, %12 : vector<8x7xf32>
    %14 = vector.extract_strided_slice %13 {offsets = [0, 0], sizes = [8, 1], strides = [1, 1]} : vector<8x7xf32> to vector<8x1xf32>
    %15 = vector.extract_strided_slice %13 {offsets = [0, 1], sizes = [8, 6], strides = [1, 1]} : vector<8x7xf32> to vector<8x6xf32>
    %16 = vector.broadcast %14 : vector<8x1xf32> to vector<8x6xf32>
    %17 = arith.addf %16, %15 : vector<8x6xf32>
    %cst_11 = arith.constant dense<0.000000e+00> : vector<8xf32>
    %18 = vector.multi_reduction <add>, %15, %cst_11 [1] : vector<8x6xf32> to vector<8xf32>
    %19 = vector.shape_cast %18 : vector<8xf32> to vector<8x1xf32>
    %cst_12 = arith.constant 6.000000e+00 : f32
    %20 = vector.broadcast %cst_12 : f32 to vector<8x1xf32>
    %21 = arith.divf %19, %20 : vector<8x1xf32>
    %22 = vector.broadcast %21 : vector<8x1xf32> to vector<8x6xf32>
    %23 = arith.subf %17, %22 : vector<8x6xf32>
    %c0_13 = arith.constant 0 : index
    %c0_14 = arith.constant 0 : index
    %24 = vector.load %arg6[%c0_13, %c0_14] : memref<8x6xf32, #tpu.memory_space<vmem>>, vector<8x6xf32>
    tpu.vector_store %arg6[%c0_13, %c0_14], %23 {strides = array<i32>} : memref<8x6xf32, #tpu.memory_space<vmem>>, vector<8x6xf32>,
    return
  }
  func.func @transform_0(%arg0: i32) -> (i32, i32) {
    %c0_i32 = arith.constant 0 : i32
    %c0_i32_0 = arith.constant 0 : i32
    return %arg0, %c0_i32 : i32, i32
  }
  func.func @transform_1(%arg0: i32) -> (i32, i32) {
    %c0_i32 = arith.constant 0 : i32
    %c0_i32_0 = arith.constant 0 : i32
    %c0_i32_1 = arith.constant 0 : i32
    return %c0_i32, %c0_i32_0 : i32, i32
  }
  func.func @transform_2(%arg0: i32) -> (i32, i32) {
    %c0_i32 = arith.constant 0 : i32
    %c0_i32_0 = arith.constant 0 : i32
    %c0_i32_1 = arith.constant 0 : i32
    return %c0_i32, %c0_i32_0 : i32, i32
  }
  func.func @transform_3(%arg0: i32) -> (i32, i32) {
    %c0_i32 = arith.constant 0 : i32
    %c0_i32_0 = arith.constant 0 : i32
    %c0_i32_1 = arith.constant 0 : i32
    return %c0_i32, %c0_i32_0 : i32, i32
  }
  func.func @transform_4(%arg0: i32) -> (i32, i32) {
    %c0_i32 = arith.constant 0 : i32
    %c0_i32_0 = arith.constant 0 : i32
    %c0_i32_1 = arith.constant 0 : i32
    return %c0_i32, %c0_i32_0 : i32, i32
  }
  func.func @transform_5(%arg0: i32) -> (i32, i32) {
    %c0_i32 = arith.constant 0 : i32
    %c0_i32_0 = arith.constant 0 : i32
    return %arg0, %c0_i32 : i32, i32
  }
}

</mosaic_0001>

<llo_original>
// kernel: qnet_forward.4
$region0: #{qnet_forward.4}
  #allocation0 [shape = 'u32[]', space=smem, size = 0x4, offset = 0x4, fixed_abs, tag = 'smem constant byte address 0x4 - core index']
  #allocation1 [shape = 'u32[72,128]{1,0:T(1,128)}', space=vmem, size = 0x9000, scoped, tag = 'internal scratch']
  %s0 = inlined_call_operand.vmem [shape: bf16[800,256], index: 0, kind: input, shape index: {}]
  %s1 = inlined_call_operand.vmem [shape: bf16[256,32], index: 1, kind: input, shape index: {}]
  %s2 = inlined_call_operand.vmem [shape: f32[1,32], index: 2, kind: input, shape index: {}]
  %s3 = inlined_call_operand.vmem [shape: bf16[800,32], index: 3, kind: output, shape index: {}]
  %s4 = sld [smem:[#allocation0]]
  $region45: #{qnet_forward.4} parent=0
    _
  %s6 = ssub.s32 1, %s4
  %s7 = scalar_select 0, %s6, %s4
  loop: start=0, step=1, limit=4
  $region2: #{qnet_forward.4} parent=0 // loop_pre_header
    _
  $region3: #{qnet_forward.4} parent=0 // loop_header
    %s9 = sphi 0, %s13
    %p10 = scmp.ge.s32.totalorder %s9, 4
    %s19 = sphi 0, %s21
    %s22 = sphi 0, %s19
    %s23 = sphi 0, %s22
    %s39 = sphi 0, %s23
    %s43 = sphi 0, %s43
    %s45 = sphi 0, %s43
    %s46 = sphi 0, %s45
    %s60 = sphi 0, %s46
    %s64 = sphi 0, %s64
    %s66 = sphi 0, %s64
    %s67 = sphi 0, %s66
    %s81 = sphi 0, %s67
    %s87 = sphi 0, %s89
    %s90 = sphi 0, %s87
    %s91 = sphi 0, %s90
    %s107 = sphi 0, %s91
  $region4: #{qnet_forward.4} parent=0 // loop_header_branch
    %12 = sbr.rel (%p10) target = $region8
  $region5: #{qnet_forward.4} parent=0 // loop_body
    %s14 = ssub.s32 %s9, 1
    %s15 = ssub.s32 %s9, 2
    %s16 = sadd.s32 %s9, 1
    %s17 = ssub.s32 %s9, %s16
    %p18 = scmp.eq.s32.totalorder %s17, 0
    %s20 = sadd.s32 %s19, 1
    %s21 = scalar_select %p18, %s19, %s20
    %p24 = pneg %p18
    %p25 = scmp.eq.s32.totalorder %s9, 1
    %p26 = por %p24, %p25
    %p27 = scmp.ne.s32.totalorder %s19, %s22
    %p28 = scmp.eq.s32.totalorder %s9, 0
    %p29 = por %p27, %p28
    %p30 = scmp.ne.s32.totalorder %s19, %s22
    %p31 = scmp.eq.s32.totalorder %s14, 1
    %p32 = por %p30, %p31
    %p33 = scmp.ne.s32.totalorder %s22, %s23
    %p34 = scmp.eq.s32.totalorder %s14, 0
    %p35 = por %p33, %p34
    %p36 = scmp.ne.s32.totalorder %s22, %s23
    %p37 = scmp.eq.s32.totalorder %s15, 1
    %p38 = por %p36, %p37
    %p40 = scmp.ne.s32.totalorder %s23, %s39
    %p41 = scmp.eq.s32.totalorder %s15, 0
    %p42 = por %p40, %p41
    %s44 = sadd.s32 %s43, 1
    %p47 = scmp.eq.s32.totalorder %s9, 1
    %p48 = scmp.ne.s32.totalorder %s43, %s45
    %p49 = scmp.eq.s32.totalorder %s9, 0
    %p50 = por %p48, %p49
    %p51 = scmp.ne.s32.totalorder %s43, %s45
    %p52 = scmp.eq.s32.totalorder %s14, 1
    %p53 = por %p51, %p52
    %p54 = scmp.ne.s32.totalorder %s45, %s46
    %p55 = scmp.eq.s32.totalorder %s14, 0
    %p56 = por %p54, %p55
    %p57 = scmp.ne.s32.totalorder %s45, %s46
    %p58 = scmp.eq.s32.totalorder %s15, 1
    %p59 = por %p57, %p58
    %p61 = scmp.ne.s32.totalorder %s46, %s60
    %p62 = scmp.eq.s32.totalorder %s15, 0
    %p63 = por %p61, %p62
    %s65 = sadd.s32 %s64, 1
    %p68 = scmp.eq.s32.totalorder %s9, 1
    %p69 = scmp.ne.s32.totalorder %s64, %s66
    %p70 = scmp.eq.s32.totalorder %s9, 0
    %p71 = por %p69, %p70
    %p72 = scmp.ne.s32.totalorder %s64, %s66
    %p73 = scmp.eq.s32.totalorder %s14, 1
    %p74 = por %p72, %p73
    %p75 = scmp.ne.s32.totalorder %s66, %s67
    %p76 = scmp.eq.s32.totalorder %s14, 0
    %p77 = por %p75, %p76
    %p78 = scmp.ne.s32.totalorder %s66, %s67
    %p79 = scmp.eq.s32.totalorder %s15, 1
    %p80 = por %p78, %p79
    %p82 = scmp.ne.s32.totalorder %s67, %s81
    %p83 = scmp.eq.s32.totalorder %s15, 0
    %p84 = por %p82, %p83
    %s85 = ssub.s32 %s9, %s16
    %p86 = scmp.eq.s32.totalorder %s85, 0
    %s88 = sadd.s32 %s87, 1
    %s89 = scalar_select %p86, %s87, %s88
    %p92 = pneg %p86
    %p93 = scmp.eq.s32.totalorder %s9, 1
    %p94 = por %p92, %p93
    %p95 = scmp.ne.s32.totalorder %s87, %s90
    %p96 = scmp.eq.s32.totalorder %s9, 0
    %p97 = por %p95, %p96
    %p98 = scmp.ne.s32.totalorder %s87, %s90
    %p99 = scmp.eq.s32.totalorder %s14, 1
    %p100 = por %p98, %p99
    %p101 = scmp.ne.s32.totalorder %s90, %s91
    %p102 = scmp.eq.s32.totalorder %s14, 0
    %p103 = por %p101, %p102
    %p104 = scmp.ne.s32.totalorder %s90, %s91
    %p105 = scmp.eq.s32.totalorder %s15, 1
    %p106 = por %p104, %p105
    %p108 = scmp.ne.s32.totalorder %s91, %s107
    %p109 = scmp.eq.s32.totalorder %s15, 0
    %p110 = por %p108, %p109
    %p111 = scmp.le.s32.totalorder 1, %s9
    %p112 = scmp.lt.s32.totalorder %s9, 3
    %p113 = pnand %p111, %p112
    %p114 = pneg %p113
    // Predicated region
    $region9: #{qnet_forward.4} parent=5 // pred_check
      _
    $region10: #{qnet_forward.4} parent=5 // pred_check_branch
      %116 = sbr.rel (%p113) target = $region12
    $region11: #{qnet_forward.4} parent=5 // pred_region
      %s117 = ssub.s32 %s9, 1
      // Predicated region
      $region13: #{qnet_forward.4} parent=11 // pred_check
        %p118 = pneg %p56
      $region14: #{qnet_forward.4} parent=11 // pred_check_branch
        %120 = sbr.rel (%p118) target = $region16
      $region15: #{qnet_forward.4} parent=11 // pred_region
        _
      $region16: #{qnet_forward.4} parent=11 // pred_fallthru
        _
      // Predicated region
      $region17: #{qnet_forward.4} parent=11 // pred_check
        %p121 = pneg %p77
      $region18: #{qnet_forward.4} parent=11 // pred_check_branch
        %123 = sbr.rel (%p121) target = $region20
      $region19: #{qnet_forward.4} parent=11 // pred_region
        _
      $region20: #{qnet_forward.4} parent=11 // pred_fallthru
        _
    $region12: #{qnet_forward.4} parent=5 // pred_fallthru
      _
    %p124 = scmp.lt.s32.totalorder %s9, 2
    // Predicated region
    $region21: #{qnet_forward.4} parent=5 // pred_check
      %p125 = pneg %p124
    $region22: #{qnet_forward.4} parent=5 // pred_check_branch
      %127 = sbr.rel (%p125) target = $region24
    $region23: #{qnet_forward.4} parent=5 // pred_region
      // Predicated region
      $region25: #{qnet_forward.4} parent=23 // pred_check
        %p128 = pneg %p29
      $region26: #{qnet_forward.4} parent=23 // pred_check_branch
        %130 = sbr.rel (%p128) target = $region28
      $region27: #{qnet_forward.4} parent=23 // pred_region
        %s131 = smul.u32 50, %s9
        %p132 = scmp.lt.s32.totalorder %s131, 99
        %s133 = scalar_select %p132, %s131, 99
        %s134 = smul.addr %s133, 2
        %s135 = smul.addr %s134, 4
        %s136 = scalar_lea.vmem %s0, %s135
        %s137 = smul.u32 50, %s9
      $region28: #{qnet_forward.4} parent=23 // pred_fallthru
        _
    $region24: #{qnet_forward.4} parent=5 // pred_fallthru
      _
    %p138 = scmp.le.s32.totalorder 1, %s9
    %p139 = scmp.lt.s32.totalorder %s9, 3
    %p140 = pnand %p138, %p139
    %p141 = pneg %p140
    // Predicated region
    $region29: #{qnet_forward.4} parent=5 // pred_check
      _
    $region30: #{qnet_forward.4} parent=5 // pred_check_branch
      %143 = sbr.rel (%p140) target = $region32
    $region31: #{qnet_forward.4} parent=5 // pred_region
      %s144 = ssub.s32 %s9, 1
      %s145 = smul.u32 50, %s14
      %p146 = scmp.lt.s32.totalorder %s145, 99
      %s147 = scalar_select %p146, %s145, 99
      %s148 = smul.addr %s147, 2
      %s149 = smul.addr %s148, 4
      %s150 = scalar_lea.vmem %s0, %s149
      %p151 = pneg %p35
      %p152 = pneg %p32
      %p153 = pneg %p56
      %p154 = pneg %p53
      %p155 = pneg %p77
      %p156 = pneg %p74
      %p157 = pneg %p103
      %p158 = pneg %p100
      %s159 = smul.u32 50, %s14
      %p160 = scmp.lt.s32.totalorder %s159, 99
      %s161 = scalar_select %p160, %s159, 99
      %s162 = smul.addr %s161, 4
      %s163 = scalar_lea.vmem %s3, %s162
      %s164 = smul.u32 50, %s14
      %p165 = scmp.lt.s32.totalorder %s164, 99
      %s166 = scalar_select %p165, %s164, 99
      %s167 = smul.addr %s166, 2
      %s168 = smul.addr %s167, 4
      %s169 = scalar_lea.vmem %s0, %s168
      %s170 = smul.u32 50, %s14
      %s171 = smul.u32 50, %s14
      %p172 = scmp.lt.s32.totalorder %s171, 99
      %s173 = scalar_select %p172, %s171, 99
      %s174 = smul.addr %s173, 4
      %s175 = scalar_lea.vmem %s3, %s174
      %s176 = smul.u32 50, %s14
      %v177 = vld [vmem:[%s169] sm:$0xff]
      %v178 = vld [vmem:[%s169 + $0x8] sm:$0xff]
      %v179 = vld [vmem:[%s169 + $0x10] sm:$0xff]
      %v180 = vld [vmem:[%s169 + $0x18] sm:$0xff]
      %v181 = vld [vmem:[%s169 + $0x20] sm:$0xff]
      %v182 = vld [vmem:[%s169 + $0x28] sm:$0xff]
      %v183 = vld [vmem:[%s169 + $0x30] sm:$0xff]
      %v184 = vld [vmem:[%s169 + $0x38] sm:$0xff]
      %v185 = vld [vmem:[%s169 + $0x40] sm:$0xff]
      %v186 = vld [vmem:[%s169 + $0x48] sm:$0xff]
      %v187 = vld [vmem:[%s169 + $0x50] sm:$0xff]
      %v188 = vld [vmem:[%s169 + $0x58] sm:$0xff]
      %v189 = vld [vmem:[%s169 + $0x60] sm:$0xff]
      %v190 = vld [vmem:[%s169 + $0x68] sm:$0xff]
      %v191 = vld [vmem:[%s169 + $0x70] sm:$0xff]
      %v192 = vld [vmem:[%s169 + $0x78] sm:$0xff]
      %v193 = vld [vmem:[%s169 + $0x80] sm:$0xff]
      %v194 = vld [vmem:[%s169 + $0x88] sm:$0xff]
      %v195 = vld [vmem:[%s169 + $0x90] sm:$0xff]
      %v196 = vld [vmem:[%s169 + $0x98] sm:$0xff]
      %v197 = vld [vmem:[%s169 + $0xa0] sm:$0xff]
      %v198 = vld [vmem:[%s169 + $0xa8] sm:$0xff]
      %v199 = vld [vmem:[%s169 + $0xb0] sm:$0xff]
      %v200 = vld [vmem:[%s169 + $0xb8] sm:$0xff]
      %v201 = vld [vmem:[%s169 + $0xc0] sm:$0xff]
      %v202 = vld [vmem:[%s169 + $0xc8] sm:$0xff]
      %v203 = vld [vmem:[%s169 + $0xd0] sm:$0xff]
      %v204 = vld [vmem:[%s169 + $0xd8] sm:$0xff]
      %v205 = vld [vmem:[%s169 + $0xe0] sm:$0xff]
      %v206 = vld [vmem:[%s169 + $0xe8] sm:$0xff]
      %v207 = vld [vmem:[%s169 + $0xf0] sm:$0xff]
      %v208 = vld [vmem:[%s169 + $0xf8] sm:$0xff]
      %v209 = vld [vmem:[%s169 + $0x100] sm:$0xff]
      %v210 = vld [vmem:[%s169 + $0x108] sm:$0xff]
      %v211 = vld [vmem:[%s169 + $0x110] sm:$0xff]
      %v212 = vld [vmem:[%s169 + $0x118] sm:$0xff]
      %v213 = vld [vmem:[%s169 + $0x120] sm:$0xff]
      %v214 = vld [vmem:[%s169 + $0x128] sm:$0xff]
      %v215 = vld [vmem:[%s169 + $0x130] sm:$0xff]
      %v216 = vld [vmem:[%s169 + $0x138] sm:$0xff]
      %v217 = vld [vmem:[%s169 + $0x140] sm:$0xff]
      %v218 = vld [vmem:[%s169 + $0x148] sm:$0xff]
      %v219 = vld [vmem:[%s169 + $0x150] sm:$0xff]
      %v220 = vld [vmem:[%s169 + $0x158] sm:$0xff]
      %v221 = vld [vmem:[%s169 + $0x160] sm:$0xff]
      %v222 = vld [vmem:[%s169 + $0x168] sm:$0xff]
      %v223 = vld [vmem:[%s169 + $0x170] sm:$0xff]
      %v224 = vld [vmem:[%s169 + $0x178] sm:$0xff]
      %v225 = vld [vmem:[%s169 + $0x180] sm:$0xff]
      %v226 = vld [vmem:[%s169 + $0x188] sm:$0xff]
      %v227 = vld [vmem:[%s1] sm:$0xf]
      %v228 = vld [vmem:[%s1 + $0x4] sm:$0xf]
      %v229 = vld [vmem:[%s1 + $0x8] sm:$0xf]
      %v230 = vld [vmem:[%s1 + $0xc] sm:$0xf]
      %v231 = vld [vmem:[%s1 + $0x10] sm:$0xf]
      %v232 = vld [vmem:[%s1 + $0x14] sm:$0xf]
      %v233 = vld [vmem:[%s1 + $0x18] sm:$0xf]
      %v234 = vld [vmem:[%s1 + $0x1c] sm:$0xf]
      %v235 = vld [vmem:[%s1 + $0x20] sm:$0xf]
      %v236 = vld [vmem:[%s1 + $0x24] sm:$0xf]
      %v237 = vld [vmem:[%s1 + $0x28] sm:$0xf]
      %v238 = vld [vmem:[%s1 + $0x2c] sm:$0xf]
      %v239 = vld [vmem:[%s1 + $0x30] sm:$0xf]
      %v240 = vld [vmem:[%s1 + $0x34] sm:$0xf]
      %v241 = vld [vmem:[%s1 + $0x38] sm:$0xf]
      %v242 = vld [vmem:[%s1 + $0x3c] sm:$0xf]
      %v243 = vld [vmem:[%s1 + $0x40] sm:$0xf]
      %v244 = vld [vmem:[%s1 + $0x44] sm:$0xf]
      %v245 = vld [vmem:[%s1 + $0x48] sm:$0xf]
      %v246 = vld [vmem:[%s1 + $0x4c] sm:$0xf]
      %v247 = vld [vmem:[%s1 + $0x50] sm:$0xf]
      %v248 = vld [vmem:[%s1 + $0x54] sm:$0xf]
      %v249 = vld [vmem:[%s1 + $0x58] sm:$0xf]
      %v250 = vld [vmem:[%s1 + $0x5c] sm:$0xf]
      %v251 = vld [vmem:[%s1 + $0x60] sm:$0xf]
      %v252 = vld [vmem:[%s1 + $0x64] sm:$0xf]
      %v253 = vld [vmem:[%s1 + $0x68] sm:$0xf]
      %v254 = vld [vmem:[%s1 + $0x6c] sm:$0xf]
      %v255 = vld [vmem:[%s1 + $0x70] sm:$0xf]
      %v256 = vld [vmem:[%s1 + $0x74] sm:$0xf]
      %v257 = vld [vmem:[%s1 + $0x78] sm:$0xf]
      %v258 = vld [vmem:[%s1 + $0x7c] sm:$0xf]
      %v259 = vld [vmem:[%s2] sm:$0x1]
      %v261 = vperm.slane %v259, 0
      %v313 = vunpack.c.l.b16 %v177
      %v314 = vunpack.c.h.b16 %v177
      %v315 = vunpack.c.l.b16 %v178
      %v316 = vunpack.c.h.b16 %v178
      %v317 = vunpack.c.l.b16 %v179
      %v318 = vunpack.c.h.b16 %v179
      %v319 = vunpack.c.l.b16 %v180
      %v320 = vunpack.c.h.b16 %v180
      %v321 = vunpack.c.l.b16 %v181
      %v322 = vunpack.c.h.b16 %v181
      %v323 = vunpack.c.l.b16 %v182
      %v324 = vunpack.c.h.b16 %v182
      %v325 = vunpack.c.l.b16 %v183
      %v326 = vunpack.c.h.b16 %v183
      %v327 = vunpack.c.l.b16 %v184
      %v328 = vunpack.c.h.b16 %v184
      %v329 = vunpack.c.l.b16 %v185
      %v330 = vunpack.c.h.b16 %v185
      %v331 = vunpack.c.l.b16 %v186
      %v332 = vunpack.c.h.b16 %v186
      %v333 = vunpack.c.l.b16 %v187
      %v334 = vunpack.c.h.b16 %v187
      %v335 = vunpack.c.l.b16 %v188
      %v336 = vunpack.c.h.b16 %v188
      %v337 = vunpack.c.l.b16 %v189
      %v338 = vunpack.c.h.b16 %v189
      %v339 = vunpack.c.l.b16 %v190
      %v340 = vunpack.c.h.b16 %v190
      %v341 = vunpack.c.l.b16 %v191
      %v342 = vunpack.c.h.b16 %v191
      %v343 = vunpack.c.l.b16 %v192
      %v344 = vunpack.c.h.b16 %v192
      %v345 = vunpack.c.l.b16 %v193
      %v346 = vunpack.c.h.b16 %v193
      %v347 = vunpack.c.l.b16 %v194
      %v348 = vunpack.c.h.b16 %v194
      %v349 = vunpack.c.l.b16 %v195
      %v350 = vunpack.c.h.b16 %v195
      %v351 = vunpack.c.l.b16 %v196
      %v352 = vunpack.c.h.b16 %v196
      %v353 = vunpack.c.l.b16 %v197
      %v354 = vunpack.c.h.b16 %v197
      %v355 = vunpack.c.l.b16 %v198
      %v356 = vunpack.c.h.b16 %v198
      %v357 = vunpack.c.l.b16 %v199
      %v358 = vunpack.c.h.b16 %v199
      %v359 = vunpack.c.l.b16 %v200
      %v360 = vunpack.c.h.b16 %v200
      %v361 = vunpack.c.l.b16 %v201
      %v362 = vunpack.c.h.b16 %v201
      %v363 = vunpack.c.l.b16 %v202
      %v364 = vunpack.c.h.b16 %v202
      %v365 = vunpack.c.l.b16 %v203
      %v366 = vunpack.c.h.b16 %v203
      %v367 = vunpack.c.l.b16 %v204
      %v368 = vunpack.c.h.b16 %v204
      %v369 = vunpack.c.l.b16 %v205
      %v370 = vunpack.c.h.b16 %v205
      %v371 = vunpack.c.l.b16 %v206
      %v372 = vunpack.c.h.b16 %v206
      %v373 = vunpack.c.l.b16 %v207
      %v374 = vunpack.c.h.b16 %v207
      %v375 = vunpack.c.l.b16 %v208
      %v376 = vunpack.c.h.b16 %v208
      %v377 = vunpack.c.l.b16 %v209
      %v378 = vunpack.c.h.b16 %v209
      %v379 = vunpack.c.l.b16 %v210
      %v380 = vunpack.c.h.b16 %v210
      %v381 = vunpack.c.l.b16 %v211
      %v382 = vunpack.c.h.b16 %v211
      %v383 = vunpack.c.l.b16 %v212
      %v384 = vunpack.c.h.b16 %v212
      %v385 = vunpack.c.l.b16 %v213
      %v386 = vunpack.c.h.b16 %v213
      %v387 = vunpack.c.l.b16 %v214
      %v388 = vunpack.c.h.b16 %v214
      %v389 = vunpack.c.l.b16 %v215
      %v390 = vunpack.c.h.b16 %v215
      %v391 = vunpack.c.l.b16 %v216
      %v392 = vunpack.c.h.b16 %v216
      %v393 = vunpack.c.l.b16 %v217
      %v394 = vunpack.c.h.b16 %v217
      %v395 = vunpack.c.l.b16 %v218
      %v396 = vunpack.c.h.b16 %v218
      %v397 = vunpack.c.l.b16 %v219
      %v398 = vunpack.c.h.b16 %v219
      %v399 = vunpack.c.l.b16 %v220
      %v400 = vunpack.c.h.b16 %v220
      %v401 = vunpack.c.l.b16 %v221
      %v402 = vunpack.c.h.b16 %v221
      %v403 = vunpack.c.l.b16 %v222
      %v404 = vunpack.c.h.b16 %v222
      %v405 = vunpack.c.l.b16 %v223
      %v406 = vunpack.c.h.b16 %v223
      %v407 = vunpack.c.l.b16 %v224
      %v408 = vunpack.c.h.b16 %v224
      %v409 = vunpack.c.l.b16 %v225
      %v410 = vunpack.c.h.b16 %v225
      %v411 = vunpack.c.l.b16 %v226
      %v412 = vunpack.c.h.b16 %v226
      %v413 = vpack.c.b16 %v315, %v313
      %v414 = vpack.c.b16 %v316, %v314
      %v415 = vpack.c.b16 %v319, %v317
      %v416 = vpack.c.b16 %v320, %v318
      %v417 = vpack.c.b16 %v323, %v321
      %v418 = vpack.c.b16 %v324, %v322
      %v419 = vpack.c.b16 %v327, %v325
      %v420 = vpack.c.b16 %v328, %v326
      %v421 = vpack.c.b16 %v331, %v329
      %v422 = vpack.c.b16 %v332, %v330
      %v423 = vpack.c.b16 %v335, %v333
      %v424 = vpack.c.b16 %v336, %v334
      %v425 = vpack.c.b16 %v339, %v337
      %v426 = vpack.c.b16 %v340, %v338
      %v427 = vpack.c.b16 %v343, %v341
      %v428 = vpack.c.b16 %v344, %v342
      %v429 = vpack.c.b16 %v347, %v345
      %v430 = vpack.c.b16 %v348, %v346
      %v431 = vpack.c.b16 %v351, %v349
      %v432 = vpack.c.b16 %v352, %v350
      %v433 = vpack.c.b16 %v355, %v353
      %v434 = vpack.c.b16 %v356, %v354
      %v435 = vpack.c.b16 %v359, %v357
      %v436 = vpack.c.b16 %v360, %v358
      %v437 = vpack.c.b16 %v363, %v361
      %v438 = vpack.c.b16 %v364, %v362
      %v439 = vpack.c.b16 %v367, %v365
      %v440 = vpack.c.b16 %v368, %v366
      %v441 = vpack.c.b16 %v371, %v369
      %v442 = vpack.c.b16 %v372, %v370
      %v443 = vpack.c.b16 %v375, %v373
      %v444 = vpack.c.b16 %v376, %v374
      %v445 = vpack.c.b16 %v379, %v377
      %v446 = vpack.c.b16 %v380, %v378
      %v447 = vpack.c.b16 %v383, %v381
      %v448 = vpack.c.b16 %v384, %v382
      %v449 = vpack.c.b16 %v387, %v385
      %v450 = vpack.c.b16 %v388, %v386
      %v451 = vpack.c.b16 %v391, %v389
      %v452 = vpack.c.b16 %v392, %v390
      %v453 = vpack.c.b16 %v395, %v393
      %v454 = vpack.c.b16 %v396, %v394
      %v455 = vpack.c.b16 %v399, %v397
      %v456 = vpack.c.b16 %v400, %v398
      %v457 = vpack.c.b16 %v403, %v401
      %v458 = vpack.c.b16 %v404, %v402
      %v459 = vpack.c.b16 %v407, %v405
      %v460 = vpack.c.b16 %v408, %v406
      %v461 = vpack.c.b16 %v411, %v409
      %v462 = vpack.c.b16 %v412, %v410
      %v545 = vunpack.c.l.b16 %v227
      %v546 = vunpack.c.l.b16 %v228
      %v547 = vunpack.c.l.b16 %v229
      %v548 = vunpack.c.l.b16 %v230
      %v549 = vunpack.c.l.b16 %v231
      %v550 = vunpack.c.l.b16 %v232
      %v551 = vunpack.c.l.b16 %v233
      %v552 = vunpack.c.l.b16 %v234
      %v553 = vunpack.c.l.b16 %v235
      %v554 = vunpack.c.l.b16 %v236
      %v555 = vunpack.c.l.b16 %v237
      %v556 = vunpack.c.l.b16 %v238
      %v557 = vunpack.c.l.b16 %v239
      %v558 = vunpack.c.l.b16 %v240
      %v559 = vunpack.c.l.b16 %v241
      %v560 = vunpack.c.l.b16 %v242
      %v561 = vunpack.c.l.b16 %v243
      %v562 = vunpack.c.l.b16 %v244
      %v563 = vunpack.c.l.b16 %v245
      %v564 = vunpack.c.l.b16 %v246
      %v565 = vunpack.c.l.b16 %v247
      %v566 = vunpack.c.l.b16 %v248
      %v567 = vunpack.c.l.b16 %v249
      %v568 = vunpack.c.l.b16 %v250
      %v569 = vunpack.c.l.b16 %v251
      %v570 = vunpack.c.l.b16 %v252
      %v571 = vunpack.c.l.b16 %v253
      %v572 = vunpack.c.l.b16 %v254
      %v573 = vunpack.c.l.b16 %v255
      %v574 = vunpack.c.l.b16 %v256
      %v575 = vunpack.c.l.b16 %v257
      %v576 = vunpack.c.l.b16 %v258
      %v577 = vpack.c.b16 %v546, %v545
      %v578 = vpack.c.b16 %v548, %v547
      %v579 = vpack.c.b16 %v550, %v549
      %v580 = vpack.c.b16 %v552, %v551
      %v581 = vpack.c.b16 %v554, %v553
      %v582 = vpack.c.b16 %v556, %v555
      %v583 = vpack.c.b16 %v558, %v557
      %v584 = vpack.c.b16 %v560, %v559
      %v585 = vpack.c.b16 %v562, %v561
      %v586 = vpack.c.b16 %v564, %v563
      %v587 = vpack.c.b16 %v566, %v565
      %v588 = vpack.c.b16 %v568, %v567
      %v589 = vpack.c.b16 %v570, %v569
      %v590 = vpack.c.b16 %v572, %v571
      %v591 = vpack.c.b16 %v574, %v573
      %v592 = vpack.c.b16 %v576, %v575
      %609 = vmatpush.bf16.msra.mxu0 %v584
      %610 = vmatpush.bf16.msra.mxu0 %v583
      %611 = vmatpush.bf16.msra.mxu0 %v582
      %612 = vmatpush.bf16.msra.mxu0 %v581
      %613 = vmatpush.bf16.msra.mxu0 %v580
      %614 = vmatpush.bf16.msra.mxu0 %v579
      %615 = vmatpush.bf16.msra.mxu0 %v578
      %616 = vmatpush.bf16.msra.mxu0 %v577
      %617 = vmatmul.bf16.gmra.mxu0 %v413
      %v618 = vpop.f32.mrf.mxu0
      %v619 = vadd.f32 %v261, %v618
      %v620 = vpop.f32.mrf.mxu0
      %v621 = vadd.f32 %v261, %v620
      %622 = vmatmul.bf16.gmra.mxu0 %v415
      %v623 = vpop.f32.mrf.mxu0
      %v624 = vadd.f32 %v261, %v623
      %v625 = vpop.f32.mrf.mxu0
      %v626 = vadd.f32 %v261, %v625
      %627 = vmatmul.bf16.gmra.mxu0 %v417
      %v628 = vpop.f32.mrf.mxu0
      %v629 = vadd.f32 %v261, %v628
      %v630 = vpop.f32.mrf.mxu0
      %v631 = vadd.f32 %v261, %v630
      %632 = vmatmul.bf16.gmra.mxu0 %v419
      %v633 = vpop.f32.mrf.mxu0
      %v634 = vadd.f32 %v261, %v633
      %v635 = vpop.f32.mrf.mxu0
      %v636 = vadd.f32 %v261, %v635
      %637 = vmatmul.bf16.gmra.mxu0 %v421
      %v638 = vpop.f32.mrf.mxu0
      %v639 = vadd.f32 %v261, %v638
      %v640 = vpop.f32.mrf.mxu0
      %v641 = vadd.f32 %v261, %v640
      %642 = vmatmul.bf16.gmra.mxu0 %v423
      %v643 = vpop.f32.mrf.mxu0
      %v644 = vadd.f32 %v261, %v643
      %v645 = vpop.f32.mrf.mxu0
      %v646 = vadd.f32 %v261, %v645
      %647 = vmatmul.bf16.gmra.mxu0 %v425
      %v648 = vpop.f32.mrf.mxu0
      %v649 = vadd.f32 %v261, %v648
      %v650 = vpop.f32.mrf.mxu0
      %v651 = vadd.f32 %v261, %v650
      %652 = vmatmul.bf16.gmra.mxu0 %v427
      %v653 = vpop.f32.mrf.mxu0
      %v654 = vadd.f32 %v261, %v653
      %v655 = vpop.f32.mrf.mxu0
      %v656 = vadd.f32 %v261, %v655
      %657 = vmatmul.bf16.gmra.mxu0 %v429
      %v658 = vpop.f32.mrf.mxu0
      %v659 = vadd.f32 %v261, %v658
      %v660 = vpop.f32.mrf.mxu0
      %v661 = vadd.f32 %v261, %v660
      %662 = vmatmul.bf16.gmra.mxu0 %v431
      %v663 = vpop.f32.mrf.mxu0
      %v664 = vadd.f32 %v261, %v663
      %v665 = vpop.f32.mrf.mxu0
      %v666 = vadd.f32 %v261, %v665
      %667 = vmatmul.bf16.gmra.mxu0 %v433
      %v668 = vpop.f32.mrf.mxu0
      %v669 = vadd.f32 %v261, %v668
      %v670 = vpop.f32.mrf.mxu0
      %v671 = vadd.f32 %v261, %v670
      %672 = vmatmul.bf16.gmra.mxu0 %v435
      %v673 = vpop.f32.mrf.mxu0
      %v674 = vadd.f32 %v261, %v673
      %v675 = vpop.f32.mrf.mxu0
      %v676 = vadd.f32 %v261, %v675
      %677 = vmatmul.bf16.gmra.mxu0 %v437
      %v678 = vpop.f32.mrf.mxu0
      %v679 = vadd.f32 %v261, %v678
      %v680 = vpop.f32.mrf.mxu0
      %v681 = vadd.f32 %v261, %v680
      %682 = vmatmul.bf16.gmra.mxu0 %v439
      %v683 = vpop.f32.mrf.mxu0
      %v684 = vadd.f32 %v261, %v683
      %v685 = vpop.f32.mrf.mxu0
      %v686 = vadd.f32 %v261, %v685
      %687 = vmatmul.bf16.gmra.mxu0 %v441
      %v688 = vpop.f32.mrf.mxu0
      %v689 = vadd.f32 %v261, %v688
      %v690 = vpop.f32.mrf.mxu0
      %v691 = vadd.f32 %v261, %v690
      %692 = vmatmul.bf16.gmra.mxu0 %v443
      %v693 = vpop.f32.mrf.mxu0
      %v694 = vadd.f32 %v261, %v693
      %v695 = vpop.f32.mrf.mxu0
      %v696 = vadd.f32 %v261, %v695
      %697 = vmatmul.bf16.gmra.mxu0 %v445
      %v698 = vpop.f32.mrf.mxu0
      %v699 = vadd.f32 %v261, %v698
      %v700 = vpop.f32.mrf.mxu0
      %v701 = vadd.f32 %v261, %v700
      %702 = vmatmul.bf16.gmra.mxu0 %v447
      %v703 = vpop.f32.mrf.mxu0
      %v704 = vadd.f32 %v261, %v703
      %v705 = vpop.f32.mrf.mxu0
      %v706 = vadd.f32 %v261, %v705
      %707 = vmatmul.bf16.gmra.mxu0 %v449
      %v708 = vpop.f32.mrf.mxu0
      %v709 = vadd.f32 %v261, %v708
      %v710 = vpop.f32.mrf.mxu0
      %v711 = vadd.f32 %v261, %v710
      %712 = vmatmul.bf16.gmra.mxu0 %v451
      %v713 = vpop.f32.mrf.mxu0
      %v714 = vadd.f32 %v261, %v713
      %v715 = vpop.f32.mrf.mxu0
      %v716 = vadd.f32 %v261, %v715
      %717 = vmatmul.bf16.gmra.mxu0 %v453
      %v718 = vpop.f32.mrf.mxu0
      %v719 = vadd.f32 %v261, %v718
      %v720 = vpop.f32.mrf.mxu0
      %v721 = vadd.f32 %v261, %v720
      %722 = vmatmul.bf16.gmra.mxu0 %v455
      %v723 = vpop.f32.mrf.mxu0
      %v724 = vadd.f32 %v261, %v723
      %v725 = vpop.f32.mrf.mxu0
      %v726 = vadd.f32 %v261, %v725
      %727 = vmatmul.bf16.gmra.mxu0 %v457
      %v728 = vpop.f32.mrf.mxu0
      %v729 = vadd.f32 %v261, %v728
      %v730 = vpop.f32.mrf.mxu0
      %v731 = vadd.f32 %v261, %v730
      %732 = vmatmul.bf16.gmra.mxu0 %v459
      %v733 = vpop.f32.mrf.mxu0
      %v734 = vadd.f32 %v261, %v733
      %v735 = vpop.f32.mrf.mxu0
      %v736 = vadd.f32 %v261, %v735
      %737 = vmatmul.bf16.gmra.mxu0 %v461
      %v738 = vpop.f32.mrf.mxu0
      %v739 = vadd.f32 %v261, %v738
      %v740 = vpop.f32.mrf.mxu0
      %v741 = vadd.f32 %v261, %v740
      %742 = vdwg.mxu0
      %743 = vmatpush.bf16.msra.mxu0 %v592
      %744 = vmatpush.bf16.msra.mxu0 %v591
      %745 = vmatpush.bf16.msra.mxu0 %v590
      %746 = vmatpush.bf16.msra.mxu0 %v589
      %747 = vmatpush.bf16.msra.mxu0 %v588
      %748 = vmatpush.bf16.msra.mxu0 %v587
      %749 = vmatpush.bf16.msra.mxu0 %v586
      %750 = vmatpush.bf16.msra.mxu0 %v585
      %751 = vmatmul.bf16.gmra.mxu0 %v414
      %v752 = vpop.f32.mrf.mxu0
      %v753 = vadd.f32 %v619, %v752
      %v754 = vpop.f32.mrf.mxu0
      %v755 = vadd.f32 %v621, %v754
      %756 = vmatmul.bf16.gmra.mxu0 %v416
      %v757 = vpop.f32.mrf.mxu0
      %v758 = vadd.f32 %v624, %v757
      %v759 = vpop.f32.mrf.mxu0
      %v760 = vadd.f32 %v626, %v759
      %761 = vmatmul.bf16.gmra.mxu0 %v418
      %v762 = vpop.f32.mrf.mxu0
      %v763 = vadd.f32 %v629, %v762
      %v764 = vpop.f32.mrf.mxu0
      %v765 = vadd.f32 %v631, %v764
      %766 = vmatmul.bf16.gmra.mxu0 %v420
      %v767 = vpop.f32.mrf.mxu0
      %v768 = vadd.f32 %v634, %v767
      %v769 = vpop.f32.mrf.mxu0
      %v770 = vadd.f32 %v636, %v769
      %771 = vmatmul.bf16.gmra.mxu0 %v422
      %v772 = vpop.f32.mrf.mxu0
      %v773 = vadd.f32 %v639, %v772
      %v774 = vpop.f32.mrf.mxu0
      %v775 = vadd.f32 %v641, %v774
      %776 = vmatmul.bf16.gmra.mxu0 %v424
      %v777 = vpop.f32.mrf.mxu0
      %v778 = vadd.f32 %v644, %v777
      %v779 = vpop.f32.mrf.mxu0
      %v780 = vadd.f32 %v646, %v779
      %781 = vmatmul.bf16.gmra.mxu0 %v426
      %v782 = vpop.f32.mrf.mxu0
      %v783 = vadd.f32 %v649, %v782
      %v784 = vpop.f32.mrf.mxu0
      %v785 = vadd.f32 %v651, %v784
      %786 = vmatmul.bf16.gmra.mxu0 %v428
      %v787 = vpop.f32.mrf.mxu0
      %v788 = vadd.f32 %v654, %v787
      %v789 = vpop.f32.mrf.mxu0
      %v790 = vadd.f32 %v656, %v789
      %791 = vmatmul.bf16.gmra.mxu0 %v430
      %v792 = vpop.f32.mrf.mxu0
      %v793 = vadd.f32 %v659, %v792
      %v794 = vpop.f32.mrf.mxu0
      %v795 = vadd.f32 %v661, %v794
      %796 = vmatmul.bf16.gmra.mxu0 %v432
      %v797 = vpop.f32.mrf.mxu0
      %v798 = vadd.f32 %v664, %v797
      %v799 = vpop.f32.mrf.mxu0
      %v800 = vadd.f32 %v666, %v799
      %801 = vmatmul.bf16.gmra.mxu0 %v434
      %v802 = vpop.f32.mrf.mxu0
      %v803 = vadd.f32 %v669, %v802
      %v804 = vpop.f32.mrf.mxu0
      %v805 = vadd.f32 %v671, %v804
      %806 = vmatmul.bf16.gmra.mxu0 %v436
      %v807 = vpop.f32.mrf.mxu0
      %v808 = vadd.f32 %v674, %v807
      %v809 = vpop.f32.mrf.mxu0
      %v810 = vadd.f32 %v676, %v809
      %811 = vmatmul.bf16.gmra.mxu0 %v438
      %v812 = vpop.f32.mrf.mxu0
      %v813 = vadd.f32 %v679, %v812
      %v814 = vpop.f32.mrf.mxu0
      %v815 = vadd.f32 %v681, %v814
      %816 = vmatmul.bf16.gmra.mxu0 %v440
      %v817 = vpop.f32.mrf.mxu0
      %v818 = vadd.f32 %v684, %v817
      %v819 = vpop.f32.mrf.mxu0
      %v820 = vadd.f32 %v686, %v819
      %821 = vmatmul.bf16.gmra.mxu0 %v442
      %v822 = vpop.f32.mrf.mxu0
      %v823 = vadd.f32 %v689, %v822
      %v824 = vpop.f32.mrf.mxu0
      %v825 = vadd.f32 %v691, %v824
      %826 = vmatmul.bf16.gmra.mxu0 %v444
      %v827 = vpop.f32.mrf.mxu0
      %v828 = vadd.f32 %v694, %v827
      %v829 = vpop.f32.mrf.mxu0
      %v830 = vadd.f32 %v696, %v829
      %831 = vmatmul.bf16.gmra.mxu0 %v446
      %v832 = vpop.f32.mrf.mxu0
      %v833 = vadd.f32 %v699, %v832
      %v834 = vpop.f32.mrf.mxu0
      %v835 = vadd.f32 %v701, %v834
      %836 = vmatmul.bf16.gmra.mxu0 %v448
      %v837 = vpop.f32.mrf.mxu0
      %v838 = vadd.f32 %v704, %v837
      %v839 = vpop.f32.mrf.mxu0
      %v840 = vadd.f32 %v706, %v839
      %841 = vmatmul.bf16.gmra.mxu0 %v450
      %v842 = vpop.f32.mrf.mxu0
      %v843 = vadd.f32 %v709, %v842
      %v844 = vpop.f32.mrf.mxu0
      %v845 = vadd.f32 %v711, %v844
      %846 = vmatmul.bf16.gmra.mxu0 %v452
      %v847 = vpop.f32.mrf.mxu0
      %v848 = vadd.f32 %v714, %v847
      %v849 = vpop.f32.mrf.mxu0
      %v850 = vadd.f32 %v716, %v849
      %851 = vmatmul.bf16.gmra.mxu0 %v454
      %v852 = vpop.f32.mrf.mxu0
      %v853 = vadd.f32 %v719, %v852
      %v854 = vpop.f32.mrf.mxu0
      %v855 = vadd.f32 %v721, %v854
      %856 = vmatmul.bf16.gmra.mxu0 %v456
      %v857 = vpop.f32.mrf.mxu0
      %v858 = vadd.f32 %v724, %v857
      %v859 = vpop.f32.mrf.mxu0
      %v860 = vadd.f32 %v726, %v859
      %861 = vmatmul.bf16.gmra.mxu0 %v458
      %v862 = vpop.f32.mrf.mxu0
      %v863 = vadd.f32 %v729, %v862
      %v864 = vpop.f32.mrf.mxu0
      %v865 = vadd.f32 %v731, %v864
      %866 = vmatmul.bf16.gmra.mxu0 %v460
      %v867 = vpop.f32.mrf.mxu0
      %v868 = vadd.f32 %v734, %v867
      %v869 = vpop.f32.mrf.mxu0
      %v870 = vadd.f32 %v736, %v869
      %871 = vmatmul.bf16.gmra.mxu0 %v462
      %v872 = vpop.f32.mrf.mxu0
      %v873 = vadd.f32 %v739, %v872
      %v874 = vpop.f32.mrf.mxu0
      %v875 = vadd.f32 %v741, %v874
      %876 = vdwg.mxu0
      %v877 = vmax.f32 %v753, 0.0
      %v878 = vmax.f32 %v755, 0.0
      %v879 = vmax.f32 %v758, 0.0
      %v880 = vmax.f32 %v760, 0.0
      %v881 = vmax.f32 %v763, 0.0
      %v882 = vmax.f32 %v765, 0.0
      %v883 = vmax.f32 %v768, 0.0
      %v884 = vmax.f32 %v770, 0.0
      %v885 = vmax.f32 %v773, 0.0
      %v886 = vmax.f32 %v775, 0.0
      %v887 = vmax.f32 %v778, 0.0
      %v888 = vmax.f32 %v780, 0.0
      %v889 = vmax.f32 %v783, 0.0
      %v890 = vmax.f32 %v785, 0.0
      %v891 = vmax.f32 %v788, 0.0
      %v892 = vmax.f32 %v790, 0.0
      %v893 = vmax.f32 %v793, 0.0
      %v894 = vmax.f32 %v795, 0.0
      %v895 = vmax.f32 %v798, 0.0
      %v896 = vmax.f32 %v800, 0.0
      %v897 = vmax.f32 %v803, 0.0
      %v898 = vmax.f32 %v805, 0.0
      %v899 = vmax.f32 %v808, 0.0
      %v900 = vmax.f32 %v810, 0.0
      %v901 = vmax.f32 %v813, 0.0
      %v902 = vmax.f32 %v815, 0.0
      %v903 = vmax.f32 %v818, 0.0
      %v904 = vmax.f32 %v820, 0.0
      %v905 = vmax.f32 %v823, 0.0
      %v906 = vmax.f32 %v825, 0.0
      %v907 = vmax.f32 %v828, 0.0
      %v908 = vmax.f32 %v830, 0.0
      %v909 = vmax.f32 %v833, 0.0
      %v910 = vmax.f32 %v835, 0.0
      %v911 = vmax.f32 %v838, 0.0
      %v912 = vmax.f32 %v840, 0.0
      %v913 = vmax.f32 %v843, 0.0
      %v914 = vmax.f32 %v845, 0.0
      %v915 = vmax.f32 %v848, 0.0
      %v916 = vmax.f32 %v850, 0.0
      %v917 = vmax.f32 %v853, 0.0
      %v918 = vmax.f32 %v855, 0.0
      %v919 = vmax.f32 %v858, 0.0
      %v920 = vmax.f32 %v860, 0.0
      %v921 = vmax.f32 %v863, 0.0
      %v922 = vmax.f32 %v865, 0.0
      %v923 = vmax.f32 %v868, 0.0
      %v924 = vmax.f32 %v870, 0.0
      %v925 = vmax.f32 %v873, 0.0
      %v926 = vmax.f32 %v875, 0.0
      %v927 = vpack.c.bf16 %v877, %v877
      %v928 = vpack.c.bf16 %v878, %v878
      %v929 = vpack.c.bf16 %v879, %v879
      %v930 = vpack.c.bf16 %v880, %v880
      %v931 = vpack.c.bf16 %v881, %v881
      %v932 = vpack.c.bf16 %v882, %v882
      %v933 = vpack.c.bf16 %v883, %v883
      %v934 = vpack.c.bf16 %v884, %v884
      %v935 = vpack.c.bf16 %v885, %v885
      %v936 = vpack.c.bf16 %v886, %v886
      %v937 = vpack.c.bf16 %v887, %v887
      %v938 = vpack.c.bf16 %v888, %v888
      %v939 = vpack.c.bf16 %v889, %v889
      %v940 = vpack.c.bf16 %v890, %v890
      %v941 = vpack.c.bf16 %v891, %v891
      %v942 = vpack.c.bf16 %v892, %v892
      %v943 = vpack.c.bf16 %v893, %v893
      %v944 = vpack.c.bf16 %v894, %v894
      %v945 = vpack.c.bf16 %v895, %v895
      %v946 = vpack.c.bf16 %v896, %v896
      %v947 = vpack.c.bf16 %v897, %v897
      %v948 = vpack.c.bf16 %v898, %v898
      %v949 = vpack.c.bf16 %v899, %v899
      %v950 = vpack.c.bf16 %v900, %v900
      %v951 = vpack.c.bf16 %v901, %v901
      %v952 = vpack.c.bf16 %v902, %v902
      %v953 = vpack.c.bf16 %v903, %v903
      %v954 = vpack.c.bf16 %v904, %v904
      %v955 = vpack.c.bf16 %v905, %v905
      %v956 = vpack.c.bf16 %v906, %v906
      %v957 = vpack.c.bf16 %v907, %v907
      %v958 = vpack.c.bf16 %v908, %v908
      %v959 = vpack.c.bf16 %v909, %v909
      %v960 = vpack.c.bf16 %v910, %v910
      %v961 = vpack.c.bf16 %v911, %v911
      %v962 = vpack.c.bf16 %v912, %v912
      %v963 = vpack.c.bf16 %v913, %v913
      %v964 = vpack.c.bf16 %v914, %v914
      %v965 = vpack.c.bf16 %v915, %v915
      %v966 = vpack.c.bf16 %v916, %v916
      %v967 = vpack.c.bf16 %v917, %v917
      %v968 = vpack.c.bf16 %v918, %v918
      %v969 = vpack.c.bf16 %v919, %v919
      %v970 = vpack.c.bf16 %v920, %v920
      %v971 = vpack.c.bf16 %v921, %v921
      %v972 = vpack.c.bf16 %v922, %v922
      %v973 = vpack.c.bf16 %v923, %v923
      %v974 = vpack.c.bf16 %v924, %v924
      %v975 = vpack.c.bf16 %v925, %v925
      %v976 = vpack.c.bf16 %v926, %v926
      %vm977 = vcmask 257024
      %978 = vst.msk [vmem:[%s175] sm:$0xf] %vm977, %v927
      %979 = vst.msk [vmem:[%s175 + $0x4] sm:$0xf] %vm977, %v928
      %980 = vst.msk [vmem:[%s175 + $0x8] sm:$0xf] %vm977, %v929
      %981 = vst.msk [vmem:[%s175 + $0xc] sm:$0xf] %vm977, %v930
      %982 = vst.msk [vmem:[%s175 + $0x10] sm:$0xf] %vm977, %v931
      %983 = vst.msk [vmem:[%s175 + $0x14] sm:$0xf] %vm977, %v932
      %984 = vst.msk [vmem:[%s175 + $0x18] sm:$0xf] %vm977, %v933
      %985 = vst.msk [vmem:[%s175 + $0x1c] sm:$0xf] %vm977, %v934
      %986 = vst.msk [vmem:[%s175 + $0x20] sm:$0xf] %vm977, %v935
      %987 = vst.msk [vmem:[%s175 + $0x24] sm:$0xf] %vm977, %v936
      %988 = vst.msk [vmem:[%s175 + $0x28] sm:$0xf] %vm977, %v937
      %989 = vst.msk [vmem:[%s175 + $0x2c] sm:$0xf] %vm977, %v938
      %990 = vst.msk [vmem:[%s175 + $0x30] sm:$0xf] %vm977, %v939
      %991 = vst.msk [vmem:[%s175 + $0x34] sm:$0xf] %vm977, %v940
      %992 = vst.msk [vmem:[%s175 + $0x38] sm:$0xf] %vm977, %v941
      %993 = vst.msk [vmem:[%s175 + $0x3c] sm:$0xf] %vm977, %v942
      %994 = vst.msk [vmem:[%s175 + $0x40] sm:$0xf] %vm977, %v943
      %995 = vst.msk [vmem:[%s175 + $0x44] sm:$0xf] %vm977, %v944
      %996 = vst.msk [vmem:[%s175 + $0x48] sm:$0xf] %vm977, %v945
      %997 = vst.msk [vmem:[%s175 + $0x4c] sm:$0xf] %vm977, %v946
      %998 = vst.msk [vmem:[%s175 + $0x50] sm:$0xf] %vm977, %v947
      %999 = vst.msk [vmem:[%s175 + $0x54] sm:$0xf] %vm977, %v948
      %1000 = vst.msk [vmem:[%s175 + $0x58] sm:$0xf] %vm977, %v949
      %1001 = vst.msk [vmem:[%s175 + $0x5c] sm:$0xf] %vm977, %v950
      %1002 = vst.msk [vmem:[%s175 + $0x60] sm:$0xf] %vm977, %v951
      %1003 = vst.msk [vmem:[%s175 + $0x64] sm:$0xf] %vm977, %v952
      %1004 = vst.msk [vmem:[%s175 + $0x68] sm:$0xf] %vm977, %v953
      %1005 = vst.msk [vmem:[%s175 + $0x6c] sm:$0xf] %vm977, %v954
      %1006 = vst.msk [vmem:[%s175 + $0x70] sm:$0xf] %vm977, %v955
      %1007 = vst.msk [vmem:[%s175 + $0x74] sm:$0xf] %vm977, %v956
      %1008 = vst.msk [vmem:[%s175 + $0x78] sm:$0xf] %vm977, %v957
      %1009 = vst.msk [vmem:[%s175 + $0x7c] sm:$0xf] %vm977, %v958
      %1010 = vst.msk [vmem:[%s175 + $0x80] sm:$0xf] %vm977, %v959
      %1011 = vst.msk [vmem:[%s175 + $0x84] sm:$0xf] %vm977, %v960
      %1012 = vst.msk [vmem:[%s175 + $0x88] sm:$0xf] %vm977, %v961
      %1013 = vst.msk [vmem:[%s175 + $0x8c] sm:$0xf] %vm977, %v962
      %1014 = vst.msk [vmem:[%s175 + $0x90] sm:$0xf] %vm977, %v963
      %1015 = vst.msk [vmem:[%s175 + $0x94] sm:$0xf] %vm977, %v964
      %1016 = vst.msk [vmem:[%s175 + $0x98] sm:$0xf] %vm977, %v965
      %1017 = vst.msk [vmem:[%s175 + $0x9c] sm:$0xf] %vm977, %v966
      %1018 = vst.msk [vmem:[%s175 + $0xa0] sm:$0xf] %vm977, %v967
      %1019 = vst.msk [vmem:[%s175 + $0xa4] sm:$0xf] %vm977, %v968
      %1020 = vst.msk [vmem:[%s175 + $0xa8] sm:$0xf] %vm977, %v969
      %1021 = vst.msk [vmem:[%s175 + $0xac] sm:$0xf] %vm977, %v970
      %1022 = vst.msk [vmem:[%s175 + $0xb0] sm:$0xf] %vm977, %v971
      %1023 = vst.msk [vmem:[%s175 + $0xb4] sm:$0xf] %vm977, %v972
      %1024 = vst.msk [vmem:[%s175 + $0xb8] sm:$0xf] %vm977, %v973
      %1025 = vst.msk [vmem:[%s175 + $0xbc] sm:$0xf] %vm977, %v974
      %1026 = vst.msk [vmem:[%s175 + $0xc0] sm:$0xf] %vm977, %v975
      %1027 = vst.msk [vmem:[%s175 + $0xc4] sm:$0xf] %vm977, %v976
      %s1028 = smul.u32 50, %s14
      %p1029 = scmp.lt.s32.totalorder %s1028, 99
      %s1030 = scalar_select %p1029, %s1028, 99
      %s1031 = smul.addr %s1030, 4
      %s1032 = scalar_lea.vmem %s3, %s1031
      // Predicated region
      $region33: #{qnet_forward.4} parent=31 // pred_check
        %p1033 = pneg %p100
      $region34: #{qnet_forward.4} parent=31 // pred_check_branch
        %1035 = sbr.rel (%p1033) target = $region36
      $region35: #{qnet_forward.4} parent=31 // pred_region
        %s1036 = smul.u32 50, %s14
      $region36: #{qnet_forward.4} parent=31 // pred_fallthru
        _
    $region32: #{qnet_forward.4} parent=5 // pred_fallthru
      _
    %p1037 = scmp.le.s32.totalorder 2, %s9
    // Predicated region
    $region37: #{qnet_forward.4} parent=5 // pred_check
      %p1038 = pneg %p1037
    $region38: #{qnet_forward.4} parent=5 // pred_check_branch
      %1040 = sbr.rel (%p1038) target = $region40
    $region39: #{qnet_forward.4} parent=5 // pred_region
      %s1041 = ssub.s32 %s9, 2
      // Predicated region
      $region41: #{qnet_forward.4} parent=39 // pred_check
        %p1042 = pneg %p106
      $region42: #{qnet_forward.4} parent=39 // pred_check_branch
        %1044 = sbr.rel (%p1042) target = $region44
      $region43: #{qnet_forward.4} parent=39 // pred_region
        %s1045 = smul.u32 50, %s15
        %p1046 = scmp.lt.s32.totalorder %s1045, 99
        %s1047 = scalar_select %p1046, %s1045, 99
        %s1048 = smul.addr %s1047, 4
        %s1049 = scalar_lea.vmem %s3, %s1048
      $region44: #{qnet_forward.4} parent=39 // pred_fallthru
        _
    $region40: #{qnet_forward.4} parent=5 // pred_fallthru
      _
  $region6: #{qnet_forward.4} parent=0 // loop_footer
    %s13 = sadd.s32 1, %s9
  $region7: #{qnet_forward.4} parent=0 // loop_footer_branch
    %8 = sbr.rel target = $region3
  $region8: #{qnet_forward.4} parent=0 // loop_exit
    _

// kernel: qnet_forward.5
$region0: #{qnet_forward.5}
  #allocation0 [shape = 'u32[]', space=smem, size = 0x4, offset = 0x4, fixed_abs, tag = 'smem constant byte address 0x4 - core index']
  #allocation1 [shape = 'u32[72,128]{1,0:T(1,128)}', space=vmem, size = 0x9000, scoped, tag = 'internal scratch']
  %s0 = inlined_call_operand.vmem [shape: bf16[168,512], index: 0, kind: input, shape index: {}]
  %s1 = inlined_call_operand.vmem [shape: bf16[512,64], index: 1, kind: input, shape index: {}]
  %s2 = inlined_call_operand.vmem [shape: f32[1,64], index: 2, kind: input, shape index: {}]
  %s3 = inlined_call_operand.vmem [shape: bf16[168,64], index: 3, kind: output, shape index: {}]
  %s4 = sld [smem:[#allocation0]]
  $region22: #{qnet_forward.5} parent=0
    _
  %s6 = ssub.s32 1, %s4
  %s7 = scalar_select 0, %s6, %s4
  // Predicated region
  $region2: #{qnet_forward.5} parent=0 // pred_check
    _
  $region3: #{qnet_forward.5} parent=0 // pred_check_branch
    %9 = sbr.rel (0) target = $region5
  $region4: #{qnet_forward.5} parent=0 // pred_region
    _
  $region5: #{qnet_forward.5} parent=0 // pred_fallthru
    _
  // Predicated region
  $region6: #{qnet_forward.5} parent=0 // pred_check
    _
  $region7: #{qnet_forward.5} parent=0 // pred_check_branch
    %11 = sbr.rel (0) target = $region9
  $region8: #{qnet_forward.5} parent=0 // pred_region
    _
  $region9: #{qnet_forward.5} parent=0 // pred_fallthru
    _
  // Predicated region
  $region10: #{qnet_forward.5} parent=0 // pred_check
    _
  $region11: #{qnet_forward.5} parent=0 // pred_check_branch
    %13 = sbr.rel (0) target = $region13
  $region12: #{qnet_forward.5} parent=0 // pred_region
    _
  $region13: #{qnet_forward.5} parent=0 // pred_fallthru
    _
  %v14 = vld [vmem:[%s0] sm:$0xff]
  %v15 = vld [vmem:[%s0 + $0x8] sm:$0xff]
  %v16 = vld [vmem:[%s0 + $0x10] sm:$0xff]
  %v17 = vld [vmem:[%s0 + $0x18] sm:$0xff]
  %v18 = vld [vmem:[%s0 + $0x20] sm:$0xff]
  %v19 = vld [vmem:[%s0 + $0x28] sm:$0xff]
  %v20 = vld [vmem:[%s0 + $0x30] sm:$0xff]
  %v21 = vld [vmem:[%s0 + $0x38] sm:$0xff]
  %v22 = vld [vmem:[%s0 + $0x40] sm:$0xff]
  %v23 = vld [vmem:[%s0 + $0x48] sm:$0xff]
  %v24 = vld [vmem:[%s0 + $0x50] sm:$0xff]
  %v25 = vld [vmem:[%s0 + $0x58] sm:$0xff]
  %v26 = vld [vmem:[%s0 + $0x60] sm:$0xff]
  %v27 = vld [vmem:[%s0 + $0x68] sm:$0xff]
  %v28 = vld [vmem:[%s0 + $0x70] sm:$0xff]
  %v29 = vld [vmem:[%s0 + $0x78] sm:$0xff]
  %v30 = vld [vmem:[%s0 + $0x80] sm:$0xff]
  %v31 = vld [vmem:[%s0 + $0x88] sm:$0xff]
  %v32 = vld [vmem:[%s0 + $0x90] sm:$0xff]
  %v33 = vld [vmem:[%s0 + $0x98] sm:$0xff]
  %v34 = vld [vmem:[%s0 + $0xa0] sm:$0xff]
  %v35 = vld [vmem:[%s0 + $0xa8] sm:$0xff]
  %v36 = vld [vmem:[%s0 + $0xb0] sm:$0xff]
  %v37 = vld [vmem:[%s0 + $0xb8] sm:$0xff]
  %v38 = vld [vmem:[%s0 + $0xc0] sm:$0xff]
  %v39 = vld [vmem:[%s0 + $0xc8] sm:$0xff]
  %v40 = vld [vmem:[%s0 + $0xd0] sm:$0xff]
  %v41 = vld [vmem:[%s0 + $0xd8] sm:$0xff]
  %v42 = vld [vmem:[%s0 + $0xe0] sm:$0xff]
  %v43 = vld [vmem:[%s0 + $0xe8] sm:$0xff]
  %v44 = vld [vmem:[%s0 + $0xf0] sm:$0xff]
  %v45 = vld [vmem:[%s0 + $0xf8] sm:$0xff]
  %v46 = vld [vmem:[%s0 + $0x100] sm:$0xff]
  %v47 = vld [vmem:[%s0 + $0x108] sm:$0xff]
  %v48 = vld [vmem:[%s0 + $0x110] sm:$0xff]
  %v49 = vld [vmem:[%s0 + $0x118] sm:$0xff]
  %v50 = vld [vmem:[%s0 + $0x120] sm:$0xff]
  %v51 = vld [vmem:[%s0 + $0x128] sm:$0xff]
  %v52 = vld [vmem:[%s0 + $0x130] sm:$0xff]
  %v53 = vld [vmem:[%s0 + $0x138] sm:$0xff]
  %v54 = vld [vmem:[%s0 + $0x140] sm:$0xff]
  %v55 = vld [vmem:[%s0 + $0x148] sm:$0xff]
  %v56 = vld [vmem:[%s1] sm:$0xf]
  %v57 = vld [vmem:[%s1 + $0x4] sm:$0xf]
  %v58 = vld [vmem:[%s1 + $0x8] sm:$0xf]
  %v59 = vld [vmem:[%s1 + $0xc] sm:$0xf]
  %v60 = vld [vmem:[%s1 + $0x10] sm:$0xf]
  %v61 = vld [vmem:[%s1 + $0x14] sm:$0xf]
  %v62 = vld [vmem:[%s1 + $0x18] sm:$0xf]
  %v63 = vld [vmem:[%s1 + $0x1c] sm:$0xf]
  %v64 = vld [vmem:[%s1 + $0x20] sm:$0xf]
  %v65 = vld [vmem:[%s1 + $0x24] sm:$0xf]
  %v66 = vld [vmem:[%s1 + $0x28] sm:$0xf]
  %v67 = vld [vmem:[%s1 + $0x2c] sm:$0xf]
  %v68 = vld [vmem:[%s1 + $0x30] sm:$0xf]
  %v69 = vld [vmem:[%s1 + $0x34] sm:$0xf]
  %v70 = vld [vmem:[%s1 + $0x38] sm:$0xf]
  %v71 = vld [vmem:[%s1 + $0x3c] sm:$0xf]
  %v72 = vld [vmem:[%s1 + $0x40] sm:$0xf]
  %v73 = vld [vmem:[%s1 + $0x44] sm:$0xf]
  %v74 = vld [vmem:[%s1 + $0x48] sm:$0xf]
  %v75 = vld [vmem:[%s1 + $0x4c] sm:$0xf]
  %v76 = vld [vmem:[%s1 + $0x50] sm:$0xf]
  %v77 = vld [vmem:[%s1 + $0x54] sm:$0xf]
  %v78 = vld [vmem:[%s1 + $0x58] sm:$0xf]
  %v79 = vld [vmem:[%s1 + $0x5c] sm:$0xf]
  %v80 = vld [vmem:[%s1 + $0x60] sm:$0xf]
  %v81 = vld [vmem:[%s1 + $0x64] sm:$0xf]
  %v82 = vld [vmem:[%s1 + $0x68] sm:$0xf]
  %v83 = vld [vmem:[%s1 + $0x6c] sm:$0xf]
  %v84 = vld [vmem:[%s1 + $0x70] sm:$0xf]
  %v85 = vld [vmem:[%s1 + $0x74] sm:$0xf]
  %v86 = vld [vmem:[%s1 + $0x78] sm:$0xf]
  %v87 = vld [vmem:[%s1 + $0x7c] sm:$0xf]
  %v88 = vld [vmem:[%s1 + $0x80] sm:$0xf]
  %v89 = vld [vmem:[%s1 + $0x84] sm:$0xf]
  %v90 = vld [vmem:[%s1 + $0x88] sm:$0xf]
  %v91 = vld [vmem:[%s1 + $0x8c] sm:$0xf]
  %v92 = vld [vmem:[%s1 + $0x90] sm:$0xf]
  %v93 = vld [vmem:[%s1 + $0x94] sm:$0xf]
  %v94 = vld [vmem:[%s1 + $0x98] sm:$0xf]
  %v95 = vld [vmem:[%s1 + $0x9c] sm:$0xf]
  %v96 = vld [vmem:[%s1 + $0xa0] sm:$0xf]
  %v97 = vld [vmem:[%s1 + $0xa4] sm:$0xf]
  %v98 = vld [vmem:[%s1 + $0xa8] sm:$0xf]
  %v99 = vld [vmem:[%s1 + $0xac] sm:$0xf]
  %v100 = vld [vmem:[%s1 + $0xb0] sm:$0xf]
  %v101 = vld [vmem:[%s1 + $0xb4] sm:$0xf]
  %v102 = vld [vmem:[%s1 + $0xb8] sm:$0xf]
  %v103 = vld [vmem:[%s1 + $0xbc] sm:$0xf]
  %v104 = vld [vmem:[%s1 + $0xc0] sm:$0xf]
  %v105 = vld [vmem:[%s1 + $0xc4] sm:$0xf]
  %v106 = vld [vmem:[%s1 + $0xc8] sm:$0xf]
  %v107 = vld [vmem:[%s1 + $0xcc] sm:$0xf]
  %v108 = vld [vmem:[%s1 + $0xd0] sm:$0xf]
  %v109 = vld [vmem:[%s1 + $0xd4] sm:$0xf]
  %v110 = vld [vmem:[%s1 + $0xd8] sm:$0xf]
  %v111 = vld [vmem:[%s1 + $0xdc] sm:$0xf]
  %v112 = vld [vmem:[%s1 + $0xe0] sm:$0xf]
  %v113 = vld [vmem:[%s1 + $0xe4] sm:$0xf]
  %v114 = vld [vmem:[%s1 + $0xe8] sm:$0xf]
  %v115 = vld [vmem:[%s1 + $0xec] sm:$0xf]
  %v116 = vld [vmem:[%s1 + $0xf0] sm:$0xf]
  %v117 = vld [vmem:[%s1 + $0xf4] sm:$0xf]
  %v118 = vld [vmem:[%s1 + $0xf8] sm:$0xf]
  %v119 = vld [vmem:[%s1 + $0xfc] sm:$0xf]
  %v120 = vld [vmem:[%s2] sm:$0x1]
  %v122 = vperm.slane %v120, 0
  %v166 = vunpack.c.l.b16 %v14
  %v167 = vunpack.c.h.b16 %v14
  %v168 = vunpack.c.l.b16 %v15
  %v169 = vunpack.c.h.b16 %v15
  %v170 = vunpack.c.l.b16 %v16
  %v171 = vunpack.c.h.b16 %v16
  %v172 = vunpack.c.l.b16 %v17
  %v173 = vunpack.c.h.b16 %v17
  %v174 = vunpack.c.l.b16 %v18
  %v175 = vunpack.c.h.b16 %v18
  %v176 = vunpack.c.l.b16 %v19
  %v177 = vunpack.c.h.b16 %v19
  %v178 = vunpack.c.l.b16 %v20
  %v179 = vunpack.c.h.b16 %v20
  %v180 = vunpack.c.l.b16 %v21
  %v181 = vunpack.c.h.b16 %v21
  %v182 = vunpack.c.l.b16 %v22
  %v183 = vunpack.c.h.b16 %v22
  %v184 = vunpack.c.l.b16 %v23
  %v185 = vunpack.c.h.b16 %v23
  %v186 = vunpack.c.l.b16 %v24
  %v187 = vunpack.c.h.b16 %v24
  %v188 = vunpack.c.l.b16 %v25
  %v189 = vunpack.c.h.b16 %v25
  %v190 = vunpack.c.l.b16 %v26
  %v191 = vunpack.c.h.b16 %v26
  %v192 = vunpack.c.l.b16 %v27
  %v193 = vunpack.c.h.b16 %v27
  %v194 = vunpack.c.l.b16 %v28
  %v195 = vunpack.c.h.b16 %v28
  %v196 = vunpack.c.l.b16 %v29
  %v197 = vunpack.c.h.b16 %v29
  %v198 = vunpack.c.l.b16 %v30
  %v199 = vunpack.c.h.b16 %v30
  %v200 = vunpack.c.l.b16 %v31
  %v201 = vunpack.c.h.b16 %v31
  %v202 = vunpack.c.l.b16 %v32
  %v203 = vunpack.c.h.b16 %v32
  %v204 = vunpack.c.l.b16 %v33
  %v205 = vunpack.c.h.b16 %v33
  %v206 = vunpack.c.l.b16 %v34
  %v207 = vunpack.c.h.b16 %v34
  %v208 = vunpack.c.l.b16 %v35
  %v209 = vunpack.c.h.b16 %v35
  %v210 = vunpack.c.l.b16 %v36
  %v211 = vunpack.c.h.b16 %v36
  %v212 = vunpack.c.l.b16 %v37
  %v213 = vunpack.c.h.b16 %v37
  %v214 = vunpack.c.l.b16 %v38
  %v215 = vunpack.c.h.b16 %v38
  %v216 = vunpack.c.l.b16 %v39
  %v217 = vunpack.c.h.b16 %v39
  %v218 = vunpack.c.l.b16 %v40
  %v219 = vunpack.c.h.b16 %v40
  %v220 = vunpack.c.l.b16 %v41
  %v221 = vunpack.c.h.b16 %v41
  %v222 = vunpack.c.l.b16 %v42
  %v223 = vunpack.c.h.b16 %v42
  %v224 = vunpack.c.l.b16 %v43
  %v225 = vunpack.c.h.b16 %v43
  %v226 = vunpack.c.l.b16 %v44
  %v227 = vunpack.c.h.b16 %v44
  %v228 = vunpack.c.l.b16 %v45
  %v229 = vunpack.c.h.b16 %v45
  %v230 = vunpack.c.l.b16 %v46
  %v231 = vunpack.c.h.b16 %v46
  %v232 = vunpack.c.l.b16 %v47
  %v233 = vunpack.c.h.b16 %v47
  %v234 = vunpack.c.l.b16 %v48
  %v235 = vunpack.c.h.b16 %v48
  %v236 = vunpack.c.l.b16 %v49
  %v237 = vunpack.c.h.b16 %v49
  %v238 = vunpack.c.l.b16 %v50
  %v239 = vunpack.c.h.b16 %v50
  %v240 = vunpack.c.l.b16 %v51
  %v241 = vunpack.c.h.b16 %v51
  %v242 = vunpack.c.l.b16 %v52
  %v243 = vunpack.c.h.b16 %v52
  %v244 = vunpack.c.l.b16 %v53
  %v245 = vunpack.c.h.b16 %v53
  %v246 = vunpack.c.l.b16 %v54
  %v247 = vunpack.c.h.b16 %v54
  %v248 = vunpack.c.l.b16 %v55
  %v249 = vunpack.c.h.b16 %v55
  %v250 = vpack.c.b16 %v170, %v166
  %v251 = vpack.c.b16 %v171, %v167
  %v252 = vpack.c.b16 %v172, %v168
  %v253 = vpack.c.b16 %v173, %v169
  %v254 = vpack.c.b16 %v178, %v174
  %v255 = vpack.c.b16 %v179, %v175
  %v256 = vpack.c.b16 %v180, %v176
  %v257 = vpack.c.b16 %v181, %v177
  %v258 = vpack.c.b16 %v186, %v182
  %v259 = vpack.c.b16 %v187, %v183
  %v260 = vpack.c.b16 %v188, %v184
  %v261 = vpack.c.b16 %v189, %v185
  %v262 = vpack.c.b16 %v194, %v190
  %v263 = vpack.c.b16 %v195, %v191
  %v264 = vpack.c.b16 %v196, %v192
  %v265 = vpack.c.b16 %v197, %v193
  %v266 = vpack.c.b16 %v202, %v198
  %v267 = vpack.c.b16 %v203, %v199
  %v268 = vpack.c.b16 %v204, %v200
  %v269 = vpack.c.b16 %v205, %v201
  %v270 = vpack.c.b16 %v210, %v206
  %v271 = vpack.c.b16 %v211, %v207
  %v272 = vpack.c.b16 %v212, %v208
  %v273 = vpack.c.b16 %v213, %v209
  %v274 = vpack.c.b16 %v218, %v214
  %v275 = vpack.c.b16 %v219, %v215
  %v276 = vpack.c.b16 %v220, %v216
  %v277 = vpack.c.b16 %v221, %v217
  %v278 = vpack.c.b16 %v226, %v222
  %v279 = vpack.c.b16 %v227, %v223
  %v280 = vpack.c.b16 %v228, %v224
  %v281 = vpack.c.b16 %v229, %v225
  %v282 = vpack.c.b16 %v234, %v230
  %v283 = vpack.c.b16 %v235, %v231
  %v284 = vpack.c.b16 %v236, %v232
  %v285 = vpack.c.b16 %v237, %v233
  %v286 = vpack.c.b16 %v242, %v238
  %v287 = vpack.c.b16 %v243, %v239
  %v288 = vpack.c.b16 %v244, %v240
  %v289 = vpack.c.b16 %v245, %v241
  %v290 = vpack.c.b16 %v246, %v246
  %v291 = vpack.c.b16 %v247, %v247
  %v292 = vpack.c.b16 %v248, %v248
  %v293 = vpack.c.b16 %v249, %v249
  %v402 = vunpack.c.l.b16 %v56
  %v403 = vunpack.c.l.b16 %v57
  %v404 = vunpack.c.l.b16 %v58
  %v405 = vunpack.c.l.b16 %v59
  %v406 = vunpack.c.l.b16 %v60
  %v407 = vunpack.c.l.b16 %v61
  %v408 = vunpack.c.l.b16 %v62
  %v409 = vunpack.c.l.b16 %v63
  %v410 = vunpack.c.l.b16 %v64
  %v411 = vunpack.c.l.b16 %v65
  %v412 = vunpack.c.l.b16 %v66
  %v413 = vunpack.c.l.b16 %v67
  %v414 = vunpack.c.l.b16 %v68
  %v415 = vunpack.c.l.b16 %v69
  %v416 = vunpack.c.l.b16 %v70
  %v417 = vunpack.c.l.b16 %v71
  %v418 = vunpack.c.l.b16 %v72
  %v419 = vunpack.c.l.b16 %v73
  %v420 = vunpack.c.l.b16 %v74
  %v421 = vunpack.c.l.b16 %v75
  %v422 = vunpack.c.l.b16 %v76
  %v423 = vunpack.c.l.b16 %v77
  %v424 = vunpack.c.l.b16 %v78
  %v425 = vunpack.c.l.b16 %v79
  %v426 = vunpack.c.l.b16 %v80
  %v427 = vunpack.c.l.b16 %v81
  %v428 = vunpack.c.l.b16 %v82
  %v429 = vunpack.c.l.b16 %v83
  %v430 = vunpack.c.l.b16 %v84
  %v431 = vunpack.c.l.b16 %v85
  %v432 = vunpack.c.l.b16 %v86
  %v433 = vunpack.c.l.b16 %v87
  %v434 = vunpack.c.l.b16 %v88
  %v435 = vunpack.c.l.b16 %v89
  %v436 = vunpack.c.l.b16 %v90
  %v437 = vunpack.c.l.b16 %v91
  %v438 = vunpack.c.l.b16 %v92
  %v439 = vunpack.c.l.b16 %v93
  %v440 = vunpack.c.l.b16 %v94
  %v441 = vunpack.c.l.b16 %v95
  %v442 = vunpack.c.l.b16 %v96
  %v443 = vunpack.c.l.b16 %v97
  %v444 = vunpack.c.l.b16 %v98
  %v445 = vunpack.c.l.b16 %v99
  %v446 = vunpack.c.l.b16 %v100
  %v447 = vunpack.c.l.b16 %v101
  %v448 = vunpack.c.l.b16 %v102
  %v449 = vunpack.c.l.b16 %v103
  %v450 = vunpack.c.l.b16 %v104
  %v451 = vunpack.c.l.b16 %v105
  %v452 = vunpack.c.l.b16 %v106
  %v453 = vunpack.c.l.b16 %v107
  %v454 = vunpack.c.l.b16 %v108
  %v455 = vunpack.c.l.b16 %v109
  %v456 = vunpack.c.l.b16 %v110
  %v457 = vunpack.c.l.b16 %v111
  %v458 = vunpack.c.l.b16 %v112
  %v459 = vunpack.c.l.b16 %v113
  %v460 = vunpack.c.l.b16 %v114
  %v461 = vunpack.c.l.b16 %v115
  %v462 = vunpack.c.l.b16 %v116
  %v463 = vunpack.c.l.b16 %v117
  %v464 = vunpack.c.l.b16 %v118
  %v465 = vunpack.c.l.b16 %v119
  %v466 = vpack.c.b16 %v403, %v402
  %v467 = vpack.c.b16 %v405, %v404
  %v468 = vpack.c.b16 %v407, %v406
  %v469 = vpack.c.b16 %v409, %v408
  %v470 = vpack.c.b16 %v411, %v410
  %v471 = vpack.c.b16 %v413, %v412
  %v472 = vpack.c.b16 %v415, %v414
  %v473 = vpack.c.b16 %v417, %v416
  %v474 = vpack.c.b16 %v419, %v418
  %v475 = vpack.c.b16 %v421, %v420
  %v476 = vpack.c.b16 %v423, %v422
  %v477 = vpack.c.b16 %v425, %v424
  %v478 = vpack.c.b16 %v427, %v426
  %v479 = vpack.c.b16 %v429, %v428
  %v480 = vpack.c.b16 %v431, %v430
  %v481 = vpack.c.b16 %v433, %v432
  %v482 = vpack.c.b16 %v435, %v434
  %v483 = vpack.c.b16 %v437, %v436
  %v484 = vpack.c.b16 %v439, %v438
  %v485 = vpack.c.b16 %v441, %v440
  %v486 = vpack.c.b16 %v443, %v442
  %v487 = vpack.c.b16 %v445, %v444
  %v488 = vpack.c.b16 %v447, %v446
  %v489 = vpack.c.b16 %v449, %v448
  %v490 = vpack.c.b16 %v451, %v450
  %v491 = vpack.c.b16 %v453, %v452
  %v492 = vpack.c.b16 %v455, %v454
  %v493 = vpack.c.b16 %v457, %v456
  %v494 = vpack.c.b16 %v459, %v458
  %v495 = vpack.c.b16 %v461, %v460
  %v496 = vpack.c.b16 %v463, %v462
  %v497 = vpack.c.b16 %v465, %v464
  %530 = vmatpush.bf16.msra.mxu0 %v473
  %531 = vmatpush.bf16.msra.mxu0 %v472
  %532 = vmatpush.bf16.msra.mxu0 %v471
  %533 = vmatpush.bf16.msra.mxu0 %v470
  %534 = vmatpush.bf16.msra.mxu0 %v469
  %535 = vmatpush.bf16.msra.mxu0 %v468
  %536 = vmatpush.bf16.msra.mxu0 %v467
  %537 = vmatpush.bf16.msra.mxu0 %v466
  %538 = vmatmul.bf16.gmra.mxu0 %v250
  %v539 = vpop.f32.mrf.mxu0
  %v540 = vadd.f32 %v122, %v539
  %v541 = vpop.f32.mrf.mxu0
  %v542 = vadd.f32 %v122, %v541
  %543 = vmatmul.bf16.gmra.mxu0 %v254
  %v544 = vpop.f32.mrf.mxu0
  %v545 = vadd.f32 %v122, %v544
  %v546 = vpop.f32.mrf.mxu0
  %v547 = vadd.f32 %v122, %v546
  %548 = vmatmul.bf16.gmra.mxu0 %v258
  %v549 = vpop.f32.mrf.mxu0
  %v550 = vadd.f32 %v122, %v549
  %v551 = vpop.f32.mrf.mxu0
  %v552 = vadd.f32 %v122, %v551
  %553 = vmatmul.bf16.gmra.mxu0 %v262
  %v554 = vpop.f32.mrf.mxu0
  %v555 = vadd.f32 %v122, %v554
  %v556 = vpop.f32.mrf.mxu0
  %v557 = vadd.f32 %v122, %v556
  %558 = vmatmul.bf16.gmra.mxu0 %v266
  %v559 = vpop.f32.mrf.mxu0
  %v560 = vadd.f32 %v122, %v559
  %v561 = vpop.f32.mrf.mxu0
  %v562 = vadd.f32 %v122, %v561
  %563 = vmatmul.bf16.gmra.mxu0 %v270
  %v564 = vpop.f32.mrf.mxu0
  %v565 = vadd.f32 %v122, %v564
  %v566 = vpop.f32.mrf.mxu0
  %v567 = vadd.f32 %v122, %v566
  %568 = vmatmul.bf16.gmra.mxu0 %v274
  %v569 = vpop.f32.mrf.mxu0
  %v570 = vadd.f32 %v122, %v569
  %v571 = vpop.f32.mrf.mxu0
  %v572 = vadd.f32 %v122, %v571
  %573 = vmatmul.bf16.gmra.mxu0 %v278
  %v574 = vpop.f32.mrf.mxu0
  %v575 = vadd.f32 %v122, %v574
  %v576 = vpop.f32.mrf.mxu0
  %v577 = vadd.f32 %v122, %v576
  %578 = vmatmul.bf16.gmra.mxu0 %v282
  %v579 = vpop.f32.mrf.mxu0
  %v580 = vadd.f32 %v122, %v579
  %v581 = vpop.f32.mrf.mxu0
  %v582 = vadd.f32 %v122, %v581
  %583 = vmatmul.bf16.gmra.mxu0 %v286
  %v584 = vpop.f32.mrf.mxu0
  %v585 = vadd.f32 %v122, %v584
  %v586 = vpop.f32.mrf.mxu0
  %v587 = vadd.f32 %v122, %v586
  %588 = vmatmul.bf16.gmra.mxu0 %v290
  %v589 = vpop.f32.mrf.mxu0
  %v590 = vadd.f32 %v122, %v589
  %v591 = vpop.f32.mrf.mxu0
  %592 = vdwg.mxu0
  %593 = vmatpush.bf16.msra.mxu0 %v481
  %594 = vmatpush.bf16.msra.mxu0 %v480
  %595 = vmatpush.bf16.msra.mxu0 %v479
  %596 = vmatpush.bf16.msra.mxu0 %v478
  %597 = vmatpush.bf16.msra.mxu0 %v477
  %598 = vmatpush.bf16.msra.mxu0 %v476
  %599 = vmatpush.bf16.msra.mxu0 %v475
  %600 = vmatpush.bf16.msra.mxu0 %v474
  %601 = vmatmul.bf16.gmra.mxu0 %v251
  %v602 = vpop.f32.mrf.mxu0
  %v603 = vadd.f32 %v540, %v602
  %v604 = vpop.f32.mrf.mxu0
  %v605 = vadd.f32 %v542, %v604
  %606 = vmatmul.bf16.gmra.mxu0 %v255
  %v607 = vpop.f32.mrf.mxu0
  %v608 = vadd.f32 %v545, %v607
  %v609 = vpop.f32.mrf.mxu0
  %v610 = vadd.f32 %v547, %v609
  %611 = vmatmul.bf16.gmra.mxu0 %v259
  %v612 = vpop.f32.mrf.mxu0
  %v613 = vadd.f32 %v550, %v612
  %v614 = vpop.f32.mrf.mxu0
  %v615 = vadd.f32 %v552, %v614
  %616 = vmatmul.bf16.gmra.mxu0 %v263
  %v617 = vpop.f32.mrf.mxu0
  %v618 = vadd.f32 %v555, %v617
  %v619 = vpop.f32.mrf.mxu0
  %v620 = vadd.f32 %v557, %v619
  %621 = vmatmul.bf16.gmra.mxu0 %v267
  %v622 = vpop.f32.mrf.mxu0
  %v623 = vadd.f32 %v560, %v622
  %v624 = vpop.f32.mrf.mxu0
  %v625 = vadd.f32 %v562, %v624
  %626 = vmatmul.bf16.gmra.mxu0 %v271
  %v627 = vpop.f32.mrf.mxu0
  %v628 = vadd.f32 %v565, %v627
  %v629 = vpop.f32.mrf.mxu0
  %v630 = vadd.f32 %v567, %v629
  %631 = vmatmul.bf16.gmra.mxu0 %v275
  %v632 = vpop.f32.mrf.mxu0
  %v633 = vadd.f32 %v570, %v632
  %v634 = vpop.f32.mrf.mxu0
  %v635 = vadd.f32 %v572, %v634
  %636 = vmatmul.bf16.gmra.mxu0 %v279
  %v637 = vpop.f32.mrf.mxu0
  %v638 = vadd.f32 %v575, %v637
  %v639 = vpop.f32.mrf.mxu0
  %v640 = vadd.f32 %v577, %v639
  %641 = vmatmul.bf16.gmra.mxu0 %v283
  %v642 = vpop.f32.mrf.mxu0
  %v643 = vadd.f32 %v580, %v642
  %v644 = vpop.f32.mrf.mxu0
  %v645 = vadd.f32 %v582, %v644
  %646 = vmatmul.bf16.gmra.mxu0 %v287
  %v647 = vpop.f32.mrf.mxu0
  %v648 = vadd.f32 %v585, %v647
  %v649 = vpop.f32.mrf.mxu0
  %v650 = vadd.f32 %v587, %v649
  %651 = vmatmul.bf16.gmra.mxu0 %v291
  %v652 = vpop.f32.mrf.mxu0
  %v653 = vadd.f32 %v590, %v652
  %v654 = vpop.f32.mrf.mxu0
  %655 = vdwg.mxu0
  %656 = vmatpush.bf16.msra.mxu0 %v489
  %657 = vmatpush.bf16.msra.mxu0 %v488
  %658 = vmatpush.bf16.msra.mxu0 %v487
  %659 = vmatpush.bf16.msra.mxu0 %v486
  %660 = vmatpush.bf16.msra.mxu0 %v485
  %661 = vmatpush.bf16.msra.mxu0 %v484
  %662 = vmatpush.bf16.msra.mxu0 %v483
  %663 = vmatpush.bf16.msra.mxu0 %v482
  %664 = vmatmul.bf16.gmra.mxu0 %v252
  %v665 = vpop.f32.mrf.mxu0
  %v666 = vadd.f32 %v603, %v665
  %v667 = vpop.f32.mrf.mxu0
  %v668 = vadd.f32 %v605, %v667
  %669 = vmatmul.bf16.gmra.mxu0 %v256
  %v670 = vpop.f32.mrf.mxu0
  %v671 = vadd.f32 %v608, %v670
  %v672 = vpop.f32.mrf.mxu0
  %v673 = vadd.f32 %v610, %v672
  %674 = vmatmul.bf16.gmra.mxu0 %v260
  %v675 = vpop.f32.mrf.mxu0
  %v676 = vadd.f32 %v613, %v675
  %v677 = vpop.f32.mrf.mxu0
  %v678 = vadd.f32 %v615, %v677
  %679 = vmatmul.bf16.gmra.mxu0 %v264
  %v680 = vpop.f32.mrf.mxu0
  %v681 = vadd.f32 %v618, %v680
  %v682 = vpop.f32.mrf.mxu0
  %v683 = vadd.f32 %v620, %v682
  %684 = vmatmul.bf16.gmra.mxu0 %v268
  %v685 = vpop.f32.mrf.mxu0
  %v686 = vadd.f32 %v623, %v685
  %v687 = vpop.f32.mrf.mxu0
  %v688 = vadd.f32 %v625, %v687
  %689 = vmatmul.bf16.gmra.mxu0 %v272
  %v690 = vpop.f32.mrf.mxu0
  %v691 = vadd.f32 %v628, %v690
  %v692 = vpop.f32.mrf.mxu0
  %v693 = vadd.f32 %v630, %v692
  %694 = vmatmul.bf16.gmra.mxu0 %v276
  %v695 = vpop.f32.mrf.mxu0
  %v696 = vadd.f32 %v633, %v695
  %v697 = vpop.f32.mrf.mxu0
  %v698 = vadd.f32 %v635, %v697
  %699 = vmatmul.bf16.gmra.mxu0 %v280
  %v700 = vpop.f32.mrf.mxu0
  %v701 = vadd.f32 %v638, %v700
  %v702 = vpop.f32.mrf.mxu0
  %v703 = vadd.f32 %v640, %v702
  %704 = vmatmul.bf16.gmra.mxu0 %v284
  %v705 = vpop.f32.mrf.mxu0
  %v706 = vadd.f32 %v643, %v705
  %v707 = vpop.f32.mrf.mxu0
  %v708 = vadd.f32 %v645, %v707
  %709 = vmatmul.bf16.gmra.mxu0 %v288
  %v710 = vpop.f32.mrf.mxu0
  %v711 = vadd.f32 %v648, %v710
  %v712 = vpop.f32.mrf.mxu0
  %v713 = vadd.f32 %v650, %v712
  %714 = vmatmul.bf16.gmra.mxu0 %v292
  %v715 = vpop.f32.mrf.mxu0
  %v716 = vadd.f32 %v653, %v715
  %v717 = vpop.f32.mrf.mxu0
  %718 = vdwg.mxu0
  %719 = vmatpush.bf16.msra.mxu0 %v497
  %720 = vmatpush.bf16.msra.mxu0 %v496
  %721 = vmatpush.bf16.msra.mxu0 %v495
  %722 = vmatpush.bf16.msra.mxu0 %v494
  %723 = vmatpush.bf16.msra.mxu0 %v493
  %724 = vmatpush.bf16.msra.mxu0 %v492
  %725 = vmatpush.bf16.msra.mxu0 %v491
  %726 = vmatpush.bf16.msra.mxu0 %v490
  %727 = vmatmul.bf16.gmra.mxu0 %v253
  %v728 = vpop.f32.mrf.mxu0
  %v729 = vadd.f32 %v666, %v728
  %v730 = vpop.f32.mrf.mxu0
  %v731 = vadd.f32 %v668, %v730
  %732 = vmatmul.bf16.gmra.mxu0 %v257
  %v733 = vpop.f32.mrf.mxu0
  %v734 = vadd.f32 %v671, %v733
  %v735 = vpop.f32.mrf.mxu0
  %v736 = vadd.f32 %v673, %v735
  %737 = vmatmul.bf16.gmra.mxu0 %v261
  %v738 = vpop.f32.mrf.mxu0
  %v739 = vadd.f32 %v676, %v738
  %v740 = vpop.f32.mrf.mxu0
  %v741 = vadd.f32 %v678, %v740
  %742 = vmatmul.bf16.gmra.mxu0 %v265
  %v743 = vpop.f32.mrf.mxu0
  %v744 = vadd.f32 %v681, %v743
  %v745 = vpop.f32.mrf.mxu0
  %v746 = vadd.f32 %v683, %v745
  %747 = vmatmul.bf16.gmra.mxu0 %v269
  %v748 = vpop.f32.mrf.mxu0
  %v749 = vadd.f32 %v686, %v748
  %v750 = vpop.f32.mrf.mxu0
  %v751 = vadd.f32 %v688, %v750
  %752 = vmatmul.bf16.gmra.mxu0 %v273
  %v753 = vpop.f32.mrf.mxu0
  %v754 = vadd.f32 %v691, %v753
  %v755 = vpop.f32.mrf.mxu0
  %v756 = vadd.f32 %v693, %v755
  %757 = vmatmul.bf16.gmra.mxu0 %v277
  %v758 = vpop.f32.mrf.mxu0
  %v759 = vadd.f32 %v696, %v758
  %v760 = vpop.f32.mrf.mxu0
  %v761 = vadd.f32 %v698, %v760
  %762 = vmatmul.bf16.gmra.mxu0 %v281
  %v763 = vpop.f32.mrf.mxu0
  %v764 = vadd.f32 %v701, %v763
  %v765 = vpop.f32.mrf.mxu0
  %v766 = vadd.f32 %v703, %v765
  %767 = vmatmul.bf16.gmra.mxu0 %v285
  %v768 = vpop.f32.mrf.mxu0
  %v769 = vadd.f32 %v706, %v768
  %v770 = vpop.f32.mrf.mxu0
  %v771 = vadd.f32 %v708, %v770
  %772 = vmatmul.bf16.gmra.mxu0 %v289
  %v773 = vpop.f32.mrf.mxu0
  %v774 = vadd.f32 %v711, %v773
  %v775 = vpop.f32.mrf.mxu0
  %v776 = vadd.f32 %v713, %v775
  %777 = vmatmul.bf16.gmra.mxu0 %v293
  %v778 = vpop.f32.mrf.mxu0
  %v779 = vadd.f32 %v716, %v778
  %v780 = vpop.f32.mrf.mxu0
  %781 = vdwg.mxu0
  %v782 = vmax.f32 %v729, 0.0
  %v783 = vmax.f32 %v731, 0.0
  %v784 = vmax.f32 %v734, 0.0
  %v785 = vmax.f32 %v736, 0.0
  %v786 = vmax.f32 %v739, 0.0
  %v787 = vmax.f32 %v741, 0.0
  %v788 = vmax.f32 %v744, 0.0
  %v789 = vmax.f32 %v746, 0.0
  %v790 = vmax.f32 %v749, 0.0
  %v791 = vmax.f32 %v751, 0.0
  %v792 = vmax.f32 %v754, 0.0
  %v793 = vmax.f32 %v756, 0.0
  %v794 = vmax.f32 %v759, 0.0
  %v795 = vmax.f32 %v761, 0.0
  %v796 = vmax.f32 %v764, 0.0
  %v797 = vmax.f32 %v766, 0.0
  %v798 = vmax.f32 %v769, 0.0
  %v799 = vmax.f32 %v771, 0.0
  %v800 = vmax.f32 %v774, 0.0
  %v801 = vmax.f32 %v776, 0.0
  %v802 = vmax.f32 %v779, 0.0
  %v803 = vpack.c.bf16 %v782, %v782
  %v804 = vpack.c.bf16 %v783, %v783
  %v805 = vpack.c.bf16 %v784, %v784
  %v806 = vpack.c.bf16 %v785, %v785
  %v807 = vpack.c.bf16 %v786, %v786
  %v808 = vpack.c.bf16 %v787, %v787
  %v809 = vpack.c.bf16 %v788, %v788
  %v810 = vpack.c.bf16 %v789, %v789
  %v811 = vpack.c.bf16 %v790, %v790
  %v812 = vpack.c.bf16 %v791, %v791
  %v813 = vpack.c.bf16 %v792, %v792
  %v814 = vpack.c.bf16 %v793, %v793
  %v815 = vpack.c.bf16 %v794, %v794
  %v816 = vpack.c.bf16 %v795, %v795
  %v817 = vpack.c.bf16 %v796, %v796
  %v818 = vpack.c.bf16 %v797, %v797
  %v819 = vpack.c.bf16 %v798, %v798
  %v820 = vpack.c.bf16 %v799, %v799
  %v821 = vpack.c.bf16 %v800, %v800
  %v822 = vpack.c.bf16 %v801, %v801
  %v823 = vpack.c.bf16 %v802, %v802
  %vm824 = vcmask 519168
  %825 = vst.msk [vmem:[%s3] sm:$0xf] %vm824, %v803
  %826 = vst.msk [vmem:[%s3 + $0x4] sm:$0xf] %vm824, %v804
  %827 = vst.msk [vmem:[%s3 + $0x8] sm:$0xf] %vm824, %v805
  %828 = vst.msk [vmem:[%s3 + $0xc] sm:$0xf] %vm824, %v806
  %829 = vst.msk [vmem:[%s3 + $0x10] sm:$0xf] %vm824, %v807
  %830 = vst.msk [vmem:[%s3 + $0x14] sm:$0xf] %vm824, %v808
  %831 = vst.msk [vmem:[%s3 + $0x18] sm:$0xf] %vm824, %v809
  %832 = vst.msk [vmem:[%s3 + $0x1c] sm:$0xf] %vm824, %v810
  %833 = vst.msk [vmem:[%s3 + $0x20] sm:$0xf] %vm824, %v811
  %834 = vst.msk [vmem:[%s3 + $0x24] sm:$0xf] %vm824, %v812
  %835 = vst.msk [vmem:[%s3 + $0x28] sm:$0xf] %vm824, %v813
  %836 = vst.msk [vmem:[%s3 + $0x2c] sm:$0xf] %vm824, %v814
  %837 = vst.msk [vmem:[%s3 + $0x30] sm:$0xf] %vm824, %v815
  %838 = vst.msk [vmem:[%s3 + $0x34] sm:$0xf] %vm824, %v816
  %839 = vst.msk [vmem:[%s3 + $0x38] sm:$0xf] %vm824, %v817
  %840 = vst.msk [vmem:[%s3 + $0x3c] sm:$0xf] %vm824, %v818
  %841 = vst.msk [vmem:[%s3 + $0x40] sm:$0xf] %vm824, %v819
  %842 = vst.msk [vmem:[%s3 + $0x44] sm:$0xf] %vm824, %v820
  %843 = vst.msk [vmem:[%s3 + $0x48] sm:$0xf] %vm824, %v821
  %844 = vst.msk [vmem:[%s3 + $0x4c] sm:$0xf] %vm824, %v822
  %845 = vst.msk [vmem:[%s3 + $0x50] sm:$0xf] %vm824, %v823
  // Predicated region
  $region14: #{qnet_forward.5} parent=0 // pred_check
    _
  $region15: #{qnet_forward.5} parent=0 // pred_check_branch
    %847 = sbr.rel (0) target = $region17
  $region16: #{qnet_forward.5} parent=0 // pred_region
    _
  $region17: #{qnet_forward.5} parent=0 // pred_fallthru
    _
  // Predicated region
  $region18: #{qnet_forward.5} parent=0 // pred_check
    _
  $region19: #{qnet_forward.5} parent=0 // pred_check_branch
    %849 = sbr.rel (0) target = $region21
  $region20: #{qnet_forward.5} parent=0 // pred_region
    _
  $region21: #{qnet_forward.5} parent=0 // pred_fallthru
    _

// kernel: qnet_forward.6
$region0: #{qnet_forward.6}
  #allocation0 [shape = 'u32[]', space=smem, size = 0x4, offset = 0x4, fixed_abs, tag = 'smem constant byte address 0x4 - core index']
  #allocation1 [shape = 'u32[72,128]{1,0:T(1,128)}', space=vmem, size = 0x9000, scoped, tag = 'internal scratch']
  %s0 = inlined_call_operand.vmem [shape: bf16[104,640], index: 0, kind: input, shape index: {}]
  %s1 = inlined_call_operand.vmem [shape: bf16[640,64], index: 1, kind: input, shape index: {}]
  %s2 = inlined_call_operand.vmem [shape: f32[1,64], index: 2, kind: input, shape index: {}]
  %s3 = inlined_call_operand.vmem [shape: bf16[104,64], index: 3, kind: output, shape index: {}]
  %s4 = sld [smem:[#allocation0]]
  $region22: #{qnet_forward.6} parent=0
    _
  %s6 = ssub.s32 1, %s4
  %s7 = scalar_select 0, %s6, %s4
  // Predicated region
  $region2: #{qnet_forward.6} parent=0 // pred_check
    _
  $region3: #{qnet_forward.6} parent=0 // pred_check_branch
    %9 = sbr.rel (0) target = $region5
  $region4: #{qnet_forward.6} parent=0 // pred_region
    _
  $region5: #{qnet_forward.6} parent=0 // pred_fallthru
    _
  // Predicated region
  $region6: #{qnet_forward.6} parent=0 // pred_check
    _
  $region7: #{qnet_forward.6} parent=0 // pred_check_branch
    %11 = sbr.rel (0) target = $region9
  $region8: #{qnet_forward.6} parent=0 // pred_region
    _
  $region9: #{qnet_forward.6} parent=0 // pred_fallthru
    _
  // Predicated region
  $region10: #{qnet_forward.6} parent=0 // pred_check
    _
  $region11: #{qnet_forward.6} parent=0 // pred_check_branch
    %13 = sbr.rel (0) target = $region13
  $region12: #{qnet_forward.6} parent=0 // pred_region
    _
  $region13: #{qnet_forward.6} parent=0 // pred_fallthru
    _
  %v14 = vld [vmem:[%s0] sm:$0xff]
  %v15 = vld [vmem:[%s0 + $0x8] sm:$0xff]
  %v16 = vld [vmem:[%s0 + $0x10] sm:$0xf]
  %v17 = vld [vmem:[%s0 + $0x14] sm:$0xff]
  %v18 = vld [vmem:[%s0 + $0x1c] sm:$0xff]
  %v19 = vld [vmem:[%s0 + $0x24] sm:$0xf]
  %v20 = vld [vmem:[%s0 + $0x28] sm:$0xff]
  %v21 = vld [vmem:[%s0 + $0x30] sm:$0xff]
  %v22 = vld [vmem:[%s0 + $0x38] sm:$0xf]
  %v23 = vld [vmem:[%s0 + $0x3c] sm:$0xff]
  %v24 = vld [vmem:[%s0 + $0x44] sm:$0xff]
  %v25 = vld [vmem:[%s0 + $0x4c] sm:$0xf]
  %v26 = vld [vmem:[%s0 + $0x50] sm:$0xff]
  %v27 = vld [vmem:[%s0 + $0x58] sm:$0xff]
  %v28 = vld [vmem:[%s0 + $0x60] sm:$0xf]
  %v29 = vld [vmem:[%s0 + $0x64] sm:$0xff]
  %v30 = vld [vmem:[%s0 + $0x6c] sm:$0xff]
  %v31 = vld [vmem:[%s0 + $0x74] sm:$0xf]
  %v32 = vld [vmem:[%s0 + $0x78] sm:$0xff]
  %v33 = vld [vmem:[%s0 + $0x80] sm:$0xff]
  %v34 = vld [vmem:[%s0 + $0x88] sm:$0xf]
  %v35 = vld [vmem:[%s0 + $0x8c] sm:$0xff]
  %v36 = vld [vmem:[%s0 + $0x94] sm:$0xff]
  %v37 = vld [vmem:[%s0 + $0x9c] sm:$0xf]
  %v38 = vld [vmem:[%s0 + $0xa0] sm:$0xff]
  %v39 = vld [vmem:[%s0 + $0xa8] sm:$0xff]
  %v40 = vld [vmem:[%s0 + $0xb0] sm:$0xf]
  %v41 = vld [vmem:[%s0 + $0xb4] sm:$0xff]
  %v42 = vld [vmem:[%s0 + $0xbc] sm:$0xff]
  %v43 = vld [vmem:[%s0 + $0xc4] sm:$0xf]
  %v44 = vld [vmem:[%s0 + $0xc8] sm:$0xff]
  %v45 = vld [vmem:[%s0 + $0xd0] sm:$0xff]
  %v46 = vld [vmem:[%s0 + $0xd8] sm:$0xf]
  %v47 = vld [vmem:[%s0 + $0xdc] sm:$0xff]
  %v48 = vld [vmem:[%s0 + $0xe4] sm:$0xff]
  %v49 = vld [vmem:[%s0 + $0xec] sm:$0xf]
  %v50 = vld [vmem:[%s0 + $0xf0] sm:$0xff]
  %v51 = vld [vmem:[%s0 + $0xf8] sm:$0xff]
  %v52 = vld [vmem:[%s0 + $0x100] sm:$0xf]
  %v53 = vld [vmem:[%s1] sm:$0xf]
  %v54 = vld [vmem:[%s1 + $0x4] sm:$0xf]
  %v55 = vld [vmem:[%s1 + $0x8] sm:$0xf]
  %v56 = vld [vmem:[%s1 + $0xc] sm:$0xf]
  %v57 = vld [vmem:[%s1 + $0x10] sm:$0xf]
  %v58 = vld [vmem:[%s1 + $0x14] sm:$0xf]
  %v59 = vld [vmem:[%s1 + $0x18] sm:$0xf]
  %v60 = vld [vmem:[%s1 + $0x1c] sm:$0xf]
  %v61 = vld [vmem:[%s1 + $0x20] sm:$0xf]
  %v62 = vld [vmem:[%s1 + $0x24] sm:$0xf]
  %v63 = vld [vmem:[%s1 + $0x28] sm:$0xf]
  %v64 = vld [vmem:[%s1 + $0x2c] sm:$0xf]
  %v65 = vld [vmem:[%s1 + $0x30] sm:$0xf]
  %v66 = vld [vmem:[%s1 + $0x34] sm:$0xf]
  %v67 = vld [vmem:[%s1 + $0x38] sm:$0xf]
  %v68 = vld [vmem:[%s1 + $0x3c] sm:$0xf]
  %v69 = vld [vmem:[%s1 + $0x40] sm:$0xf]
  %v70 = vld [vmem:[%s1 + $0x44] sm:$0xf]
  %v71 = vld [vmem:[%s1 + $0x48] sm:$0xf]
  %v72 = vld [vmem:[%s1 + $0x4c] sm:$0xf]
  %v73 = vld [vmem:[%s1 + $0x50] sm:$0xf]
  %v74 = vld [vmem:[%s1 + $0x54] sm:$0xf]
  %v75 = vld [vmem:[%s1 + $0x58] sm:$0xf]
  %v76 = vld [vmem:[%s1 + $0x5c] sm:$0xf]
  %v77 = vld [vmem:[%s1 + $0x60] sm:$0xf]
  %v78 = vld [vmem:[%s1 + $0x64] sm:$0xf]
  %v79 = vld [vmem:[%s1 + $0x68] sm:$0xf]
  %v80 = vld [vmem:[%s1 + $0x6c] sm:$0xf]
  %v81 = vld [vmem:[%s1 + $0x70] sm:$0xf]
  %v82 = vld [vmem:[%s1 + $0x74] sm:$0xf]
  %v83 = vld [vmem:[%s1 + $0x78] sm:$0xf]
  %v84 = vld [vmem:[%s1 + $0x7c] sm:$0xf]
  %v85 = vld [vmem:[%s1 + $0x80] sm:$0xf]
  %v86 = vld [vmem:[%s1 + $0x84] sm:$0xf]
  %v87 = vld [vmem:[%s1 + $0x88] sm:$0xf]
  %v88 = vld [vmem:[%s1 + $0x8c] sm:$0xf]
  %v89 = vld [vmem:[%s1 + $0x90] sm:$0xf]
  %v90 = vld [vmem:[%s1 + $0x94] sm:$0xf]
  %v91 = vld [vmem:[%s1 + $0x98] sm:$0xf]
  %v92 = vld [vmem:[%s1 + $0x9c] sm:$0xf]
  %v93 = vld [vmem:[%s1 + $0xa0] sm:$0xf]
  %v94 = vld [vmem:[%s1 + $0xa4] sm:$0xf]
  %v95 = vld [vmem:[%s1 + $0xa8] sm:$0xf]
  %v96 = vld [vmem:[%s1 + $0xac] sm:$0xf]
  %v97 = vld [vmem:[%s1 + $0xb0] sm:$0xf]
  %v98 = vld [vmem:[%s1 + $0xb4] sm:$0xf]
  %v99 = vld [vmem:[%s1 + $0xb8] sm:$0xf]
  %v100 = vld [vmem:[%s1 + $0xbc] sm:$0xf]
  %v101 = vld [vmem:[%s1 + $0xc0] sm:$0xf]
  %v102 = vld [vmem:[%s1 + $0xc4] sm:$0xf]
  %v103 = vld [vmem:[%s1 + $0xc8] sm:$0xf]
  %v104 = vld [vmem:[%s1 + $0xcc] sm:$0xf]
  %v105 = vld [vmem:[%s1 + $0xd0] sm:$0xf]
  %v106 = vld [vmem:[%s1 + $0xd4] sm:$0xf]
  %v107 = vld [vmem:[%s1 + $0xd8] sm:$0xf]
  %v108 = vld [vmem:[%s1 + $0xdc] sm:$0xf]
  %v109 = vld [vmem:[%s1 + $0xe0] sm:$0xf]
  %v110 = vld [vmem:[%s1 + $0xe4] sm:$0xf]
  %v111 = vld [vmem:[%s1 + $0xe8] sm:$0xf]
  %v112 = vld [vmem:[%s1 + $0xec] sm:$0xf]
  %v113 = vld [vmem:[%s1 + $0xf0] sm:$0xf]
  %v114 = vld [vmem:[%s1 + $0xf4] sm:$0xf]
  %v115 = vld [vmem:[%s1 + $0xf8] sm:$0xf]
  %v116 = vld [vmem:[%s1 + $0xfc] sm:$0xf]
  %v117 = vld [vmem:[%s1 + $0x100] sm:$0xf]
  %v118 = vld [vmem:[%s1 + $0x104] sm:$0xf]
  %v119 = vld [vmem:[%s1 + $0x108] sm:$0xf]
  %v120 = vld [vmem:[%s1 + $0x10c] sm:$0xf]
  %v121 = vld [vmem:[%s1 + $0x110] sm:$0xf]
  %v122 = vld [vmem:[%s1 + $0x114] sm:$0xf]
  %v123 = vld [vmem:[%s1 + $0x118] sm:$0xf]
  %v124 = vld [vmem:[%s1 + $0x11c] sm:$0xf]
  %v125 = vld [vmem:[%s1 + $0x120] sm:$0xf]
  %v126 = vld [vmem:[%s1 + $0x124] sm:$0xf]
  %v127 = vld [vmem:[%s1 + $0x128] sm:$0xf]
  %v128 = vld [vmem:[%s1 + $0x12c] sm:$0xf]
  %v129 = vld [vmem:[%s1 + $0x130] sm:$0xf]
  %v130 = vld [vmem:[%s1 + $0x134] sm:$0xf]
  %v131 = vld [vmem:[%s1 + $0x138] sm:$0xf]
  %v132 = vld [vmem:[%s1 + $0x13c] sm:$0xf]
  %v133 = vld [vmem:[%s2] sm:$0x1]
  %v135 = vperm.slane %v133, 0
  %v176 = vunpack.c.l.b16 %v14
  %v177 = vunpack.c.h.b16 %v14
  %v178 = vunpack.c.l.b16 %v15
  %v179 = vunpack.c.h.b16 %v15
  %v180 = vunpack.c.l.b16 %v16
  %v181 = vunpack.c.l.b16 %v17
  %v182 = vunpack.c.h.b16 %v17
  %v183 = vunpack.c.l.b16 %v18
  %v184 = vunpack.c.h.b16 %v18
  %v185 = vunpack.c.l.b16 %v19
  %v186 = vunpack.c.l.b16 %v20
  %v187 = vunpack.c.h.b16 %v20
  %v188 = vunpack.c.l.b16 %v21
  %v189 = vunpack.c.h.b16 %v21
  %v190 = vunpack.c.l.b16 %v22
  %v191 = vunpack.c.l.b16 %v23
  %v192 = vunpack.c.h.b16 %v23
  %v193 = vunpack.c.l.b16 %v24
  %v194 = vunpack.c.h.b16 %v24
  %v195 = vunpack.c.l.b16 %v25
  %v196 = vunpack.c.l.b16 %v26
  %v197 = vunpack.c.h.b16 %v26
  %v198 = vunpack.c.l.b16 %v27
  %v199 = vunpack.c.h.b16 %v27
  %v200 = vunpack.c.l.b16 %v28
  %v201 = vunpack.c.l.b16 %v29
  %v202 = vunpack.c.h.b16 %v29
  %v203 = vunpack.c.l.b16 %v30
  %v204 = vunpack.c.h.b16 %v30
  %v205 = vunpack.c.l.b16 %v31
  %v206 = vunpack.c.l.b16 %v32
  %v207 = vunpack.c.h.b16 %v32
  %v208 = vunpack.c.l.b16 %v33
  %v209 = vunpack.c.h.b16 %v33
  %v210 = vunpack.c.l.b16 %v34
  %v211 = vunpack.c.l.b16 %v35
  %v212 = vunpack.c.h.b16 %v35
  %v213 = vunpack.c.l.b16 %v36
  %v214 = vunpack.c.h.b16 %v36
  %v215 = vunpack.c.l.b16 %v37
  %v216 = vunpack.c.l.b16 %v38
  %v217 = vunpack.c.h.b16 %v38
  %v218 = vunpack.c.l.b16 %v39
  %v219 = vunpack.c.h.b16 %v39
  %v220 = vunpack.c.l.b16 %v40
  %v221 = vunpack.c.l.b16 %v41
  %v222 = vunpack.c.h.b16 %v41
  %v223 = vunpack.c.l.b16 %v42
  %v224 = vunpack.c.h.b16 %v42
  %v225 = vunpack.c.l.b16 %v43
  %v226 = vunpack.c.l.b16 %v44
  %v227 = vunpack.c.h.b16 %v44
  %v228 = vunpack.c.l.b16 %v45
  %v229 = vunpack.c.h.b16 %v45
  %v230 = vunpack.c.l.b16 %v46
  %v231 = vunpack.c.l.b16 %v47
  %v232 = vunpack.c.h.b16 %v47
  %v233 = vunpack.c.l.b16 %v48
  %v234 = vunpack.c.h.b16 %v48
  %v235 = vunpack.c.l.b16 %v49
  %v236 = vunpack.c.l.b16 %v50
  %v237 = vunpack.c.h.b16 %v50
  %v238 = vunpack.c.l.b16 %v51
  %v239 = vunpack.c.h.b16 %v51
  %v240 = vunpack.c.l.b16 %v52
  %v241 = vpack.c.b16 %v181, %v176
  %v242 = vpack.c.b16 %v182, %v177
  %v243 = vpack.c.b16 %v183, %v178
  %v244 = vpack.c.b16 %v184, %v179
  %v245 = vpack.c.b16 %v185, %v180
  %v246 = vpack.c.b16 %v191, %v186
  %v247 = vpack.c.b16 %v192, %v187
  %v248 = vpack.c.b16 %v193, %v188
  %v249 = vpack.c.b16 %v194, %v189
  %v250 = vpack.c.b16 %v195, %v190
  %v251 = vpack.c.b16 %v201, %v196
  %v252 = vpack.c.b16 %v202, %v197
  %v253 = vpack.c.b16 %v203, %v198
  %v254 = vpack.c.b16 %v204, %v199
  %v255 = vpack.c.b16 %v205, %v200
  %v256 = vpack.c.b16 %v211, %v206
  %v257 = vpack.c.b16 %v212, %v207
  %v258 = vpack.c.b16 %v213, %v208
  %v259 = vpack.c.b16 %v214, %v209
  %v260 = vpack.c.b16 %v215, %v210
  %v261 = vpack.c.b16 %v221, %v216
  %v262 = vpack.c.b16 %v222, %v217
  %v263 = vpack.c.b16 %v223, %v218
  %v264 = vpack.c.b16 %v224, %v219
  %v265 = vpack.c.b16 %v225, %v220
  %v266 = vpack.c.b16 %v231, %v226
  %v267 = vpack.c.b16 %v232, %v227
  %v268 = vpack.c.b16 %v233, %v228
  %v269 = vpack.c.b16 %v234, %v229
  %v270 = vpack.c.b16 %v235, %v230
  %v271 = vpack.c.b16 %v236, %v236
  %v272 = vpack.c.b16 %v237, %v237
  %v273 = vpack.c.b16 %v238, %v238
  %v274 = vpack.c.b16 %v239, %v239
  %v275 = vpack.c.b16 %v240, %v240
  %v391 = vunpack.c.l.b16 %v53
  %v392 = vunpack.c.l.b16 %v54
  %v393 = vunpack.c.l.b16 %v55
  %v394 = vunpack.c.l.b16 %v56
  %v395 = vunpack.c.l.b16 %v57
  %v396 = vunpack.c.l.b16 %v58
  %v397 = vunpack.c.l.b16 %v59
  %v398 = vunpack.c.l.b16 %v60
  %v399 = vunpack.c.l.b16 %v61
  %v400 = vunpack.c.l.b16 %v62
  %v401 = vunpack.c.l.b16 %v63
  %v402 = vunpack.c.l.b16 %v64
  %v403 = vunpack.c.l.b16 %v65
  %v404 = vunpack.c.l.b16 %v66
  %v405 = vunpack.c.l.b16 %v67
  %v406 = vunpack.c.l.b16 %v68
  %v407 = vunpack.c.l.b16 %v69
  %v408 = vunpack.c.l.b16 %v70
  %v409 = vunpack.c.l.b16 %v71
  %v410 = vunpack.c.l.b16 %v72
  %v411 = vunpack.c.l.b16 %v73
  %v412 = vunpack.c.l.b16 %v74
  %v413 = vunpack.c.l.b16 %v75
  %v414 = vunpack.c.l.b16 %v76
  %v415 = vunpack.c.l.b16 %v77
  %v416 = vunpack.c.l.b16 %v78
  %v417 = vunpack.c.l.b16 %v79
  %v418 = vunpack.c.l.b16 %v80
  %v419 = vunpack.c.l.b16 %v81
  %v420 = vunpack.c.l.b16 %v82
  %v421 = vunpack.c.l.b16 %v83
  %v422 = vunpack.c.l.b16 %v84
  %v423 = vunpack.c.l.b16 %v85
  %v424 = vunpack.c.l.b16 %v86
  %v425 = vunpack.c.l.b16 %v87
  %v426 = vunpack.c.l.b16 %v88
  %v427 = vunpack.c.l.b16 %v89
  %v428 = vunpack.c.l.b16 %v90
  %v429 = vunpack.c.l.b16 %v91
  %v430 = vunpack.c.l.b16 %v92
  %v431 = vunpack.c.l.b16 %v93
  %v432 = vunpack.c.l.b16 %v94
  %v433 = vunpack.c.l.b16 %v95
  %v434 = vunpack.c.l.b16 %v96
  %v435 = vunpack.c.l.b16 %v97
  %v436 = vunpack.c.l.b16 %v98
  %v437 = vunpack.c.l.b16 %v99
  %v438 = vunpack.c.l.b16 %v100
  %v439 = vunpack.c.l.b16 %v101
  %v440 = vunpack.c.l.b16 %v102
  %v441 = vunpack.c.l.b16 %v103
  %v442 = vunpack.c.l.b16 %v104
  %v443 = vunpack.c.l.b16 %v105
  %v444 = vunpack.c.l.b16 %v106
  %v445 = vunpack.c.l.b16 %v107
  %v446 = vunpack.c.l.b16 %v108
  %v447 = vunpack.c.l.b16 %v109
  %v448 = vunpack.c.l.b16 %v110
  %v449 = vunpack.c.l.b16 %v111
  %v450 = vunpack.c.l.b16 %v112
  %v451 = vunpack.c.l.b16 %v113
  %v452 = vunpack.c.l.b16 %v114
  %v453 = vunpack.c.l.b16 %v115
  %v454 = vunpack.c.l.b16 %v116
  %v455 = vunpack.c.l.b16 %v117
  %v456 = vunpack.c.l.b16 %v118
  %v457 = vunpack.c.l.b16 %v119
  %v458 = vunpack.c.l.b16 %v120
  %v459 = vunpack.c.l.b16 %v121
  %v460 = vunpack.c.l.b16 %v122
  %v461 = vunpack.c.l.b16 %v123
  %v462 = vunpack.c.l.b16 %v124
  %v463 = vunpack.c.l.b16 %v125
  %v464 = vunpack.c.l.b16 %v126
  %v465 = vunpack.c.l.b16 %v127
  %v466 = vunpack.c.l.b16 %v128
  %v467 = vunpack.c.l.b16 %v129
  %v468 = vunpack.c.l.b16 %v130
  %v469 = vunpack.c.l.b16 %v131
  %v470 = vunpack.c.l.b16 %v132
  %v471 = vpack.c.b16 %v392, %v391
  %v472 = vpack.c.b16 %v394, %v393
  %v473 = vpack.c.b16 %v396, %v395
  %v474 = vpack.c.b16 %v398, %v397
  %v475 = vpack.c.b16 %v400, %v399
  %v476 = vpack.c.b16 %v402, %v401
  %v477 = vpack.c.b16 %v404, %v403
  %v478 = vpack.c.b16 %v406, %v405
  %v479 = vpack.c.b16 %v408, %v407
  %v480 = vpack.c.b16 %v410, %v409
  %v481 = vpack.c.b16 %v412, %v411
  %v482 = vpack.c.b16 %v414, %v413
  %v483 = vpack.c.b16 %v416, %v415
  %v484 = vpack.c.b16 %v418, %v417
  %v485 = vpack.c.b16 %v420, %v419
  %v486 = vpack.c.b16 %v422, %v421
  %v487 = vpack.c.b16 %v424, %v423
  %v488 = vpack.c.b16 %v426, %v425
  %v489 = vpack.c.b16 %v428, %v427
  %v490 = vpack.c.b16 %v430, %v429
  %v491 = vpack.c.b16 %v432, %v431
  %v492 = vpack.c.b16 %v434, %v433
  %v493 = vpack.c.b16 %v436, %v435
  %v494 = vpack.c.b16 %v438, %v437
  %v495 = vpack.c.b16 %v440, %v439
  %v496 = vpack.c.b16 %v442, %v441
  %v497 = vpack.c.b16 %v444, %v443
  %v498 = vpack.c.b16 %v446, %v445
  %v499 = vpack.c.b16 %v448, %v447
  %v500 = vpack.c.b16 %v450, %v449
  %v501 = vpack.c.b16 %v452, %v451
  %v502 = vpack.c.b16 %v454, %v453
  %v503 = vpack.c.b16 %v456, %v455
  %v504 = vpack.c.b16 %v458, %v457
  %v505 = vpack.c.b16 %v460, %v459
  %v506 = vpack.c.b16 %v462, %v461
  %v507 = vpack.c.b16 %v464, %v463
  %v508 = vpack.c.b16 %v466, %v465
  %v509 = vpack.c.b16 %v468, %v467
  %v510 = vpack.c.b16 %v470, %v469
  %551 = vmatpush.bf16.msra.mxu0 %v478
  %552 = vmatpush.bf16.msra.mxu0 %v477
  %553 = vmatpush.bf16.msra.mxu0 %v476
  %554 = vmatpush.bf16.msra.mxu0 %v475
  %555 = vmatpush.bf16.msra.mxu0 %v474
  %556 = vmatpush.bf16.msra.mxu0 %v473
  %557 = vmatpush.bf16.msra.mxu0 %v472
  %558 = vmatpush.bf16.msra.mxu0 %v471
  %559 = vmatmul.bf16.gmra.mxu0 %v241
  %v560 = vpop.f32.mrf.mxu0
  %v561 = vadd.f32 %v135, %v560
  %v562 = vpop.f32.mrf.mxu0
  %v563 = vadd.f32 %v135, %v562
  %564 = vmatmul.bf16.gmra.mxu0 %v246
  %v565 = vpop.f32.mrf.mxu0
  %v566 = vadd.f32 %v135, %v565
  %v567 = vpop.f32.mrf.mxu0
  %v568 = vadd.f32 %v135, %v567
  %569 = vmatmul.bf16.gmra.mxu0 %v251
  %v570 = vpop.f32.mrf.mxu0
  %v571 = vadd.f32 %v135, %v570
  %v572 = vpop.f32.mrf.mxu0
  %v573 = vadd.f32 %v135, %v572
  %574 = vmatmul.bf16.gmra.mxu0 %v256
  %v575 = vpop.f32.mrf.mxu0
  %v576 = vadd.f32 %v135, %v575
  %v577 = vpop.f32.mrf.mxu0
  %v578 = vadd.f32 %v135, %v577
  %579 = vmatmul.bf16.gmra.mxu0 %v261
  %v580 = vpop.f32.mrf.mxu0
  %v581 = vadd.f32 %v135, %v580
  %v582 = vpop.f32.mrf.mxu0
  %v583 = vadd.f32 %v135, %v582
  %584 = vmatmul.bf16.gmra.mxu0 %v266
  %v585 = vpop.f32.mrf.mxu0
  %v586 = vadd.f32 %v135, %v585
  %v587 = vpop.f32.mrf.mxu0
  %v588 = vadd.f32 %v135, %v587
  %589 = vmatmul.bf16.gmra.mxu0 %v271
  %v590 = vpop.f32.mrf.mxu0
  %v591 = vadd.f32 %v135, %v590
  %v592 = vpop.f32.mrf.mxu0
  %593 = vdwg.mxu0
  %594 = vmatpush.bf16.msra.mxu0 %v486
  %595 = vmatpush.bf16.msra.mxu0 %v485
  %596 = vmatpush.bf16.msra.mxu0 %v484
  %597 = vmatpush.bf16.msra.mxu0 %v483
  %598 = vmatpush.bf16.msra.mxu0 %v482
  %599 = vmatpush.bf16.msra.mxu0 %v481
  %600 = vmatpush.bf16.msra.mxu0 %v480
  %601 = vmatpush.bf16.msra.mxu0 %v479
  %602 = vmatmul.bf16.gmra.mxu0 %v242
  %v603 = vpop.f32.mrf.mxu0
  %v604 = vadd.f32 %v561, %v603
  %v605 = vpop.f32.mrf.mxu0
  %v606 = vadd.f32 %v563, %v605
  %607 = vmatmul.bf16.gmra.mxu0 %v247
  %v608 = vpop.f32.mrf.mxu0
  %v609 = vadd.f32 %v566, %v608
  %v610 = vpop.f32.mrf.mxu0
  %v611 = vadd.f32 %v568, %v610
  %612 = vmatmul.bf16.gmra.mxu0 %v252
  %v613 = vpop.f32.mrf.mxu0
  %v614 = vadd.f32 %v571, %v613
  %v615 = vpop.f32.mrf.mxu0
  %v616 = vadd.f32 %v573, %v615
  %617 = vmatmul.bf16.gmra.mxu0 %v257
  %v618 = vpop.f32.mrf.mxu0
  %v619 = vadd.f32 %v576, %v618
  %v620 = vpop.f32.mrf.mxu0
  %v621 = vadd.f32 %v578, %v620
  %622 = vmatmul.bf16.gmra.mxu0 %v262
  %v623 = vpop.f32.mrf.mxu0
  %v624 = vadd.f32 %v581, %v623
  %v625 = vpop.f32.mrf.mxu0
  %v626 = vadd.f32 %v583, %v625
  %627 = vmatmul.bf16.gmra.mxu0 %v267
  %v628 = vpop.f32.mrf.mxu0
  %v629 = vadd.f32 %v586, %v628
  %v630 = vpop.f32.mrf.mxu0
  %v631 = vadd.f32 %v588, %v630
  %632 = vmatmul.bf16.gmra.mxu0 %v272
  %v633 = vpop.f32.mrf.mxu0
  %v634 = vadd.f32 %v591, %v633
  %v635 = vpop.f32.mrf.mxu0
  %636 = vdwg.mxu0
  %637 = vmatpush.bf16.msra.mxu0 %v494
  %638 = vmatpush.bf16.msra.mxu0 %v493
  %639 = vmatpush.bf16.msra.mxu0 %v492
  %640 = vmatpush.bf16.msra.mxu0 %v491
  %641 = vmatpush.bf16.msra.mxu0 %v490
  %642 = vmatpush.bf16.msra.mxu0 %v489
  %643 = vmatpush.bf16.msra.mxu0 %v488
  %644 = vmatpush.bf16.msra.mxu0 %v487
  %645 = vmatmul.bf16.gmra.mxu0 %v243
  %v646 = vpop.f32.mrf.mxu0
  %v647 = vadd.f32 %v604, %v646
  %v648 = vpop.f32.mrf.mxu0
  %v649 = vadd.f32 %v606, %v648
  %650 = vmatmul.bf16.gmra.mxu0 %v248
  %v651 = vpop.f32.mrf.mxu0
  %v652 = vadd.f32 %v609, %v651
  %v653 = vpop.f32.mrf.mxu0
  %v654 = vadd.f32 %v611, %v653
  %655 = vmatmul.bf16.gmra.mxu0 %v253
  %v656 = vpop.f32.mrf.mxu0
  %v657 = vadd.f32 %v614, %v656
  %v658 = vpop.f32.mrf.mxu0
  %v659 = vadd.f32 %v616, %v658
  %660 = vmatmul.bf16.gmra.mxu0 %v258
  %v661 = vpop.f32.mrf.mxu0
  %v662 = vadd.f32 %v619, %v661
  %v663 = vpop.f32.mrf.mxu0
  %v664 = vadd.f32 %v621, %v663
  %665 = vmatmul.bf16.gmra.mxu0 %v263
  %v666 = vpop.f32.mrf.mxu0
  %v667 = vadd.f32 %v624, %v666
  %v668 = vpop.f32.mrf.mxu0
  %v669 = vadd.f32 %v626, %v668
  %670 = vmatmul.bf16.gmra.mxu0 %v268
  %v671 = vpop.f32.mrf.mxu0
  %v672 = vadd.f32 %v629, %v671
  %v673 = vpop.f32.mrf.mxu0
  %v674 = vadd.f32 %v631, %v673
  %675 = vmatmul.bf16.gmra.mxu0 %v273
  %v676 = vpop.f32.mrf.mxu0
  %v677 = vadd.f32 %v634, %v676
  %v678 = vpop.f32.mrf.mxu0
  %679 = vdwg.mxu0
  %680 = vmatpush.bf16.msra.mxu0 %v502
  %681 = vmatpush.bf16.msra.mxu0 %v501
  %682 = vmatpush.bf16.msra.mxu0 %v500
  %683 = vmatpush.bf16.msra.mxu0 %v499
  %684 = vmatpush.bf16.msra.mxu0 %v498
  %685 = vmatpush.bf16.msra.mxu0 %v497
  %686 = vmatpush.bf16.msra.mxu0 %v496
  %687 = vmatpush.bf16.msra.mxu0 %v495
  %688 = vmatmul.bf16.gmra.mxu0 %v244
  %v689 = vpop.f32.mrf.mxu0
  %v690 = vadd.f32 %v647, %v689
  %v691 = vpop.f32.mrf.mxu0
  %v692 = vadd.f32 %v649, %v691
  %693 = vmatmul.bf16.gmra.mxu0 %v249
  %v694 = vpop.f32.mrf.mxu0
  %v695 = vadd.f32 %v652, %v694
  %v696 = vpop.f32.mrf.mxu0
  %v697 = vadd.f32 %v654, %v696
  %698 = vmatmul.bf16.gmra.mxu0 %v254
  %v699 = vpop.f32.mrf.mxu0
  %v700 = vadd.f32 %v657, %v699
  %v701 = vpop.f32.mrf.mxu0
  %v702 = vadd.f32 %v659, %v701
  %703 = vmatmul.bf16.gmra.mxu0 %v259
  %v704 = vpop.f32.mrf.mxu0
  %v705 = vadd.f32 %v662, %v704
  %v706 = vpop.f32.mrf.mxu0
  %v707 = vadd.f32 %v664, %v706
  %708 = vmatmul.bf16.gmra.mxu0 %v264
  %v709 = vpop.f32.mrf.mxu0
  %v710 = vadd.f32 %v667, %v709
  %v711 = vpop.f32.mrf.mxu0
  %v712 = vadd.f32 %v669, %v711
  %713 = vmatmul.bf16.gmra.mxu0 %v269
  %v714 = vpop.f32.mrf.mxu0
  %v715 = vadd.f32 %v672, %v714
  %v716 = vpop.f32.mrf.mxu0
  %v717 = vadd.f32 %v674, %v716
  %718 = vmatmul.bf16.gmra.mxu0 %v274
  %v719 = vpop.f32.mrf.mxu0
  %v720 = vadd.f32 %v677, %v719
  %v721 = vpop.f32.mrf.mxu0
  %722 = vdwg.mxu0
  %723 = vmatpush.bf16.msra.mxu0 %v510
  %724 = vmatpush.bf16.msra.mxu0 %v509
  %725 = vmatpush.bf16.msra.mxu0 %v508
  %726 = vmatpush.bf16.msra.mxu0 %v507
  %727 = vmatpush.bf16.msra.mxu0 %v506
  %728 = vmatpush.bf16.msra.mxu0 %v505
  %729 = vmatpush.bf16.msra.mxu0 %v504
  %730 = vmatpush.bf16.msra.mxu0 %v503
  %731 = vmatmul.bf16.gmra.mxu0 %v245
  %v732 = vpop.f32.mrf.mxu0
  %v733 = vadd.f32 %v690, %v732
  %v734 = vpop.f32.mrf.mxu0
  %v735 = vadd.f32 %v692, %v734
  %736 = vmatmul.bf16.gmra.mxu0 %v250
  %v737 = vpop.f32.mrf.mxu0
  %v738 = vadd.f32 %v695, %v737
  %v739 = vpop.f32.mrf.mxu0
  %v740 = vadd.f32 %v697, %v739
  %741 = vmatmul.bf16.gmra.mxu0 %v255
  %v742 = vpop.f32.mrf.mxu0
  %v743 = vadd.f32 %v700, %v742
  %v744 = vpop.f32.mrf.mxu0
  %v745 = vadd.f32 %v702, %v744
  %746 = vmatmul.bf16.gmra.mxu0 %v260
  %v747 = vpop.f32.mrf.mxu0
  %v748 = vadd.f32 %v705, %v747
  %v749 = vpop.f32.mrf.mxu0
  %v750 = vadd.f32 %v707, %v749
  %751 = vmatmul.bf16.gmra.mxu0 %v265
  %v752 = vpop.f32.mrf.mxu0
  %v753 = vadd.f32 %v710, %v752
  %v754 = vpop.f32.mrf.mxu0
  %v755 = vadd.f32 %v712, %v754
  %756 = vmatmul.bf16.gmra.mxu0 %v270
  %v757 = vpop.f32.mrf.mxu0
  %v758 = vadd.f32 %v715, %v757
  %v759 = vpop.f32.mrf.mxu0
  %v760 = vadd.f32 %v717, %v759
  %761 = vmatmul.bf16.gmra.mxu0 %v275
  %v762 = vpop.f32.mrf.mxu0
  %v763 = vadd.f32 %v720, %v762
  %v764 = vpop.f32.mrf.mxu0
  %765 = vdwg.mxu0
  %v766 = vmax.f32 %v733, 0.0
  %v767 = vmax.f32 %v735, 0.0
  %v768 = vmax.f32 %v738, 0.0
  %v769 = vmax.f32 %v740, 0.0
  %v770 = vmax.f32 %v743, 0.0
  %v771 = vmax.f32 %v745, 0.0
  %v772 = vmax.f32 %v748, 0.0
  %v773 = vmax.f32 %v750, 0.0
  %v774 = vmax.f32 %v753, 0.0
  %v775 = vmax.f32 %v755, 0.0
  %v776 = vmax.f32 %v758, 0.0
  %v777 = vmax.f32 %v760, 0.0
  %v778 = vmax.f32 %v763, 0.0
  %v779 = vpack.c.bf16 %v766, %v766
  %v780 = vpack.c.bf16 %v767, %v767
  %v781 = vpack.c.bf16 %v768, %v768
  %v782 = vpack.c.bf16 %v769, %v769
  %v783 = vpack.c.bf16 %v770, %v770
  %v784 = vpack.c.bf16 %v771, %v771
  %v785 = vpack.c.bf16 %v772, %v772
  %v786 = vpack.c.bf16 %v773, %v773
  %v787 = vpack.c.bf16 %v774, %v774
  %v788 = vpack.c.bf16 %v775, %v775
  %v789 = vpack.c.bf16 %v776, %v776
  %v790 = vpack.c.bf16 %v777, %v777
  %v791 = vpack.c.bf16 %v778, %v778
  %vm792 = vcmask 519168
  %793 = vst.msk [vmem:[%s3] sm:$0xf] %vm792, %v779
  %794 = vst.msk [vmem:[%s3 + $0x4] sm:$0xf] %vm792, %v780
  %795 = vst.msk [vmem:[%s3 + $0x8] sm:$0xf] %vm792, %v781
  %796 = vst.msk [vmem:[%s3 + $0xc] sm:$0xf] %vm792, %v782
  %797 = vst.msk [vmem:[%s3 + $0x10] sm:$0xf] %vm792, %v783
  %798 = vst.msk [vmem:[%s3 + $0x14] sm:$0xf] %vm792, %v784
  %799 = vst.msk [vmem:[%s3 + $0x18] sm:$0xf] %vm792, %v785
  %800 = vst.msk [vmem:[%s3 + $0x1c] sm:$0xf] %vm792, %v786
  %801 = vst.msk [vmem:[%s3 + $0x20] sm:$0xf] %vm792, %v787
  %802 = vst.msk [vmem:[%s3 + $0x24] sm:$0xf] %vm792, %v788
  %803 = vst.msk [vmem:[%s3 + $0x28] sm:$0xf] %vm792, %v789
  %804 = vst.msk [vmem:[%s3 + $0x2c] sm:$0xf] %vm792, %v790
  %805 = vst.msk [vmem:[%s3 + $0x30] sm:$0xf] %vm792, %v791
  // Predicated region
  $region14: #{qnet_forward.6} parent=0 // pred_check
    _
  $region15: #{qnet_forward.6} parent=0 // pred_check_branch
    %807 = sbr.rel (0) target = $region17
  $region16: #{qnet_forward.6} parent=0 // pred_region
    _
  $region17: #{qnet_forward.6} parent=0 // pred_fallthru
    _
  // Predicated region
  $region18: #{qnet_forward.6} parent=0 // pred_check
    _
  $region19: #{qnet_forward.6} parent=0 // pred_check_branch
    %809 = sbr.rel (0) target = $region21
  $region20: #{qnet_forward.6} parent=0 // pred_region
    _
  $region21: #{qnet_forward.6} parent=0 // pred_fallthru
    _

// kernel: qnet_forward.7
$region0: #{qnet_forward.7}
  #allocation0 [shape = 'u32[]', space=smem, size = 0x4, offset = 0x4, fixed_abs, tag = 'smem constant byte address 0x4 - core index']
  #allocation1 [shape = 'u32[72,128]{1,0:T(1,128)}', space=vmem, size = 0x9000, scoped, tag = 'internal scratch']
  %s0 = inlined_call_operand.vmem [shape: bf16[8,3200], index: 0, kind: input, shape index: {}]
  %s1 = inlined_call_operand.vmem [shape: bf16[3200,64], index: 1, kind: input, shape index: {}]
  %s2 = inlined_call_operand.vmem [shape: f32[1,64], index: 2, kind: input, shape index: {}]
  %s3 = inlined_call_operand.vmem [shape: bf16[64,7], index: 3, kind: input, shape index: {}]
  %s4 = inlined_call_operand.vmem [shape: f32[1,7], index: 4, kind: input, shape index: {}]
  %s5 = inlined_call_operand.vmem [shape: f32[8,6], index: 5, kind: output, shape index: {}]
  %s6 = sld [smem:[#allocation0]]
  $region30: #{qnet_forward.7} parent=0
    _
  %s8 = ssub.s32 1, %s6
  %s9 = scalar_select 0, %s8, %s6
  // Predicated region
  $region2: #{qnet_forward.7} parent=0 // pred_check
    _
  $region3: #{qnet_forward.7} parent=0 // pred_check_branch
    %11 = sbr.rel (0) target = $region5
  $region4: #{qnet_forward.7} parent=0 // pred_region
    _
  $region5: #{qnet_forward.7} parent=0 // pred_fallthru
    _
  // Predicated region
  $region6: #{qnet_forward.7} parent=0 // pred_check
    _
  $region7: #{qnet_forward.7} parent=0 // pred_check_branch
    %13 = sbr.rel (0) target = $region9
  $region8: #{qnet_forward.7} parent=0 // pred_region
    _
  $region9: #{qnet_forward.7} parent=0 // pred_fallthru
    _
  // Predicated region
  $region10: #{qnet_forward.7} parent=0 // pred_check
    _
  $region11: #{qnet_forward.7} parent=0 // pred_check_branch
    %15 = sbr.rel (0) target = $region13
  $region12: #{qnet_forward.7} parent=0 // pred_region
    _
  $region13: #{qnet_forward.7} parent=0 // pred_fallthru
    _
  // Predicated region
  $region14: #{qnet_forward.7} parent=0 // pred_check
    _
  $region15: #{qnet_forward.7} parent=0 // pred_check_branch
    %17 = sbr.rel (0) target = $region17
  $region16: #{qnet_forward.7} parent=0 // pred_region
    _
  $region17: #{qnet_forward.7} parent=0 // pred_fallthru
    _
  // Predicated region
  $region18: #{qnet_forward.7} parent=0 // pred_check
    _
  $region19: #{qnet_forward.7} parent=0 // pred_check_branch
    %19 = sbr.rel (0) target = $region21
  $region20: #{qnet_forward.7} parent=0 // pred_region
    _
  $region21: #{qnet_forward.7} parent=0 // pred_fallthru
    _
  %v21 = vld [vmem:[%s0] sm:$0xff]
  %v22 = vld [vmem:[%s0 + $0x8] sm:$0xff]
  %v23 = vld [vmem:[%s0 + $0x10] sm:$0xff]
  %v24 = vld [vmem:[%s0 + $0x18] sm:$0xff]
  %v25 = vld [vmem:[%s0 + $0x20] sm:$0xff]
  %v26 = vld [vmem:[%s0 + $0x28] sm:$0xff]
  %v27 = vld [vmem:[%s0 + $0x30] sm:$0xff]
  %v28 = vld [vmem:[%s0 + $0x38] sm:$0xff]
  %v29 = vld [vmem:[%s0 + $0x40] sm:$0xff]
  %v30 = vld [vmem:[%s0 + $0x48] sm:$0xff]
  %v31 = vld [vmem:[%s0 + $0x50] sm:$0xff]
  %v32 = vld [vmem:[%s0 + $0x58] sm:$0xff]
  %v33 = vld [vmem:[%s0 + $0x60] sm:$0xf]
  %v34 = vld [vmem:[%s1] sm:$0xf]
  %v35 = vld [vmem:[%s1 + $0x4] sm:$0xf]
  %v36 = vld [vmem:[%s1 + $0x8] sm:$0xf]
  %v37 = vld [vmem:[%s1 + $0xc] sm:$0xf]
  %v38 = vld [vmem:[%s1 + $0x10] sm:$0xf]
  %v39 = vld [vmem:[%s1 + $0x14] sm:$0xf]
  %v40 = vld [vmem:[%s1 + $0x18] sm:$0xf]
  %v41 = vld [vmem:[%s1 + $0x1c] sm:$0xf]
  %v42 = vld [vmem:[%s1 + $0x20] sm:$0xf]
  %v43 = vld [vmem:[%s1 + $0x24] sm:$0xf]
  %v44 = vld [vmem:[%s1 + $0x28] sm:$0xf]
  %v45 = vld [vmem:[%s1 + $0x2c] sm:$0xf]
  %v46 = vld [vmem:[%s1 + $0x30] sm:$0xf]
  %v47 = vld [vmem:[%s1 + $0x34] sm:$0xf]
  %v48 = vld [vmem:[%s1 + $0x38] sm:$0xf]
  %v49 = vld [vmem:[%s1 + $0x3c] sm:$0xf]
  %v50 = vld [vmem:[%s1 + $0x40] sm:$0xf]
  %v51 = vld [vmem:[%s1 + $0x44] sm:$0xf]
  %v52 = vld [vmem:[%s1 + $0x48] sm:$0xf]
  %v53 = vld [vmem:[%s1 + $0x4c] sm:$0xf]
  %v54 = vld [vmem:[%s1 + $0x50] sm:$0xf]
  %v55 = vld [vmem:[%s1 + $0x54] sm:$0xf]
  %v56 = vld [vmem:[%s1 + $0x58] sm:$0xf]
  %v57 = vld [vmem:[%s1 + $0x5c] sm:$0xf]
  %v58 = vld [vmem:[%s1 + $0x60] sm:$0xf]
  %v59 = vld [vmem:[%s1 + $0x64] sm:$0xf]
  %v60 = vld [vmem:[%s1 + $0x68] sm:$0xf]
  %v61 = vld [vmem:[%s1 + $0x6c] sm:$0xf]
  %v62 = vld [vmem:[%s1 + $0x70] sm:$0xf]
  %v63 = vld [vmem:[%s1 + $0x74] sm:$0xf]
  %v64 = vld [vmem:[%s1 + $0x78] sm:$0xf]
  %v65 = vld [vmem:[%s1 + $0x7c] sm:$0xf]
  %v66 = vld [vmem:[%s1 + $0x80] sm:$0xf]
  %v67 = vld [vmem:[%s1 + $0x84] sm:$0xf]
  %v68 = vld [vmem:[%s1 + $0x88] sm:$0xf]
  %v69 = vld [vmem:[%s1 + $0x8c] sm:$0xf]
  %v70 = vld [vmem:[%s1 + $0x90] sm:$0xf]
  %v71 = vld [vmem:[%s1 + $0x94] sm:$0xf]
  %v72 = vld [vmem:[%s1 + $0x98] sm:$0xf]
  %v73 = vld [vmem:[%s1 + $0x9c] sm:$0xf]
  %v74 = vld [vmem:[%s1 + $0xa0] sm:$0xf]
  %v75 = vld [vmem:[%s1 + $0xa4] sm:$0xf]
  %v76 = vld [vmem:[%s1 + $0xa8] sm:$0xf]
  %v77 = vld [vmem:[%s1 + $0xac] sm:$0xf]
  %v78 = vld [vmem:[%s1 + $0xb0] sm:$0xf]
  %v79 = vld [vmem:[%s1 + $0xb4] sm:$0xf]
  %v80 = vld [vmem:[%s1 + $0xb8] sm:$0xf]
  %v81 = vld [vmem:[%s1 + $0xbc] sm:$0xf]
  %v82 = vld [vmem:[%s1 + $0xc0] sm:$0xf]
  %v83 = vld [vmem:[%s1 + $0xc4] sm:$0xf]
  %v84 = vld [vmem:[%s1 + $0xc8] sm:$0xf]
  %v85 = vld [vmem:[%s1 + $0xcc] sm:$0xf]
  %v86 = vld [vmem:[%s1 + $0xd0] sm:$0xf]
  %v87 = vld [vmem:[%s1 + $0xd4] sm:$0xf]
  %v88 = vld [vmem:[%s1 + $0xd8] sm:$0xf]
  %v89 = vld [vmem:[%s1 + $0xdc] sm:$0xf]
  %v90 = vld [vmem:[%s1 + $0xe0] sm:$0xf]
  %v91 = vld [vmem:[%s1 + $0xe4] sm:$0xf]
  %v92 = vld [vmem:[%s1 + $0xe8] sm:$0xf]
  %v93 = vld [vmem:[%s1 + $0xec] sm:$0xf]
  %v94 = vld [vmem:[%s1 + $0xf0] sm:$0xf]
  %v95 = vld [vmem:[%s1 + $0xf4] sm:$0xf]
  %v96 = vld [vmem:[%s1 + $0xf8] sm:$0xf]
  %v97 = vld [vmem:[%s1 + $0xfc] sm:$0xf]
  %v98 = vld [vmem:[%s1 + $0x100] sm:$0xf]
  %v99 = vld [vmem:[%s1 + $0x104] sm:$0xf]
  %v100 = vld [vmem:[%s1 + $0x108] sm:$0xf]
  %v101 = vld [vmem:[%s1 + $0x10c] sm:$0xf]
  %v102 = vld [vmem:[%s1 + $0x110] sm:$0xf]
  %v103 = vld [vmem:[%s1 + $0x114] sm:$0xf]
  %v104 = vld [vmem:[%s1 + $0x118] sm:$0xf]
  %v105 = vld [vmem:[%s1 + $0x11c] sm:$0xf]
  %v106 = vld [vmem:[%s1 + $0x120] sm:$0xf]
  %v107 = vld [vmem:[%s1 + $0x124] sm:$0xf]
  %v108 = vld [vmem:[%s1 + $0x128] sm:$0xf]
  %v109 = vld [vmem:[%s1 + $0x12c] sm:$0xf]
  %v110 = vld [vmem:[%s1 + $0x130] sm:$0xf]
  %v111 = vld [vmem:[%s1 + $0x134] sm:$0xf]
  %v112 = vld [vmem:[%s1 + $0x138] sm:$0xf]
  %v113 = vld [vmem:[%s1 + $0x13c] sm:$0xf]
  %v114 = vld [vmem:[%s1 + $0x140] sm:$0xf]
  %v115 = vld [vmem:[%s1 + $0x144] sm:$0xf]
  %v116 = vld [vmem:[%s1 + $0x148] sm:$0xf]
  %v117 = vld [vmem:[%s1 + $0x14c] sm:$0xf]
  %v118 = vld [vmem:[%s1 + $0x150] sm:$0xf]
  %v119 = vld [vmem:[%s1 + $0x154] sm:$0xf]
  %v120 = vld [vmem:[%s1 + $0x158] sm:$0xf]
  %v121 = vld [vmem:[%s1 + $0x15c] sm:$0xf]
  %v122 = vld [vmem:[%s1 + $0x160] sm:$0xf]
  %v123 = vld [vmem:[%s1 + $0x164] sm:$0xf]
  %v124 = vld [vmem:[%s1 + $0x168] sm:$0xf]
  %v125 = vld [vmem:[%s1 + $0x16c] sm:$0xf]
  %v126 = vld [vmem:[%s1 + $0x170] sm:$0xf]
  %v127 = vld [vmem:[%s1 + $0x174] sm:$0xf]
  %v128 = vld [vmem:[%s1 + $0x178] sm:$0xf]
  %v129 = vld [vmem:[%s1 + $0x17c] sm:$0xf]
  %v130 = vld [vmem:[%s1 + $0x180] sm:$0xf]
  %v131 = vld [vmem:[%s1 + $0x184] sm:$0xf]
  %v132 = vld [vmem:[%s1 + $0x188] sm:$0xf]
  %v133 = vld [vmem:[%s1 + $0x18c] sm:$0xf]
  %v134 = vld [vmem:[%s1 + $0x190] sm:$0xf]
  %v135 = vld [vmem:[%s1 + $0x194] sm:$0xf]
  %v136 = vld [vmem:[%s1 + $0x198] sm:$0xf]
  %v137 = vld [vmem:[%s1 + $0x19c] sm:$0xf]
  %v138 = vld [vmem:[%s1 + $0x1a0] sm:$0xf]
  %v139 = vld [vmem:[%s1 + $0x1a4] sm:$0xf]
  %v140 = vld [vmem:[%s1 + $0x1a8] sm:$0xf]
  %v141 = vld [vmem:[%s1 + $0x1ac] sm:$0xf]
  %v142 = vld [vmem:[%s1 + $0x1b0] sm:$0xf]
  %v143 = vld [vmem:[%s1 + $0x1b4] sm:$0xf]
  %v144 = vld [vmem:[%s1 + $0x1b8] sm:$0xf]
  %v145 = vld [vmem:[%s1 + $0x1bc] sm:$0xf]
  %v146 = vld [vmem:[%s1 + $0x1c0] sm:$0xf]
  %v147 = vld [vmem:[%s1 + $0x1c4] sm:$0xf]
  %v148 = vld [vmem:[%s1 + $0x1c8] sm:$0xf]
  %v149 = vld [vmem:[%s1 + $0x1cc] sm:$0xf]
  %v150 = vld [vmem:[%s1 + $0x1d0] sm:$0xf]
  %v151 = vld [vmem:[%s1 + $0x1d4] sm:$0xf]
  %v152 = vld [vmem:[%s1 + $0x1d8] sm:$0xf]
  %v153 = vld [vmem:[%s1 + $0x1dc] sm:$0xf]
  %v154 = vld [vmem:[%s1 + $0x1e0] sm:$0xf]
  %v155 = vld [vmem:[%s1 + $0x1e4] sm:$0xf]
  %v156 = vld [vmem:[%s1 + $0x1e8] sm:$0xf]
  %v157 = vld [vmem:[%s1 + $0x1ec] sm:$0xf]
  %v158 = vld [vmem:[%s1 + $0x1f0] sm:$0xf]
  %v159 = vld [vmem:[%s1 + $0x1f4] sm:$0xf]
  %v160 = vld [vmem:[%s1 + $0x1f8] sm:$0xf]
  %v161 = vld [vmem:[%s1 + $0x1fc] sm:$0xf]
  %v162 = vld [vmem:[%s1 + $0x200] sm:$0xf]
  %v163 = vld [vmem:[%s1 + $0x204] sm:$0xf]
  %v164 = vld [vmem:[%s1 + $0x208] sm:$0xf]
  %v165 = vld [vmem:[%s1 + $0x20c] sm:$0xf]
  %v166 = vld [vmem:[%s1 + $0x210] sm:$0xf]
  %v167 = vld [vmem:[%s1 + $0x214] sm:$0xf]
  %v168 = vld [vmem:[%s1 + $0x218] sm:$0xf]
  %v169 = vld [vmem:[%s1 + $0x21c] sm:$0xf]
  %v170 = vld [vmem:[%s1 + $0x220] sm:$0xf]
  %v171 = vld [vmem:[%s1 + $0x224] sm:$0xf]
  %v172 = vld [vmem:[%s1 + $0x228] sm:$0xf]
  %v173 = vld [vmem:[%s1 + $0x22c] sm:$0xf]
  %v174 = vld [vmem:[%s1 + $0x230] sm:$0xf]
  %v175 = vld [vmem:[%s1 + $0x234] sm:$0xf]
  %v176 = vld [vmem:[%s1 + $0x238] sm:$0xf]
  %v177 = vld [vmem:[%s1 + $0x23c] sm:$0xf]
  %v178 = vld [vmem:[%s1 + $0x240] sm:$0xf]
  %v179 = vld [vmem:[%s1 + $0x244] sm:$0xf]
  %v180 = vld [vmem:[%s1 + $0x248] sm:$0xf]
  %v181 = vld [vmem:[%s1 + $0x24c] sm:$0xf]
  %v182 = vld [vmem:[%s1 + $0x250] sm:$0xf]
  %v183 = vld [vmem:[%s1 + $0x254] sm:$0xf]
  %v184 = vld [vmem:[%s1 + $0x258] sm:$0xf]
  %v185 = vld [vmem:[%s1 + $0x25c] sm:$0xf]
  %v186 = vld [vmem:[%s1 + $0x260] sm:$0xf]
  %v187 = vld [vmem:[%s1 + $0x264] sm:$0xf]
  %v188 = vld [vmem:[%s1 + $0x268] sm:$0xf]
  %v189 = vld [vmem:[%s1 + $0x26c] sm:$0xf]
  %v190 = vld [vmem:[%s1 + $0x270] sm:$0xf]
  %v191 = vld [vmem:[%s1 + $0x274] sm:$0xf]
  %v192 = vld [vmem:[%s1 + $0x278] sm:$0xf]
  %v193 = vld [vmem:[%s1 + $0x27c] sm:$0xf]
  %v194 = vld [vmem:[%s1 + $0x280] sm:$0xf]
  %v195 = vld [vmem:[%s1 + $0x284] sm:$0xf]
  %v196 = vld [vmem:[%s1 + $0x288] sm:$0xf]
  %v197 = vld [vmem:[%s1 + $0x28c] sm:$0xf]
  %v198 = vld [vmem:[%s1 + $0x290] sm:$0xf]
  %v199 = vld [vmem:[%s1 + $0x294] sm:$0xf]
  %v200 = vld [vmem:[%s1 + $0x298] sm:$0xf]
  %v201 = vld [vmem:[%s1 + $0x29c] sm:$0xf]
  %v202 = vld [vmem:[%s1 + $0x2a0] sm:$0xf]
  %v203 = vld [vmem:[%s1 + $0x2a4] sm:$0xf]
  %v204 = vld [vmem:[%s1 + $0x2a8] sm:$0xf]
  %v205 = vld [vmem:[%s1 + $0x2ac] sm:$0xf]
  %v206 = vld [vmem:[%s1 + $0x2b0] sm:$0xf]
  %v207 = vld [vmem:[%s1 + $0x2b4] sm:$0xf]
  %v208 = vld [vmem:[%s1 + $0x2b8] sm:$0xf]
  %v209 = vld [vmem:[%s1 + $0x2bc] sm:$0xf]
  %v210 = vld [vmem:[%s1 + $0x2c0] sm:$0xf]
  %v211 = vld [vmem:[%s1 + $0x2c4] sm:$0xf]
  %v212 = vld [vmem:[%s1 + $0x2c8] sm:$0xf]
  %v213 = vld [vmem:[%s1 + $0x2cc] sm:$0xf]
  %v214 = vld [vmem:[%s1 + $0x2d0] sm:$0xf]
  %v215 = vld [vmem:[%s1 + $0x2d4] sm:$0xf]
  %v216 = vld [vmem:[%s1 + $0x2d8] sm:$0xf]
  %v217 = vld [vmem:[%s1 + $0x2dc] sm:$0xf]
  %v218 = vld [vmem:[%s1 + $0x2e0] sm:$0xf]
  %v219 = vld [vmem:[%s1 + $0x2e4] sm:$0xf]
  %v220 = vld [vmem:[%s1 + $0x2e8] sm:$0xf]
  %v221 = vld [vmem:[%s1 + $0x2ec] sm:$0xf]
  %v222 = vld [vmem:[%s1 + $0x2f0] sm:$0xf]
  %v223 = vld [vmem:[%s1 + $0x2f4] sm:$0xf]
  %v224 = vld [vmem:[%s1 + $0x2f8] sm:$0xf]
  %v225 = vld [vmem:[%s1 + $0x2fc] sm:$0xf]
  %v226 = vld [vmem:[%s1 + $0x300] sm:$0xf]
  %v227 = vld [vmem:[%s1 + $0x304] sm:$0xf]
  %v228 = vld [vmem:[%s1 + $0x308] sm:$0xf]
  %v229 = vld [vmem:[%s1 + $0x30c] sm:$0xf]
  %v230 = vld [vmem:[%s1 + $0x310] sm:$0xf]
  %v231 = vld [vmem:[%s1 + $0x314] sm:$0xf]
  %v232 = vld [vmem:[%s1 + $0x318] sm:$0xf]
  %v233 = vld [vmem:[%s1 + $0x31c] sm:$0xf]
  %v234 = vld [vmem:[%s1 + $0x320] sm:$0xf]
  %v235 = vld [vmem:[%s1 + $0x324] sm:$0xf]
  %v236 = vld [vmem:[%s1 + $0x328] sm:$0xf]
  %v237 = vld [vmem:[%s1 + $0x32c] sm:$0xf]
  %v238 = vld [vmem:[%s1 + $0x330] sm:$0xf]
  %v239 = vld [vmem:[%s1 + $0x334] sm:$0xf]
  %v240 = vld [vmem:[%s1 + $0x338] sm:$0xf]
  %v241 = vld [vmem:[%s1 + $0x33c] sm:$0xf]
  %v242 = vld [vmem:[%s1 + $0x340] sm:$0xf]
  %v243 = vld [vmem:[%s1 + $0x344] sm:$0xf]
  %v244 = vld [vmem:[%s1 + $0x348] sm:$0xf]
  %v245 = vld [vmem:[%s1 + $0x34c] sm:$0xf]
  %v246 = vld [vmem:[%s1 + $0x350] sm:$0xf]
  %v247 = vld [vmem:[%s1 + $0x354] sm:$0xf]
  %v248 = vld [vmem:[%s1 + $0x358] sm:$0xf]
  %v249 = vld [vmem:[%s1 + $0x35c] sm:$0xf]
  %v250 = vld [vmem:[%s1 + $0x360] sm:$0xf]
  %v251 = vld [vmem:[%s1 + $0x364] sm:$0xf]
  %v252 = vld [vmem:[%s1 + $0x368] sm:$0xf]
  %v253 = vld [vmem:[%s1 + $0x36c] sm:$0xf]
  %v254 = vld [vmem:[%s1 + $0x370] sm:$0xf]
  %v255 = vld [vmem:[%s1 + $0x374] sm:$0xf]
  %v256 = vld [vmem:[%s1 + $0x378] sm:$0xf]
  %v257 = vld [vmem:[%s1 + $0x37c] sm:$0xf]
  %v258 = vld [vmem:[%s1 + $0x380] sm:$0xf]
  %v259 = vld [vmem:[%s1 + $0x384] sm:$0xf]
  %v260 = vld [vmem:[%s1 + $0x388] sm:$0xf]
  %v261 = vld [vmem:[%s1 + $0x38c] sm:$0xf]
  %v262 = vld [vmem:[%s1 + $0x390] sm:$0xf]
  %v263 = vld [vmem:[%s1 + $0x394] sm:$0xf]
  %v264 = vld [vmem:[%s1 + $0x398] sm:$0xf]
  %v265 = vld [vmem:[%s1 + $0x39c] sm:$0xf]
  %v266 = vld [vmem:[%s1 + $0x3a0] sm:$0xf]
  %v267 = vld [vmem:[%s1 + $0x3a4] sm:$0xf]
  %v268 = vld [vmem:[%s1 + $0x3a8] sm:$0xf]
  %v269 = vld [vmem:[%s1 + $0x3ac] sm:$0xf]
  %v270 = vld [vmem:[%s1 + $0x3b0] sm:$0xf]
  %v271 = vld [vmem:[%s1 + $0x3b4] sm:$0xf]
  %v272 = vld [vmem:[%s1 + $0x3b8] sm:$0xf]
  %v273 = vld [vmem:[%s1 + $0x3bc] sm:$0xf]
  %v274 = vld [vmem:[%s1 + $0x3c0] sm:$0xf]
  %v275 = vld [vmem:[%s1 + $0x3c4] sm:$0xf]
  %v276 = vld [vmem:[%s1 + $0x3c8] sm:$0xf]
  %v277 = vld [vmem:[%s1 + $0x3cc] sm:$0xf]
  %v278 = vld [vmem:[%s1 + $0x3d0] sm:$0xf]
  %v279 = vld [vmem:[%s1 + $0x3d4] sm:$0xf]
  %v280 = vld [vmem:[%s1 + $0x3d8] sm:$0xf]
  %v281 = vld [vmem:[%s1 + $0x3dc] sm:$0xf]
  %v282 = vld [vmem:[%s1 + $0x3e0] sm:$0xf]
  %v283 = vld [vmem:[%s1 + $0x3e4] sm:$0xf]
  %v284 = vld [vmem:[%s1 + $0x3e8] sm:$0xf]
  %v285 = vld [vmem:[%s1 + $0x3ec] sm:$0xf]
  %v286 = vld [vmem:[%s1 + $0x3f0] sm:$0xf]
  %v287 = vld [vmem:[%s1 + $0x3f4] sm:$0xf]
  %v288 = vld [vmem:[%s1 + $0x3f8] sm:$0xf]
  %v289 = vld [vmem:[%s1 + $0x3fc] sm:$0xf]
  %v290 = vld [vmem:[%s1 + $0x400] sm:$0xf]
  %v291 = vld [vmem:[%s1 + $0x404] sm:$0xf]
  %v292 = vld [vmem:[%s1 + $0x408] sm:$0xf]
  %v293 = vld [vmem:[%s1 + $0x40c] sm:$0xf]
  %v294 = vld [vmem:[%s1 + $0x410] sm:$0xf]
  %v295 = vld [vmem:[%s1 + $0x414] sm:$0xf]
  %v296 = vld [vmem:[%s1 + $0x418] sm:$0xf]
  %v297 = vld [vmem:[%s1 + $0x41c] sm:$0xf]
  %v298 = vld [vmem:[%s1 + $0x420] sm:$0xf]
  %v299 = vld [vmem:[%s1 + $0x424] sm:$0xf]
  %v300 = vld [vmem:[%s1 + $0x428] sm:$0xf]
  %v301 = vld [vmem:[%s1 + $0x42c] sm:$0xf]
  %v302 = vld [vmem:[%s1 + $0x430] sm:$0xf]
  %v303 = vld [vmem:[%s1 + $0x434] sm:$0xf]
  %v304 = vld [vmem:[%s1 + $0x438] sm:$0xf]
  %v305 = vld [vmem:[%s1 + $0x43c] sm:$0xf]
  %v306 = vld [vmem:[%s1 + $0x440] sm:$0xf]
  %v307 = vld [vmem:[%s1 + $0x444] sm:$0xf]
  %v308 = vld [vmem:[%s1 + $0x448] sm:$0xf]
  %v309 = vld [vmem:[%s1 + $0x44c] sm:$0xf]
  %v310 = vld [vmem:[%s1 + $0x450] sm:$0xf]
  %v311 = vld [vmem:[%s1 + $0x454] sm:$0xf]
  %v312 = vld [vmem:[%s1 + $0x458] sm:$0xf]
  %v313 = vld [vmem:[%s1 + $0x45c] sm:$0xf]
  %v314 = vld [vmem:[%s1 + $0x460] sm:$0xf]
  %v315 = vld [vmem:[%s1 + $0x464] sm:$0xf]
  %v316 = vld [vmem:[%s1 + $0x468] sm:$0xf]
  %v317 = vld [vmem:[%s1 + $0x46c] sm:$0xf]
  %v318 = vld [vmem:[%s1 + $0x470] sm:$0xf]
  %v319 = vld [vmem:[%s1 + $0x474] sm:$0xf]
  %v320 = vld [vmem:[%s1 + $0x478] sm:$0xf]
  %v321 = vld [vmem:[%s1 + $0x47c] sm:$0xf]
  %v322 = vld [vmem:[%s1 + $0x480] sm:$0xf]
  %v323 = vld [vmem:[%s1 + $0x484] sm:$0xf]
  %v324 = vld [vmem:[%s1 + $0x488] sm:$0xf]
  %v325 = vld [vmem:[%s1 + $0x48c] sm:$0xf]
  %v326 = vld [vmem:[%s1 + $0x490] sm:$0xf]
  %v327 = vld [vmem:[%s1 + $0x494] sm:$0xf]
  %v328 = vld [vmem:[%s1 + $0x498] sm:$0xf]
  %v329 = vld [vmem:[%s1 + $0x49c] sm:$0xf]
  %v330 = vld [vmem:[%s1 + $0x4a0] sm:$0xf]
  %v331 = vld [vmem:[%s1 + $0x4a4] sm:$0xf]
  %v332 = vld [vmem:[%s1 + $0x4a8] sm:$0xf]
  %v333 = vld [vmem:[%s1 + $0x4ac] sm:$0xf]
  %v334 = vld [vmem:[%s1 + $0x4b0] sm:$0xf]
  %v335 = vld [vmem:[%s1 + $0x4b4] sm:$0xf]
  %v336 = vld [vmem:[%s1 + $0x4b8] sm:$0xf]
  %v337 = vld [vmem:[%s1 + $0x4bc] sm:$0xf]
  %v338 = vld [vmem:[%s1 + $0x4c0] sm:$0xf]
  %v339 = vld [vmem:[%s1 + $0x4c4] sm:$0xf]
  %v340 = vld [vmem:[%s1 + $0x4c8] sm:$0xf]
  %v341 = vld [vmem:[%s1 + $0x4cc] sm:$0xf]
  %v342 = vld [vmem:[%s1 + $0x4d0] sm:$0xf]
  %v343 = vld [vmem:[%s1 + $0x4d4] sm:$0xf]
  %v344 = vld [vmem:[%s1 + $0x4d8] sm:$0xf]
  %v345 = vld [vmem:[%s1 + $0x4dc] sm:$0xf]
  %v346 = vld [vmem:[%s1 + $0x4e0] sm:$0xf]
  %v347 = vld [vmem:[%s1 + $0x4e4] sm:$0xf]
  %v348 = vld [vmem:[%s1 + $0x4e8] sm:$0xf]
  %v349 = vld [vmem:[%s1 + $0x4ec] sm:$0xf]
  %v350 = vld [vmem:[%s1 + $0x4f0] sm:$0xf]
  %v351 = vld [vmem:[%s1 + $0x4f4] sm:$0xf]
  %v352 = vld [vmem:[%s1 + $0x4f8] sm:$0xf]
  %v353 = vld [vmem:[%s1 + $0x4fc] sm:$0xf]
  %v354 = vld [vmem:[%s1 + $0x500] sm:$0xf]
  %v355 = vld [vmem:[%s1 + $0x504] sm:$0xf]
  %v356 = vld [vmem:[%s1 + $0x508] sm:$0xf]
  %v357 = vld [vmem:[%s1 + $0x50c] sm:$0xf]
  %v358 = vld [vmem:[%s1 + $0x510] sm:$0xf]
  %v359 = vld [vmem:[%s1 + $0x514] sm:$0xf]
  %v360 = vld [vmem:[%s1 + $0x518] sm:$0xf]
  %v361 = vld [vmem:[%s1 + $0x51c] sm:$0xf]
  %v362 = vld [vmem:[%s1 + $0x520] sm:$0xf]
  %v363 = vld [vmem:[%s1 + $0x524] sm:$0xf]
  %v364 = vld [vmem:[%s1 + $0x528] sm:$0xf]
  %v365 = vld [vmem:[%s1 + $0x52c] sm:$0xf]
  %v366 = vld [vmem:[%s1 + $0x530] sm:$0xf]
  %v367 = vld [vmem:[%s1 + $0x534] sm:$0xf]
  %v368 = vld [vmem:[%s1 + $0x538] sm:$0xf]
  %v369 = vld [vmem:[%s1 + $0x53c] sm:$0xf]
  %v370 = vld [vmem:[%s1 + $0x540] sm:$0xf]
  %v371 = vld [vmem:[%s1 + $0x544] sm:$0xf]
  %v372 = vld [vmem:[%s1 + $0x548] sm:$0xf]
  %v373 = vld [vmem:[%s1 + $0x54c] sm:$0xf]
  %v374 = vld [vmem:[%s1 + $0x550] sm:$0xf]
  %v375 = vld [vmem:[%s1 + $0x554] sm:$0xf]
  %v376 = vld [vmem:[%s1 + $0x558] sm:$0xf]
  %v377 = vld [vmem:[%s1 + $0x55c] sm:$0xf]
  %v378 = vld [vmem:[%s1 + $0x560] sm:$0xf]
  %v379 = vld [vmem:[%s1 + $0x564] sm:$0xf]
  %v380 = vld [vmem:[%s1 + $0x568] sm:$0xf]
  %v381 = vld [vmem:[%s1 + $0x56c] sm:$0xf]
  %v382 = vld [vmem:[%s1 + $0x570] sm:$0xf]
  %v383 = vld [vmem:[%s1 + $0x574] sm:$0xf]
  %v384 = vld [vmem:[%s1 + $0x578] sm:$0xf]
  %v385 = vld [vmem:[%s1 + $0x57c] sm:$0xf]
  %v386 = vld [vmem:[%s1 + $0x580] sm:$0xf]
  %v387 = vld [vmem:[%s1 + $0x584] sm:$0xf]
  %v388 = vld [vmem:[%s1 + $0x588] sm:$0xf]
  %v389 = vld [vmem:[%s1 + $0x58c] sm:$0xf]
  %v390 = vld [vmem:[%s1 + $0x590] sm:$0xf]
  %v391 = vld [vmem:[%s1 + $0x594] sm:$0xf]
  %v392 = vld [vmem:[%s1 + $0x598] sm:$0xf]
  %v393 = vld [vmem:[%s1 + $0x59c] sm:$0xf]
  %v394 = vld [vmem:[%s1 + $0x5a0] sm:$0xf]
  %v395 = vld [vmem:[%s1 + $0x5a4] sm:$0xf]
  %v396 = vld [vmem:[%s1 + $0x5a8] sm:$0xf]
  %v397 = vld [vmem:[%s1 + $0x5ac] sm:$0xf]
  %v398 = vld [vmem:[%s1 + $0x5b0] sm:$0xf]
  %v399 = vld [vmem:[%s1 + $0x5b4] sm:$0xf]
  %v400 = vld [vmem:[%s1 + $0x5b8] sm:$0xf]
  %v401 = vld [vmem:[%s1 + $0x5bc] sm:$0xf]
  %v402 = vld [vmem:[%s1 + $0x5c0] sm:$0xf]
  %v403 = vld [vmem:[%s1 + $0x5c4] sm:$0xf]
  %v404 = vld [vmem:[%s1 + $0x5c8] sm:$0xf]
  %v405 = vld [vmem:[%s1 + $0x5cc] sm:$0xf]
  %v406 = vld [vmem:[%s1 + $0x5d0] sm:$0xf]
  %v407 = vld [vmem:[%s1 + $0x5d4] sm:$0xf]
  %v408 = vld [vmem:[%s1 + $0x5d8] sm:$0xf]
  %v409 = vld [vmem:[%s1 + $0x5dc] sm:$0xf]
  %v410 = vld [vmem:[%s1 + $0x5e0] sm:$0xf]
  %v411 = vld [vmem:[%s1 + $0x5e4] sm:$0xf]
  %v412 = vld [vmem:[%s1 + $0x5e8] sm:$0xf]
  %v413 = vld [vmem:[%s1 + $0x5ec] sm:$0xf]
  %v414 = vld [vmem:[%s1 + $0x5f0] sm:$0xf]
  %v415 = vld [vmem:[%s1 + $0x5f4] sm:$0xf]
  %v416 = vld [vmem:[%s1 + $0x5f8] sm:$0xf]
  %v417 = vld [vmem:[%s1 + $0x5fc] sm:$0xf]
  %v418 = vld [vmem:[%s1 + $0x600] sm:$0xf]
  %v419 = vld [vmem:[%s1 + $0x604] sm:$0xf]
  %v420 = vld [vmem:[%s1 + $0x608] sm:$0xf]
  %v421 = vld [vmem:[%s1 + $0x60c] sm:$0xf]
  %v422 = vld [vmem:[%s1 + $0x610] sm:$0xf]
  %v423 = vld [vmem:[%s1 + $0x614] sm:$0xf]
  %v424 = vld [vmem:[%s1 + $0x618] sm:$0xf]
  %v425 = vld [vmem:[%s1 + $0x61c] sm:$0xf]
  %v426 = vld [vmem:[%s1 + $0x620] sm:$0xf]
  %v427 = vld [vmem:[%s1 + $0x624] sm:$0xf]
  %v428 = vld [vmem:[%s1 + $0x628] sm:$0xf]
  %v429 = vld [vmem:[%s1 + $0x62c] sm:$0xf]
  %v430 = vld [vmem:[%s1 + $0x630] sm:$0xf]
  %v431 = vld [vmem:[%s1 + $0x634] sm:$0xf]
  %v432 = vld [vmem:[%s1 + $0x638] sm:$0xf]
  %v433 = vld [vmem:[%s1 + $0x63c] sm:$0xf]
  %v434 = vld [vmem:[%s2] sm:$0x1]
  %v436 = vperm.slane %v434, 0
  %v451 = vunpack.c.l.b16 %v21
  %v452 = vunpack.c.h.b16 %v21
  %v453 = vunpack.c.l.b16 %v22
  %v454 = vunpack.c.h.b16 %v22
  %v455 = vunpack.c.l.b16 %v23
  %v456 = vunpack.c.h.b16 %v23
  %v457 = vunpack.c.l.b16 %v24
  %v458 = vunpack.c.h.b16 %v24
  %v459 = vunpack.c.l.b16 %v25
  %v460 = vunpack.c.h.b16 %v25
  %v461 = vunpack.c.l.b16 %v26
  %v462 = vunpack.c.h.b16 %v26
  %v463 = vunpack.c.l.b16 %v27
  %v464 = vunpack.c.h.b16 %v27
  %v465 = vunpack.c.l.b16 %v28
  %v466 = vunpack.c.h.b16 %v28
  %v467 = vunpack.c.l.b16 %v29
  %v468 = vunpack.c.h.b16 %v29
  %v469 = vunpack.c.l.b16 %v30
  %v470 = vunpack.c.h.b16 %v30
  %v471 = vunpack.c.l.b16 %v31
  %v472 = vunpack.c.h.b16 %v31
  %v473 = vunpack.c.l.b16 %v32
  %v474 = vunpack.c.h.b16 %v32
  %v475 = vunpack.c.l.b16 %v33
  %v476 = vpack.c.b16 %v451, %v451
  %v477 = vpack.c.b16 %v452, %v452
  %v478 = vpack.c.b16 %v453, %v453
  %v479 = vpack.c.b16 %v454, %v454
  %v480 = vpack.c.b16 %v455, %v455
  %v481 = vpack.c.b16 %v456, %v456
  %v482 = vpack.c.b16 %v457, %v457
  %v483 = vpack.c.b16 %v458, %v458
  %v484 = vpack.c.b16 %v459, %v459
  %v485 = vpack.c.b16 %v460, %v460
  %v486 = vpack.c.b16 %v461, %v461
  %v487 = vpack.c.b16 %v462, %v462
  %v488 = vpack.c.b16 %v463, %v463
  %v489 = vpack.c.b16 %v464, %v464
  %v490 = vpack.c.b16 %v465, %v465
  %v491 = vpack.c.b16 %v466, %v466
  %v492 = vpack.c.b16 %v467, %v467
  %v493 = vpack.c.b16 %v468, %v468
  %v494 = vpack.c.b16 %v469, %v469
  %v495 = vpack.c.b16 %v470, %v470
  %v496 = vpack.c.b16 %v471, %v471
  %v497 = vpack.c.b16 %v472, %v472
  %v498 = vpack.c.b16 %v473, %v473
  %v499 = vpack.c.b16 %v474, %v474
  %v500 = vpack.c.b16 %v475, %v475
  %v926 = vunpack.c.l.b16 %v34
  %v927 = vunpack.c.l.b16 %v35
  %v928 = vunpack.c.l.b16 %v36
  %v929 = vunpack.c.l.b16 %v37
  %v930 = vunpack.c.l.b16 %v38
  %v931 = vunpack.c.l.b16 %v39
  %v932 = vunpack.c.l.b16 %v40
  %v933 = vunpack.c.l.b16 %v41
  %v934 = vunpack.c.l.b16 %v42
  %v935 = vunpack.c.l.b16 %v43
  %v936 = vunpack.c.l.b16 %v44
  %v937 = vunpack.c.l.b16 %v45
  %v938 = vunpack.c.l.b16 %v46
  %v939 = vunpack.c.l.b16 %v47
  %v940 = vunpack.c.l.b16 %v48
  %v941 = vunpack.c.l.b16 %v49
  %v942 = vunpack.c.l.b16 %v50
  %v943 = vunpack.c.l.b16 %v51
  %v944 = vunpack.c.l.b16 %v52
  %v945 = vunpack.c.l.b16 %v53
  %v946 = vunpack.c.l.b16 %v54
  %v947 = vunpack.c.l.b16 %v55
  %v948 = vunpack.c.l.b16 %v56
  %v949 = vunpack.c.l.b16 %v57
  %v950 = vunpack.c.l.b16 %v58
  %v951 = vunpack.c.l.b16 %v59
  %v952 = vunpack.c.l.b16 %v60
  %v953 = vunpack.c.l.b16 %v61
  %v954 = vunpack.c.l.b16 %v62
  %v955 = vunpack.c.l.b16 %v63
  %v956 = vunpack.c.l.b16 %v64
  %v957 = vunpack.c.l.b16 %v65
  %v958 = vunpack.c.l.b16 %v66
  %v959 = vunpack.c.l.b16 %v67
  %v960 = vunpack.c.l.b16 %v68
  %v961 = vunpack.c.l.b16 %v69
  %v962 = vunpack.c.l.b16 %v70
  %v963 = vunpack.c.l.b16 %v71
  %v964 = vunpack.c.l.b16 %v72
  %v965 = vunpack.c.l.b16 %v73
  %v966 = vunpack.c.l.b16 %v74
  %v967 = vunpack.c.l.b16 %v75
  %v968 = vunpack.c.l.b16 %v76
  %v969 = vunpack.c.l.b16 %v77
  %v970 = vunpack.c.l.b16 %v78
  %v971 = vunpack.c.l.b16 %v79
  %v972 = vunpack.c.l.b16 %v80
  %v973 = vunpack.c.l.b16 %v81
  %v974 = vunpack.c.l.b16 %v82
  %v975 = vunpack.c.l.b16 %v83
  %v976 = vunpack.c.l.b16 %v84
  %v977 = vunpack.c.l.b16 %v85
  %v978 = vunpack.c.l.b16 %v86
  %v979 = vunpack.c.l.b16 %v87
  %v980 = vunpack.c.l.b16 %v88
  %v981 = vunpack.c.l.b16 %v89
  %v982 = vunpack.c.l.b16 %v90
  %v983 = vunpack.c.l.b16 %v91
  %v984 = vunpack.c.l.b16 %v92
  %v985 = vunpack.c.l.b16 %v93
  %v986 = vunpack.c.l.b16 %v94
  %v987 = vunpack.c.l.b16 %v95
  %v988 = vunpack.c.l.b16 %v96
  %v989 = vunpack.c.l.b16 %v97
  %v990 = vunpack.c.l.b16 %v98
  %v991 = vunpack.c.l.b16 %v99
  %v992 = vunpack.c.l.b16 %v100
  %v993 = vunpack.c.l.b16 %v101
  %v994 = vunpack.c.l.b16 %v102
  %v995 = vunpack.c.l.b16 %v103
  %v996 = vunpack.c.l.b16 %v104
  %v997 = vunpack.c.l.b16 %v105
  %v998 = vunpack.c.l.b16 %v106
  %v999 = vunpack.c.l.b16 %v107
  %v1000 = vunpack.c.l.b16 %v108
  %v1001 = vunpack.c.l.b16 %v109
  %v1002 = vunpack.c.l.b16 %v110
  %v1003 = vunpack.c.l.b16 %v111
  %v1004 = vunpack.c.l.b16 %v112
  %v1005 = vunpack.c.l.b16 %v113
  %v1006 = vunpack.c.l.b16 %v114
  %v1007 = vunpack.c.l.b16 %v115
  %v1008 = vunpack.c.l.b16 %v116
  %v1009 = vunpack.c.l.b16 %v117
  %v1010 = vunpack.c.l.b16 %v118
  %v1011 = vunpack.c.l.b16 %v119
  %v1012 = vunpack.c.l.b16 %v120
  %v1013 = vunpack.c.l.b16 %v121
  %v1014 = vunpack.c.l.b16 %v122
  %v1015 = vunpack.c.l.b16 %v123
  %v1016 = vunpack.c.l.b16 %v124
  %v1017 = vunpack.c.l.b16 %v125
  %v1018 = vunpack.c.l.b16 %v126
  %v1019 = vunpack.c.l.b16 %v127
  %v1020 = vunpack.c.l.b16 %v128
  %v1021 = vunpack.c.l.b16 %v129
  %v1022 = vunpack.c.l.b16 %v130
  %v1023 = vunpack.c.l.b16 %v131
  %v1024 = vunpack.c.l.b16 %v132
  %v1025 = vunpack.c.l.b16 %v133
  %v1026 = vunpack.c.l.b16 %v134
  %v1027 = vunpack.c.l.b16 %v135
  %v1028 = vunpack.c.l.b16 %v136
  %v1029 = vunpack.c.l.b16 %v137
  %v1030 = vunpack.c.l.b16 %v138
  %v1031 = vunpack.c.l.b16 %v139
  %v1032 = vunpack.c.l.b16 %v140
  %v1033 = vunpack.c.l.b16 %v141
  %v1034 = vunpack.c.l.b16 %v142
  %v1035 = vunpack.c.l.b16 %v143
  %v1036 = vunpack.c.l.b16 %v144
  %v1037 = vunpack.c.l.b16 %v145
  %v1038 = vunpack.c.l.b16 %v146
  %v1039 = vunpack.c.l.b16 %v147
  %v1040 = vunpack.c.l.b16 %v148
  %v1041 = vunpack.c.l.b16 %v149
  %v1042 = vunpack.c.l.b16 %v150
  %v1043 = vunpack.c.l.b16 %v151
  %v1044 = vunpack.c.l.b16 %v152
  %v1045 = vunpack.c.l.b16 %v153
  %v1046 = vunpack.c.l.b16 %v154
  %v1047 = vunpack.c.l.b16 %v155
  %v1048 = vunpack.c.l.b16 %v156
  %v1049 = vunpack.c.l.b16 %v157
  %v1050 = vunpack.c.l.b16 %v158
  %v1051 = vunpack.c.l.b16 %v159
  %v1052 = vunpack.c.l.b16 %v160
  %v1053 = vunpack.c.l.b16 %v161
  %v1054 = vunpack.c.l.b16 %v162
  %v1055 = vunpack.c.l.b16 %v163
  %v1056 = vunpack.c.l.b16 %v164
  %v1057 = vunpack.c.l.b16 %v165
  %v1058 = vunpack.c.l.b16 %v166
  %v1059 = vunpack.c.l.b16 %v167
  %v1060 = vunpack.c.l.b16 %v168
  %v1061 = vunpack.c.l.b16 %v169
  %v1062 = vunpack.c.l.b16 %v170
  %v1063 = vunpack.c.l.b16 %v171
  %v1064 = vunpack.c.l.b16 %v172
  %v1065 = vunpack.c.l.b16 %v173
  %v1066 = vunpack.c.l.b16 %v174
  %v1067 = vunpack.c.l.b16 %v175
  %v1068 = vunpack.c.l.b16 %v176
  %v1069 = vunpack.c.l.b16 %v177
  %v1070 = vunpack.c.l.b16 %v178
  %v1071 = vunpack.c.l.b16 %v179
  %v1072 = vunpack.c.l.b16 %v180
  %v1073 = vunpack.c.l.b16 %v181
  %v1074 = vunpack.c.l.b16 %v182
  %v1075 = vunpack.c.l.b16 %v183
  %v1076 = vunpack.c.l.b16 %v184
  %v1077 = vunpack.c.l.b16 %v185
  %v1078 = vunpack.c.l.b16 %v186
  %v1079 = vunpack.c.l.b16 %v187
  %v1080 = vunpack.c.l.b16 %v188
  %v1081 = vunpack.c.l.b16 %v189
  %v1082 = vunpack.c.l.b16 %v190
  %v1083 = vunpack.c.l.b16 %v191
  %v1084 = vunpack.c.l.b16 %v192
  %v1085 = vunpack.c.l.b16 %v193
  %v1086 = vunpack.c.l.b16 %v194
  %v1087 = vunpack.c.l.b16 %v195
  %v1088 = vunpack.c.l.b16 %v196
  %v1089 = vunpack.c.l.b16 %v197
  %v1090 = vunpack.c.l.b16 %v198
  %v1091 = vunpack.c.l.b16 %v199
  %v1092 = vunpack.c.l.b16 %v200
  %v1093 = vunpack.c.l.b16 %v201
  %v1094 = vunpack.c.l.b16 %v202
  %v1095 = vunpack.c.l.b16 %v203
  %v1096 = vunpack.c.l.b16 %v204
  %v1097 = vunpack.c.l.b16 %v205
  %v1098 = vunpack.c.l.b16 %v206
  %v1099 = vunpack.c.l.b16 %v207
  %v1100 = vunpack.c.l.b16 %v208
  %v1101 = vunpack.c.l.b16 %v209
  %v1102 = vunpack.c.l.b16 %v210
  %v1103 = vunpack.c.l.b16 %v211
  %v1104 = vunpack.c.l.b16 %v212
  %v1105 = vunpack.c.l.b16 %v213
  %v1106 = vunpack.c.l.b16 %v214
  %v1107 = vunpack.c.l.b16 %v215
  %v1108 = vunpack.c.l.b16 %v216
  %v1109 = vunpack.c.l.b16 %v217
  %v1110 = vunpack.c.l.b16 %v218
  %v1111 = vunpack.c.l.b16 %v219
  %v1112 = vunpack.c.l.b16 %v220
  %v1113 = vunpack.c.l.b16 %v221
  %v1114 = vunpack.c.l.b16 %v222
  %v1115 = vunpack.c.l.b16 %v223
  %v1116 = vunpack.c.l.b16 %v224
  %v1117 = vunpack.c.l.b16 %v225
  %v1118 = vunpack.c.l.b16 %v226
  %v1119 = vunpack.c.l.b16 %v227
  %v1120 = vunpack.c.l.b16 %v228
  %v1121 = vunpack.c.l.b16 %v229
  %v1122 = vunpack.c.l.b16 %v230
  %v1123 = vunpack.c.l.b16 %v231
  %v1124 = vunpack.c.l.b16 %v232
  %v1125 = vunpack.c.l.b16 %v233
  %v1126 = vunpack.c.l.b16 %v234
  %v1127 = vunpack.c.l.b16 %v235
  %v1128 = vunpack.c.l.b16 %v236
  %v1129 = vunpack.c.l.b16 %v237
  %v1130 = vunpack.c.l.b16 %v238
  %v1131 = vunpack.c.l.b16 %v239
  %v1132 = vunpack.c.l.b16 %v240
  %v1133 = vunpack.c.l.b16 %v241
  %v1134 = vunpack.c.l.b16 %v242
  %v1135 = vunpack.c.l.b16 %v243
  %v1136 = vunpack.c.l.b16 %v244
  %v1137 = vunpack.c.l.b16 %v245
  %v1138 = vunpack.c.l.b16 %v246
  %v1139 = vunpack.c.l.b16 %v247
  %v1140 = vunpack.c.l.b16 %v248
  %v1141 = vunpack.c.l.b16 %v249
  %v1142 = vunpack.c.l.b16 %v250
  %v1143 = vunpack.c.l.b16 %v251
  %v1144 = vunpack.c.l.b16 %v252
  %v1145 = vunpack.c.l.b16 %v253
  %v1146 = vunpack.c.l.b16 %v254
  %v1147 = vunpack.c.l.b16 %v255
  %v1148 = vunpack.c.l.b16 %v256
  %v1149 = vunpack.c.l.b16 %v257
  %v1150 = vunpack.c.l.b16 %v258
  %v1151 = vunpack.c.l.b16 %v259
  %v1152 = vunpack.c.l.b16 %v260
  %v1153 = vunpack.c.l.b16 %v261
  %v1154 = vunpack.c.l.b16 %v262
  %v1155 = vunpack.c.l.b16 %v263
  %v1156 = vunpack.c.l.b16 %v264
  %v1157 = vunpack.c.l.b16 %v265
  %v1158 = vunpack.c.l.b16 %v266
  %v1159 = vunpack.c.l.b16 %v267
  %v1160 = vunpack.c.l.b16 %v268
  %v1161 = vunpack.c.l.b16 %v269
  %v1162 = vunpack.c.l.b16 %v270
  %v1163 = vunpack.c.l.b16 %v271
  %v1164 = vunpack.c.l.b16 %v272
  %v1165 = vunpack.c.l.b16 %v273
  %v1166 = vunpack.c.l.b16 %v274
  %v1167 = vunpack.c.l.b16 %v275
  %v1168 = vunpack.c.l.b16 %v276
  %v1169 = vunpack.c.l.b16 %v277
  %v1170 = vunpack.c.l.b16 %v278
  %v1171 = vunpack.c.l.b16 %v279
  %v1172 = vunpack.c.l.b16 %v280
  %v1173 = vunpack.c.l.b16 %v281
  %v1174 = vunpack.c.l.b16 %v282
  %v1175 = vunpack.c.l.b16 %v283
  %v1176 = vunpack.c.l.b16 %v284
  %v1177 = vunpack.c.l.b16 %v285
  %v1178 = vunpack.c.l.b16 %v286
  %v1179 = vunpack.c.l.b16 %v287
  %v1180 = vunpack.c.l.b16 %v288
  %v1181 = vunpack.c.l.b16 %v289
  %v1182 = vunpack.c.l.b16 %v290
  %v1183 = vunpack.c.l.b16 %v291
  %v1184 = vunpack.c.l.b16 %v292
  %v1185 = vunpack.c.l.b16 %v293
  %v1186 = vunpack.c.l.b16 %v294
  %v1187 = vunpack.c.l.b16 %v295
  %v1188 = vunpack.c.l.b16 %v296
  %v1189 = vunpack.c.l.b16 %v297
  %v1190 = vunpack.c.l.b16 %v298
  %v1191 = vunpack.c.l.b16 %v299
  %v1192 = vunpack.c.l.b16 %v300
  %v1193 = vunpack.c.l.b16 %v301
  %v1194 = vunpack.c.l.b16 %v302
  %v1195 = vunpack.c.l.b16 %v303
  %v1196 = vunpack.c.l.b16 %v304
  %v1197 = vunpack.c.l.b16 %v305
  %v1198 = vunpack.c.l.b16 %v306
  %v1199 = vunpack.c.l.b16 %v307
  %v1200 = vunpack.c.l.b16 %v308
  %v1201 = vunpack.c.l.b16 %v309
  %v1202 = vunpack.c.l.b16 %v310
  %v1203 = vunpack.c.l.b16 %v311
  %v1204 = vunpack.c.l.b16 %v312
  %v1205 = vunpack.c.l.b16 %v313
  %v1206 = vunpack.c.l.b16 %v314
  %v1207 = vunpack.c.l.b16 %v315
  %v1208 = vunpack.c.l.b16 %v316
  %v1209 = vunpack.c.l.b16 %v317
  %v1210 = vunpack.c.l.b16 %v318
  %v1211 = vunpack.c.l.b16 %v319
  %v1212 = vunpack.c.l.b16 %v320
  %v1213 = vunpack.c.l.b16 %v321
  %v1214 = vunpack.c.l.b16 %v322
  %v1215 = vunpack.c.l.b16 %v323
  %v1216 = vunpack.c.l.b16 %v324
  %v1217 = vunpack.c.l.b16 %v325
  %v1218 = vunpack.c.l.b16 %v326
  %v1219 = vunpack.c.l.b16 %v327
  %v1220 = vunpack.c.l.b16 %v328
  %v1221 = vunpack.c.l.b16 %v329
  %v1222 = vunpack.c.l.b16 %v330
  %v1223 = vunpack.c.l.b16 %v331
  %v1224 = vunpack.c.l.b16 %v332
  %v1225 = vunpack.c.l.b16 %v333
  %v1226 = vunpack.c.l.b16 %v334
  %v1227 = vunpack.c.l.b16 %v335
  %v1228 = vunpack.c.l.b16 %v336
  %v1229 = vunpack.c.l.b16 %v337
  %v1230 = vunpack.c.l.b16 %v338
  %v1231 = vunpack.c.l.b16 %v339
  %v1232 = vunpack.c.l.b16 %v340
  %v1233 = vunpack.c.l.b16 %v341
  %v1234 = vunpack.c.l.b16 %v342
  %v1235 = vunpack.c.l.b16 %v343
  %v1236 = vunpack.c.l.b16 %v344
  %v1237 = vunpack.c.l.b16 %v345
  %v1238 = vunpack.c.l.b16 %v346
  %v1239 = vunpack.c.l.b16 %v347
  %v1240 = vunpack.c.l.b16 %v348
  %v1241 = vunpack.c.l.b16 %v349
  %v1242 = vunpack.c.l.b16 %v350
  %v1243 = vunpack.c.l.b16 %v351
  %v1244 = vunpack.c.l.b16 %v352
  %v1245 = vunpack.c.l.b16 %v353
  %v1246 = vunpack.c.l.b16 %v354
  %v1247 = vunpack.c.l.b16 %v355
  %v1248 = vunpack.c.l.b16 %v356
  %v1249 = vunpack.c.l.b16 %v357
  %v1250 = vunpack.c.l.b16 %v358
  %v1251 = vunpack.c.l.b16 %v359
  %v1252 = vunpack.c.l.b16 %v360
  %v1253 = vunpack.c.l.b16 %v361
  %v1254 = vunpack.c.l.b16 %v362
  %v1255 = vunpack.c.l.b16 %v363
  %v1256 = vunpack.c.l.b16 %v364
  %v1257 = vunpack.c.l.b16 %v365
  %v1258 = vunpack.c.l.b16 %v366
  %v1259 = vunpack.c.l.b16 %v367
  %v1260 = vunpack.c.l.b16 %v368
  %v1261 = vunpack.c.l.b16 %v369
  %v1262 = vunpack.c.l.b16 %v370
  %v1263 = vunpack.c.l.b16 %v371
  %v1264 = vunpack.c.l.b16 %v372
  %v1265 = vunpack.c.l.b16 %v373
  %v1266 = vunpack.c.l.b16 %v374
  %v1267 = vunpack.c.l.b16 %v375
  %v1268 = vunpack.c.l.b16 %v376
  %v1269 = vunpack.c.l.b16 %v377
  %v1270 = vunpack.c.l.b16 %v378
  %v1271 = vunpack.c.l.b16 %v379
  %v1272 = vunpack.c.l.b16 %v380
  %v1273 = vunpack.c.l.b16 %v381
  %v1274 = vunpack.c.l.b16 %v382
  %v1275 = vunpack.c.l.b16 %v383
  %v1276 = vunpack.c.l.b16 %v384
  %v1277 = vunpack.c.l.b16 %v385
  %v1278 = vunpack.c.l.b16 %v386
  %v1279 = vunpack.c.l.b16 %v387
  %v1280 = vunpack.c.l.b16 %v388
  %v1281 = vunpack.c.l.b16 %v389
  %v1282 = vunpack.c.l.b16 %v390
  %v1283 = vunpack.c.l.b16 %v391
  %v1284 = vunpack.c.l.b16 %v392
  %v1285 = vunpack.c.l.b16 %v393
  %v1286 = vunpack.c.l.b16 %v394
  %v1287 = vunpack.c.l.b16 %v395
  %v1288 = vunpack.c.l.b16 %v396
  %v1289 = vunpack.c.l.b16 %v397
  %v1290 = vunpack.c.l.b16 %v398
  %v1291 = vunpack.c.l.b16 %v399
  %v1292 = vunpack.c.l.b16 %v400
  %v1293 = vunpack.c.l.b16 %v401
  %v1294 = vunpack.c.l.b16 %v402
  %v1295 = vunpack.c.l.b16 %v403
  %v1296 = vunpack.c.l.b16 %v404
  %v1297 = vunpack.c.l.b16 %v405
  %v1298 = vunpack.c.l.b16 %v406
  %v1299 = vunpack.c.l.b16 %v407
  %v1300 = vunpack.c.l.b16 %v408
  %v1301 = vunpack.c.l.b16 %v409
  %v1302 = vunpack.c.l.b16 %v410
  %v1303 = vunpack.c.l.b16 %v411
  %v1304 = vunpack.c.l.b16 %v412
  %v1305 = vunpack.c.l.b16 %v413
  %v1306 = vunpack.c.l.b16 %v414
  %v1307 = vunpack.c.l.b16 %v415
  %v1308 = vunpack.c.l.b16 %v416
  %v1309 = vunpack.c.l.b16 %v417
  %v1310 = vunpack.c.l.b16 %v418
  %v1311 = vunpack.c.l.b16 %v419
  %v1312 = vunpack.c.l.b16 %v420
  %v1313 = vunpack.c.l.b16 %v421
  %v1314 = vunpack.c.l.b16 %v422
  %v1315 = vunpack.c.l.b16 %v423
  %v1316 = vunpack.c.l.b16 %v424
  %v1317 = vunpack.c.l.b16 %v425
  %v1318 = vunpack.c.l.b16 %v426
  %v1319 = vunpack.c.l.b16 %v427
  %v1320 = vunpack.c.l.b16 %v428
  %v1321 = vunpack.c.l.b16 %v429
  %v1322 = vunpack.c.l.b16 %v430
  %v1323 = vunpack.c.l.b16 %v431
  %v1324 = vunpack.c.l.b16 %v432
  %v1325 = vunpack.c.l.b16 %v433
  %v1326 = vpack.c.b16 %v927, %v926
  %v1327 = vpack.c.b16 %v929, %v928
  %v1328 = vpack.c.b16 %v931, %v930
  %v1329 = vpack.c.b16 %v933, %v932
  %v1330 = vpack.c.b16 %v935, %v934
  %v1331 = vpack.c.b16 %v937, %v936
  %v1332 = vpack.c.b16 %v939, %v938
  %v1333 = vpack.c.b16 %v941, %v940
  %v1334 = vpack.c.b16 %v943, %v942
  %v1335 = vpack.c.b16 %v945, %v944
  %v1336 = vpack.c.b16 %v947, %v946
  %v1337 = vpack.c.b16 %v949, %v948
  %v1338 = vpack.c.b16 %v951, %v950
  %v1339 = vpack.c.b16 %v953, %v952
  %v1340 = vpack.c.b16 %v955, %v954
  %v1341 = vpack.c.b16 %v957, %v956
  %v1342 = vpack.c.b16 %v959, %v958
  %v1343 = vpack.c.b16 %v961, %v960
  %v1344 = vpack.c.b16 %v963, %v962
  %v1345 = vpack.c.b16 %v965, %v964
  %v1346 = vpack.c.b16 %v967, %v966
  %v1347 = vpack.c.b16 %v969, %v968
  %v1348 = vpack.c.b16 %v971, %v970
  %v1349 = vpack.c.b16 %v973, %v972
  %v1350 = vpack.c.b16 %v975, %v974
  %v1351 = vpack.c.b16 %v977, %v976
  %v1352 = vpack.c.b16 %v979, %v978
  %v1353 = vpack.c.b16 %v981, %v980
  %v1354 = vpack.c.b16 %v983, %v982
  %v1355 = vpack.c.b16 %v985, %v984
  %v1356 = vpack.c.b16 %v987, %v986
  %v1357 = vpack.c.b16 %v989, %v988
  %v1358 = vpack.c.b16 %v991, %v990
  %v1359 = vpack.c.b16 %v993, %v992
  %v1360 = vpack.c.b16 %v995, %v994
  %v1361 = vpack.c.b16 %v997, %v996
  %v1362 = vpack.c.b16 %v999, %v998
  %v1363 = vpack.c.b16 %v1001, %v1000
  %v1364 = vpack.c.b16 %v1003, %v1002
  %v1365 = vpack.c.b16 %v1005, %v1004
  %v1366 = vpack.c.b16 %v1007, %v1006
  %v1367 = vpack.c.b16 %v1009, %v1008
  %v1368 = vpack.c.b16 %v1011, %v1010
  %v1369 = vpack.c.b16 %v1013, %v1012
  %v1370 = vpack.c.b16 %v1015, %v1014
  %v1371 = vpack.c.b16 %v1017, %v1016
  %v1372 = vpack.c.b16 %v1019, %v1018
  %v1373 = vpack.c.b16 %v1021, %v1020
  %v1374 = vpack.c.b16 %v1023, %v1022
  %v1375 = vpack.c.b16 %v1025, %v1024
  %v1376 = vpack.c.b16 %v1027, %v1026
  %v1377 = vpack.c.b16 %v1029, %v1028
  %v1378 = vpack.c.b16 %v1031, %v1030
  %v1379 = vpack.c.b16 %v1033, %v1032
  %v1380 = vpack.c.b16 %v1035, %v1034
  %v1381 = vpack.c.b16 %v1037, %v1036
  %v1382 = vpack.c.b16 %v1039, %v1038
  %v1383 = vpack.c.b16 %v1041, %v1040
  %v1384 = vpack.c.b16 %v1043, %v1042
  %v1385 = vpack.c.b16 %v1045, %v1044
  %v1386 = vpack.c.b16 %v1047, %v1046
  %v1387 = vpack.c.b16 %v1049, %v1048
  %v1388 = vpack.c.b16 %v1051, %v1050
  %v1389 = vpack.c.b16 %v1053, %v1052
  %v1390 = vpack.c.b16 %v1055, %v1054
  %v1391 = vpack.c.b16 %v1057, %v1056
  %v1392 = vpack.c.b16 %v1059, %v1058
  %v1393 = vpack.c.b16 %v1061, %v1060
  %v1394 = vpack.c.b16 %v1063, %v1062
  %v1395 = vpack.c.b16 %v1065, %v1064
  %v1396 = vpack.c.b16 %v1067, %v1066
  %v1397 = vpack.c.b16 %v1069, %v1068
  %v1398 = vpack.c.b16 %v1071, %v1070
  %v1399 = vpack.c.b16 %v1073, %v1072
  %v1400 = vpack.c.b16 %v1075, %v1074
  %v1401 = vpack.c.b16 %v1077, %v1076
  %v1402 = vpack.c.b16 %v1079, %v1078
  %v1403 = vpack.c.b16 %v1081, %v1080
  %v1404 = vpack.c.b16 %v1083, %v1082
  %v1405 = vpack.c.b16 %v1085, %v1084
  %v1406 = vpack.c.b16 %v1087, %v1086
  %v1407 = vpack.c.b16 %v1089, %v1088
  %v1408 = vpack.c.b16 %v1091, %v1090
  %v1409 = vpack.c.b16 %v1093, %v1092
  %v1410 = vpack.c.b16 %v1095, %v1094
  %v1411 = vpack.c.b16 %v1097, %v1096
  %v1412 = vpack.c.b16 %v1099, %v1098
  %v1413 = vpack.c.b16 %v1101, %v1100
  %v1414 = vpack.c.b16 %v1103, %v1102
  %v1415 = vpack.c.b16 %v1105, %v1104
  %v1416 = vpack.c.b16 %v1107, %v1106
  %v1417 = vpack.c.b16 %v1109, %v1108
  %v1418 = vpack.c.b16 %v1111, %v1110
  %v1419 = vpack.c.b16 %v1113, %v1112
  %v1420 = vpack.c.b16 %v1115, %v1114
  %v1421 = vpack.c.b16 %v1117, %v1116
  %v1422 = vpack.c.b16 %v1119, %v1118
  %v1423 = vpack.c.b16 %v1121, %v1120
  %v1424 = vpack.c.b16 %v1123, %v1122
  %v1425 = vpack.c.b16 %v1125, %v1124
  %v1426 = vpack.c.b16 %v1127, %v1126
  %v1427 = vpack.c.b16 %v1129, %v1128
  %v1428 = vpack.c.b16 %v1131, %v1130
  %v1429 = vpack.c.b16 %v1133, %v1132
  %v1430 = vpack.c.b16 %v1135, %v1134
  %v1431 = vpack.c.b16 %v1137, %v1136
  %v1432 = vpack.c.b16 %v1139, %v1138
  %v1433 = vpack.c.b16 %v1141, %v1140
  %v1434 = vpack.c.b16 %v1143, %v1142
  %v1435 = vpack.c.b16 %v1145, %v1144
  %v1436 = vpack.c.b16 %v1147, %v1146
  %v1437 = vpack.c.b16 %v1149, %v1148
  %v1438 = vpack.c.b16 %v1151, %v1150
  %v1439 = vpack.c.b16 %v1153, %v1152
  %v1440 = vpack.c.b16 %v1155, %v1154
  %v1441 = vpack.c.b16 %v1157, %v1156
  %v1442 = vpack.c.b16 %v1159, %v1158
  %v1443 = vpack.c.b16 %v1161, %v1160
  %v1444 = vpack.c.b16 %v1163, %v1162
  %v1445 = vpack.c.b16 %v1165, %v1164
  %v1446 = vpack.c.b16 %v1167, %v1166
  %v1447 = vpack.c.b16 %v1169, %v1168
  %v1448 = vpack.c.b16 %v1171, %v1170
  %v1449 = vpack.c.b16 %v1173, %v1172
  %v1450 = vpack.c.b16 %v1175, %v1174
  %v1451 = vpack.c.b16 %v1177, %v1176
  %v1452 = vpack.c.b16 %v1179, %v1178
  %v1453 = vpack.c.b16 %v1181, %v1180
  %v1454 = vpack.c.b16 %v1183, %v1182
  %v1455 = vpack.c.b16 %v1185, %v1184
  %v1456 = vpack.c.b16 %v1187, %v1186
  %v1457 = vpack.c.b16 %v1189, %v1188
  %v1458 = vpack.c.b16 %v1191, %v1190
  %v1459 = vpack.c.b16 %v1193, %v1192
  %v1460 = vpack.c.b16 %v1195, %v1194
  %v1461 = vpack.c.b16 %v1197, %v1196
  %v1462 = vpack.c.b16 %v1199, %v1198
  %v1463 = vpack.c.b16 %v1201, %v1200
  %v1464 = vpack.c.b16 %v1203, %v1202
  %v1465 = vpack.c.b16 %v1205, %v1204
  %v1466 = vpack.c.b16 %v1207, %v1206
  %v1467 = vpack.c.b16 %v1209, %v1208
  %v1468 = vpack.c.b16 %v1211, %v1210
  %v1469 = vpack.c.b16 %v1213, %v1212
  %v1470 = vpack.c.b16 %v1215, %v1214
  %v1471 = vpack.c.b16 %v1217, %v1216
  %v1472 = vpack.c.b16 %v1219, %v1218
  %v1473 = vpack.c.b16 %v1221, %v1220
  %v1474 = vpack.c.b16 %v1223, %v1222
  %v1475 = vpack.c.b16 %v1225, %v1224
  %v1476 = vpack.c.b16 %v1227, %v1226
  %v1477 = vpack.c.b16 %v1229, %v1228
  %v1478 = vpack.c.b16 %v1231, %v1230
  %v1479 = vpack.c.b16 %v1233, %v1232
  %v1480 = vpack.c.b16 %v1235, %v1234
  %v1481 = vpack.c.b16 %v1237, %v1236
  %v1482 = vpack.c.b16 %v1239, %v1238
  %v1483 = vpack.c.b16 %v1241, %v1240
  %v1484 = vpack.c.b16 %v1243, %v1242
  %v1485 = vpack.c.b16 %v1245, %v1244
  %v1486 = vpack.c.b16 %v1247, %v1246
  %v1487 = vpack.c.b16 %v1249, %v1248
  %v1488 = vpack.c.b16 %v1251, %v1250
  %v1489 = vpack.c.b16 %v1253, %v1252
  %v1490 = vpack.c.b16 %v1255, %v1254
  %v1491 = vpack.c.b16 %v1257, %v1256
  %v1492 = vpack.c.b16 %v1259, %v1258
  %v1493 = vpack.c.b16 %v1261, %v1260
  %v1494 = vpack.c.b16 %v1263, %v1262
  %v1495 = vpack.c.b16 %v1265, %v1264
  %v1496 = vpack.c.b16 %v1267, %v1266
  %v1497 = vpack.c.b16 %v1269, %v1268
  %v1498 = vpack.c.b16 %v1271, %v1270
  %v1499 = vpack.c.b16 %v1273, %v1272
  %v1500 = vpack.c.b16 %v1275, %v1274
  %v1501 = vpack.c.b16 %v1277, %v1276
  %v1502 = vpack.c.b16 %v1279, %v1278
  %v1503 = vpack.c.b16 %v1281, %v1280
  %v1504 = vpack.c.b16 %v1283, %v1282
  %v1505 = vpack.c.b16 %v1285, %v1284
  %v1506 = vpack.c.b16 %v1287, %v1286
  %v1507 = vpack.c.b16 %v1289, %v1288
  %v1508 = vpack.c.b16 %v1291, %v1290
  %v1509 = vpack.c.b16 %v1293, %v1292
  %v1510 = vpack.c.b16 %v1295, %v1294
  %v1511 = vpack.c.b16 %v1297, %v1296
  %v1512 = vpack.c.b16 %v1299, %v1298
  %v1513 = vpack.c.b16 %v1301, %v1300
  %v1514 = vpack.c.b16 %v1303, %v1302
  %v1515 = vpack.c.b16 %v1305, %v1304
  %v1516 = vpack.c.b16 %v1307, %v1306
  %v1517 = vpack.c.b16 %v1309, %v1308
  %v1518 = vpack.c.b16 %v1311, %v1310
  %v1519 = vpack.c.b16 %v1313, %v1312
  %v1520 = vpack.c.b16 %v1315, %v1314
  %v1521 = vpack.c.b16 %v1317, %v1316
  %v1522 = vpack.c.b16 %v1319, %v1318
  %v1523 = vpack.c.b16 %v1321, %v1320
  %v1524 = vpack.c.b16 %v1323, %v1322
  %v1525 = vpack.c.b16 %v1325, %v1324
  %1726 = vmatpush.bf16.msra.mxu0 %v1333
  %1727 = vmatpush.bf16.msra.mxu0 %v1332
  %1728 = vmatpush.bf16.msra.mxu0 %v1331
  %1729 = vmatpush.bf16.msra.mxu0 %v1330
  %1730 = vmatpush.bf16.msra.mxu0 %v1329
  %1731 = vmatpush.bf16.msra.mxu0 %v1328
  %1732 = vmatpush.bf16.msra.mxu0 %v1327
  %1733 = vmatpush.bf16.msra.mxu0 %v1326
  %1734 = vmatmul.bf16.gmra.mxu0 %v476
  %v1735 = vpop.f32.mrf.mxu0
  %v1736 = vadd.f32 %v436, %v1735
  %v1737 = vpop.f32.mrf.mxu0
  %1738 = vdwg.mxu0
  %1739 = vmatpush.bf16.msra.mxu0 %v1341
  %1740 = vmatpush.bf16.msra.mxu0 %v1340
  %1741 = vmatpush.bf16.msra.mxu0 %v1339
  %1742 = vmatpush.bf16.msra.mxu0 %v1338
  %1743 = vmatpush.bf16.msra.mxu0 %v1337
  %1744 = vmatpush.bf16.msra.mxu0 %v1336
  %1745 = vmatpush.bf16.msra.mxu0 %v1335
  %1746 = vmatpush.bf16.msra.mxu0 %v1334
  %1747 = vmatmul.bf16.gmra.mxu0 %v477
  %v1748 = vpop.f32.mrf.mxu0
  %v1749 = vadd.f32 %v1736, %v1748
  %v1750 = vpop.f32.mrf.mxu0
  %1751 = vdwg.mxu0
  %1752 = vmatpush.bf16.msra.mxu0 %v1349
  %1753 = vmatpush.bf16.msra.mxu0 %v1348
  %1754 = vmatpush.bf16.msra.mxu0 %v1347
  %1755 = vmatpush.bf16.msra.mxu0 %v1346
  %1756 = vmatpush.bf16.msra.mxu0 %v1345
  %1757 = vmatpush.bf16.msra.mxu0 %v1344
  %1758 = vmatpush.bf16.msra.mxu0 %v1343
  %1759 = vmatpush.bf16.msra.mxu0 %v1342
  %1760 = vmatmul.bf16.gmra.mxu0 %v478
  %v1761 = vpop.f32.mrf.mxu0
  %v1762 = vadd.f32 %v1749, %v1761
  %v1763 = vpop.f32.mrf.mxu0
  %1764 = vdwg.mxu0
  %1765 = vmatpush.bf16.msra.mxu0 %v1357
  %1766 = vmatpush.bf16.msra.mxu0 %v1356
  %1767 = vmatpush.bf16.msra.mxu0 %v1355
  %1768 = vmatpush.bf16.msra.mxu0 %v1354
  %1769 = vmatpush.bf16.msra.mxu0 %v1353
  %1770 = vmatpush.bf16.msra.mxu0 %v1352
  %1771 = vmatpush.bf16.msra.mxu0 %v1351
  %1772 = vmatpush.bf16.msra.mxu0 %v1350
  %1773 = vmatmul.bf16.gmra.mxu0 %v479
  %v1774 = vpop.f32.mrf.mxu0
  %v1775 = vadd.f32 %v1762, %v1774
  %v1776 = vpop.f32.mrf.mxu0
  %1777 = vdwg.mxu0
  %1778 = vmatpush.bf16.msra.mxu0 %v1365
  %1779 = vmatpush.bf16.msra.mxu0 %v1364
  %1780 = vmatpush.bf16.msra.mxu0 %v1363
  %1781 = vmatpush.bf16.msra.mxu0 %v1362
  %1782 = vmatpush.bf16.msra.mxu0 %v1361
  %1783 = vmatpush.bf16.msra.mxu0 %v1360
  %1784 = vmatpush.bf16.msra.mxu0 %v1359
  %1785 = vmatpush.bf16.msra.mxu0 %v1358
  %1786 = vmatmul.bf16.gmra.mxu0 %v480
  %v1787 = vpop.f32.mrf.mxu0
  %v1788 = vadd.f32 %v1775, %v1787
  %v1789 = vpop.f32.mrf.mxu0
  %1790 = vdwg.mxu0
  %1791 = vmatpush.bf16.msra.mxu0 %v1373
  %1792 = vmatpush.bf16.msra.mxu0 %v1372
  %1793 = vmatpush.bf16.msra.mxu0 %v1371
  %1794 = vmatpush.bf16.msra.mxu0 %v1370
  %1795 = vmatpush.bf16.msra.mxu0 %v1369
  %1796 = vmatpush.bf16.msra.mxu0 %v1368
  %1797 = vmatpush.bf16.msra.mxu0 %v1367
  %1798 = vmatpush.bf16.msra.mxu0 %v1366
  %1799 = vmatmul.bf16.gmra.mxu0 %v481
  %v1800 = vpop.f32.mrf.mxu0
  %v1801 = vadd.f32 %v1788, %v1800
  %v1802 = vpop.f32.mrf.mxu0
  %1803 = vdwg.mxu0
  %1804 = vmatpush.bf16.msra.mxu0 %v1381
  %1805 = vmatpush.bf16.msra.mxu0 %v1380
  %1806 = vmatpush.bf16.msra.mxu0 %v1379
  %1807 = vmatpush.bf16.msra.mxu0 %v1378
  %1808 = vmatpush.bf16.msra.mxu0 %v1377
  %1809 = vmatpush.bf16.msra.mxu0 %v1376
  %1810 = vmatpush.bf16.msra.mxu0 %v1375
  %1811 = vmatpush.bf16.msra.mxu0 %v1374
  %1812 = vmatmul.bf16.gmra.mxu0 %v482
  %v1813 = vpop.f32.mrf.mxu0
  %v1814 = vadd.f32 %v1801, %v1813
  %v1815 = vpop.f32.mrf.mxu0
  %1816 = vdwg.mxu0
  %1817 = vmatpush.bf16.msra.mxu0 %v1389
  %1818 = vmatpush.bf16.msra.mxu0 %v1388
  %1819 = vmatpush.bf16.msra.mxu0 %v1387
  %1820 = vmatpush.bf16.msra.mxu0 %v1386
  %1821 = vmatpush.bf16.msra.mxu0 %v1385
  %1822 = vmatpush.bf16.msra.mxu0 %v1384
  %1823 = vmatpush.bf16.msra.mxu0 %v1383
  %1824 = vmatpush.bf16.msra.mxu0 %v1382
  %1825 = vmatmul.bf16.gmra.mxu0 %v483
  %v1826 = vpop.f32.mrf.mxu0
  %v1827 = vadd.f32 %v1814, %v1826
  %v1828 = vpop.f32.mrf.mxu0
  %1829 = vdwg.mxu0
  %1830 = vmatpush.bf16.msra.mxu0 %v1397
  %1831 = vmatpush.bf16.msra.mxu0 %v1396
  %1832 = vmatpush.bf16.msra.mxu0 %v1395
  %1833 = vmatpush.bf16.msra.mxu0 %v1394
  %1834 = vmatpush.bf16.msra.mxu0 %v1393
  %1835 = vmatpush.bf16.msra.mxu0 %v1392
  %1836 = vmatpush.bf16.msra.mxu0 %v1391
  %1837 = vmatpush.bf16.msra.mxu0 %v1390
  %1838 = vmatmul.bf16.gmra.mxu0 %v484
  %v1839 = vpop.f32.mrf.mxu0
  %v1840 = vadd.f32 %v1827, %v1839
  %v1841 = vpop.f32.mrf.mxu0
  %1842 = vdwg.mxu0
  %1843 = vmatpush.bf16.msra.mxu0 %v1405
  %1844 = vmatpush.bf16.msra.mxu0 %v1404
  %1845 = vmatpush.bf16.msra.mxu0 %v1403
  %1846 = vmatpush.bf16.msra.mxu0 %v1402
  %1847 = vmatpush.bf16.msra.mxu0 %v1401
  %1848 = vmatpush.bf16.msra.mxu0 %v1400
  %1849 = vmatpush.bf16.msra.mxu0 %v1399
  %1850 = vmatpush.bf16.msra.mxu0 %v1398
  %1851 = vmatmul.bf16.gmra.mxu0 %v485
  %v1852 = vpop.f32.mrf.mxu0
  %v1853 = vadd.f32 %v1840, %v1852
  %v1854 = vpop.f32.mrf.mxu0
  %1855 = vdwg.mxu0
  %1856 = vmatpush.bf16.msra.mxu0 %v1413
  %1857 = vmatpush.bf16.msra.mxu0 %v1412
  %1858 = vmatpush.bf16.msra.mxu0 %v1411
  %1859 = vmatpush.bf16.msra.mxu0 %v1410
  %1860 = vmatpush.bf16.msra.mxu0 %v1409
  %1861 = vmatpush.bf16.msra.mxu0 %v1408
  %1862 = vmatpush.bf16.msra.mxu0 %v1407
  %1863 = vmatpush.bf16.msra.mxu0 %v1406
  %1864 = vmatmul.bf16.gmra.mxu0 %v486
  %v1865 = vpop.f32.mrf.mxu0
  %v1866 = vadd.f32 %v1853, %v1865
  %v1867 = vpop.f32.mrf.mxu0
  %1868 = vdwg.mxu0
  %1869 = vmatpush.bf16.msra.mxu0 %v1421
  %1870 = vmatpush.bf16.msra.mxu0 %v1420
  %1871 = vmatpush.bf16.msra.mxu0 %v1419
  %1872 = vmatpush.bf16.msra.mxu0 %v1418
  %1873 = vmatpush.bf16.msra.mxu0 %v1417
  %1874 = vmatpush.bf16.msra.mxu0 %v1416
  %1875 = vmatpush.bf16.msra.mxu0 %v1415
  %1876 = vmatpush.bf16.msra.mxu0 %v1414
  %1877 = vmatmul.bf16.gmra.mxu0 %v487
  %v1878 = vpop.f32.mrf.mxu0
  %v1879 = vadd.f32 %v1866, %v1878
  %v1880 = vpop.f32.mrf.mxu0
  %1881 = vdwg.mxu0
  %1882 = vmatpush.bf16.msra.mxu0 %v1429
  %1883 = vmatpush.bf16.msra.mxu0 %v1428
  %1884 = vmatpush.bf16.msra.mxu0 %v1427
  %1885 = vmatpush.bf16.msra.mxu0 %v1426
  %1886 = vmatpush.bf16.msra.mxu0 %v1425
  %1887 = vmatpush.bf16.msra.mxu0 %v1424
  %1888 = vmatpush.bf16.msra.mxu0 %v1423
  %1889 = vmatpush.bf16.msra.mxu0 %v1422
  %1890 = vmatmul.bf16.gmra.mxu0 %v488
  %v1891 = vpop.f32.mrf.mxu0
  %v1892 = vadd.f32 %v1879, %v1891
  %v1893 = vpop.f32.mrf.mxu0
  %1894 = vdwg.mxu0
  %1895 = vmatpush.bf16.msra.mxu0 %v1437
  %1896 = vmatpush.bf16.msra.mxu0 %v1436
  %1897 = vmatpush.bf16.msra.mxu0 %v1435
  %1898 = vmatpush.bf16.msra.mxu0 %v1434
  %1899 = vmatpush.bf16.msra.mxu0 %v1433
  %1900 = vmatpush.bf16.msra.mxu0 %v1432
  %1901 = vmatpush.bf16.msra.mxu0 %v1431
  %1902 = vmatpush.bf16.msra.mxu0 %v1430
  %1903 = vmatmul.bf16.gmra.mxu0 %v489
  %v1904 = vpop.f32.mrf.mxu0
  %v1905 = vadd.f32 %v1892, %v1904
  %v1906 = vpop.f32.mrf.mxu0
  %1907 = vdwg.mxu0
  %1908 = vmatpush.bf16.msra.mxu0 %v1445
  %1909 = vmatpush.bf16.msra.mxu0 %v1444
  %1910 = vmatpush.bf16.msra.mxu0 %v1443
  %1911 = vmatpush.bf16.msra.mxu0 %v1442
  %1912 = vmatpush.bf16.msra.mxu0 %v1441
  %1913 = vmatpush.bf16.msra.mxu0 %v1440
  %1914 = vmatpush.bf16.msra.mxu0 %v1439
  %1915 = vmatpush.bf16.msra.mxu0 %v1438
  %1916 = vmatmul.bf16.gmra.mxu0 %v490
  %v1917 = vpop.f32.mrf.mxu0
  %v1918 = vadd.f32 %v1905, %v1917
  %v1919 = vpop.f32.mrf.mxu0
  %1920 = vdwg.mxu0
  %1921 = vmatpush.bf16.msra.mxu0 %v1453
  %1922 = vmatpush.bf16.msra.mxu0 %v1452
  %1923 = vmatpush.bf16.msra.mxu0 %v1451
  %1924 = vmatpush.bf16.msra.mxu0 %v1450
  %1925 = vmatpush.bf16.msra.mxu0 %v1449
  %1926 = vmatpush.bf16.msra.mxu0 %v1448
  %1927 = vmatpush.bf16.msra.mxu0 %v1447
  %1928 = vmatpush.bf16.msra.mxu0 %v1446
  %1929 = vmatmul.bf16.gmra.mxu0 %v491
  %v1930 = vpop.f32.mrf.mxu0
  %v1931 = vadd.f32 %v1918, %v1930
  %v1932 = vpop.f32.mrf.mxu0
  %1933 = vdwg.mxu0
  %1934 = vmatpush.bf16.msra.mxu0 %v1461
  %1935 = vmatpush.bf16.msra.mxu0 %v1460
  %1936 = vmatpush.bf16.msra.mxu0 %v1459
  %1937 = vmatpush.bf16.msra.mxu0 %v1458
  %1938 = vmatpush.bf16.msra.mxu0 %v1457
  %1939 = vmatpush.bf16.msra.mxu0 %v1456
  %1940 = vmatpush.bf16.msra.mxu0 %v1455
  %1941 = vmatpush.bf16.msra.mxu0 %v1454
  %1942 = vmatmul.bf16.gmra.mxu0 %v492
  %v1943 = vpop.f32.mrf.mxu0
  %v1944 = vadd.f32 %v1931, %v1943
  %v1945 = vpop.f32.mrf.mxu0
  %1946 = vdwg.mxu0
  %1947 = vmatpush.bf16.msra.mxu0 %v1469
  %1948 = vmatpush.bf16.msra.mxu0 %v1468
  %1949 = vmatpush.bf16.msra.mxu0 %v1467
  %1950 = vmatpush.bf16.msra.mxu0 %v1466
  %1951 = vmatpush.bf16.msra.mxu0 %v1465
  %1952 = vmatpush.bf16.msra.mxu0 %v1464
  %1953 = vmatpush.bf16.msra.mxu0 %v1463
  %1954 = vmatpush.bf16.msra.mxu0 %v1462
  %1955 = vmatmul.bf16.gmra.mxu0 %v493
  %v1956 = vpop.f32.mrf.mxu0
  %v1957 = vadd.f32 %v1944, %v1956
  %v1958 = vpop.f32.mrf.mxu0
  %1959 = vdwg.mxu0
  %1960 = vmatpush.bf16.msra.mxu0 %v1477
  %1961 = vmatpush.bf16.msra.mxu0 %v1476
  %1962 = vmatpush.bf16.msra.mxu0 %v1475
  %1963 = vmatpush.bf16.msra.mxu0 %v1474
  %1964 = vmatpush.bf16.msra.mxu0 %v1473
  %1965 = vmatpush.bf16.msra.mxu0 %v1472
  %1966 = vmatpush.bf16.msra.mxu0 %v1471
  %1967 = vmatpush.bf16.msra.mxu0 %v1470
  %1968 = vmatmul.bf16.gmra.mxu0 %v494
  %v1969 = vpop.f32.mrf.mxu0
  %v1970 = vadd.f32 %v1957, %v1969
  %v1971 = vpop.f32.mrf.mxu0
  %1972 = vdwg.mxu0
  %1973 = vmatpush.bf16.msra.mxu0 %v1485
  %1974 = vmatpush.bf16.msra.mxu0 %v1484
  %1975 = vmatpush.bf16.msra.mxu0 %v1483
  %1976 = vmatpush.bf16.msra.mxu0 %v1482
  %1977 = vmatpush.bf16.msra.mxu0 %v1481
  %1978 = vmatpush.bf16.msra.mxu0 %v1480
  %1979 = vmatpush.bf16.msra.mxu0 %v1479
  %1980 = vmatpush.bf16.msra.mxu0 %v1478
  %1981 = vmatmul.bf16.gmra.mxu0 %v495
  %v1982 = vpop.f32.mrf.mxu0
  %v1983 = vadd.f32 %v1970, %v1982
  %v1984 = vpop.f32.mrf.mxu0
  %1985 = vdwg.mxu0
  %1986 = vmatpush.bf16.msra.mxu0 %v1493
  %1987 = vmatpush.bf16.msra.mxu0 %v1492
  %1988 = vmatpush.bf16.msra.mxu0 %v1491
  %1989 = vmatpush.bf16.msra.mxu0 %v1490
  %1990 = vmatpush.bf16.msra.mxu0 %v1489
  %1991 = vmatpush.bf16.msra.mxu0 %v1488
  %1992 = vmatpush.bf16.msra.mxu0 %v1487
  %1993 = vmatpush.bf16.msra.mxu0 %v1486
  %1994 = vmatmul.bf16.gmra.mxu0 %v496
  %v1995 = vpop.f32.mrf.mxu0
  %v1996 = vadd.f32 %v1983, %v1995
  %v1997 = vpop.f32.mrf.mxu0
  %1998 = vdwg.mxu0
  %1999 = vmatpush.bf16.msra.mxu0 %v1501
  %2000 = vmatpush.bf16.msra.mxu0 %v1500
  %2001 = vmatpush.bf16.msra.mxu0 %v1499
  %2002 = vmatpush.bf16.msra.mxu0 %v1498
  %2003 = vmatpush.bf16.msra.mxu0 %v1497
  %2004 = vmatpush.bf16.msra.mxu0 %v1496
  %2005 = vmatpush.bf16.msra.mxu0 %v1495
  %2006 = vmatpush.bf16.msra.mxu0 %v1494
  %2007 = vmatmul.bf16.gmra.mxu0 %v497
  %v2008 = vpop.f32.mrf.mxu0
  %v2009 = vadd.f32 %v1996, %v2008
  %v2010 = vpop.f32.mrf.mxu0
  %2011 = vdwg.mxu0
  %2012 = vmatpush.bf16.msra.mxu0 %v1509
  %2013 = vmatpush.bf16.msra.mxu0 %v1508
  %2014 = vmatpush.bf16.msra.mxu0 %v1507
  %2015 = vmatpush.bf16.msra.mxu0 %v1506
  %2016 = vmatpush.bf16.msra.mxu0 %v1505
  %2017 = vmatpush.bf16.msra.mxu0 %v1504
  %2018 = vmatpush.bf16.msra.mxu0 %v1503
  %2019 = vmatpush.bf16.msra.mxu0 %v1502
  %2020 = vmatmul.bf16.gmra.mxu0 %v498
  %v2021 = vpop.f32.mrf.mxu0
  %v2022 = vadd.f32 %v2009, %v2021
  %v2023 = vpop.f32.mrf.mxu0
  %2024 = vdwg.mxu0
  %2025 = vmatpush.bf16.msra.mxu0 %v1517
  %2026 = vmatpush.bf16.msra.mxu0 %v1516
  %2027 = vmatpush.bf16.msra.mxu0 %v1515
  %2028 = vmatpush.bf16.msra.mxu0 %v1514
  %2029 = vmatpush.bf16.msra.mxu0 %v1513
  %2030 = vmatpush.bf16.msra.mxu0 %v1512
  %2031 = vmatpush.bf16.msra.mxu0 %v1511
  %2032 = vmatpush.bf16.msra.mxu0 %v1510
  %2033 = vmatmul.bf16.gmra.mxu0 %v499
  %v2034 = vpop.f32.mrf.mxu0
  %v2035 = vadd.f32 %v2022, %v2034
  %v2036 = vpop.f32.mrf.mxu0
  %2037 = vdwg.mxu0
  %2038 = vmatpush.bf16.msra.mxu0 %v1525
  %2039 = vmatpush.bf16.msra.mxu0 %v1524
  %2040 = vmatpush.bf16.msra.mxu0 %v1523
  %2041 = vmatpush.bf16.msra.mxu0 %v1522
  %2042 = vmatpush.bf16.msra.mxu0 %v1521
  %2043 = vmatpush.bf16.msra.mxu0 %v1520
  %2044 = vmatpush.bf16.msra.mxu0 %v1519
  %2045 = vmatpush.bf16.msra.mxu0 %v1518
  %2046 = vmatmul.bf16.gmra.mxu0 %v500
  %v2047 = vpop.f32.mrf.mxu0
  %v2048 = vadd.f32 %v2035, %v2047
  %v2049 = vpop.f32.mrf.mxu0
  %2050 = vdwg.mxu0
  %v2051 = vmax.f32 %v2048, 0.0
  %v2052 = vpack.c.bf16 %v2051, %v2051
  %v2053 = vld [vmem:[%s3] sm:$0xf]
  %v2054 = vld [vmem:[%s3 + $0x4] sm:$0xf]
  %v2055 = vld [vmem:[%s3 + $0x8] sm:$0xf]
  %v2056 = vld [vmem:[%s3 + $0xc] sm:$0xf]
  %v2057 = vld [vmem:[%s3 + $0x10] sm:$0xf]
  %v2058 = vld [vmem:[%s3 + $0x14] sm:$0xf]
  %v2059 = vld [vmem:[%s3 + $0x18] sm:$0xf]
  %v2060 = vld [vmem:[%s3 + $0x1c] sm:$0xf]
  %v2061 = vld [vmem:[%s4] sm:$0x1]
  %v2063 = vperm.slane %v2061, 0
  %v2073 = vunpack.c.l.b16 %v2053
  %v2074 = vunpack.c.l.b16 %v2054
  %v2075 = vunpack.c.l.b16 %v2055
  %v2076 = vunpack.c.l.b16 %v2056
  %v2077 = vunpack.c.l.b16 %v2057
  %v2078 = vunpack.c.l.b16 %v2058
  %v2079 = vunpack.c.l.b16 %v2059
  %v2080 = vunpack.c.l.b16 %v2060
  %v2081 = vpack.c.b16 %v2074, %v2073
  %v2082 = vpack.c.b16 %v2076, %v2075
  %v2083 = vpack.c.b16 %v2078, %v2077
  %v2084 = vpack.c.b16 %v2080, %v2079
  %vm2089 = vcmask 523264
  %v2091 = vsel %vm2089, %v2052, 0
  %2093 = vmatpush.bf16.msra.mxu0 0
  %2094 = vmatpush.bf16.msra.mxu0 0
  %2095 = vmatpush.bf16.msra.mxu0 0
  %2096 = vmatpush.bf16.msra.mxu0 0
  %2097 = vmatpush.bf16.msra.mxu0 %v2084
  %2098 = vmatpush.bf16.msra.mxu0 %v2083
  %2099 = vmatpush.bf16.msra.mxu0 %v2082
  %2100 = vmatpush.bf16.msra.mxu0 %v2081
  %2101 = vmatmul.bf16.gmra.mxu0 %v2091
  %v2102 = vpop.f32.mrf.mxu0
  %v2103 = vadd.f32 %v2063, %v2102
  %v2104 = vpop.f32.mrf.mxu0
  %2105 = vdwg.mxu0
  %2107 = vset.pattern.permute.xlu0 0
  %2108 = vperm.xlu0 %2107, %v2103
  %v2109 = vpop.permute.xlu0 %2108
  %v2111 = vadd.f32 %v2109, %v2103
  %2112 = vrot.lane.b32.xlu0 %v2103, 127
  %v2113 = vpop.permute.xlu0 %2112
  %vm2115 = vcmask 48128
  %v2116 = vsel %vm2115, %v2113, 0.0
  %2117 = vadd.xlane.f32.xlu0 %v2116
  %v2118 = vpop.xlane.xlu0 %2117
  %v2119 = vrcp.pop 6.0
  %v2120 = vmul.f32 6.0, %v2119
  %v2121 = vsub.f32 1.0, %v2120
  %v2122 = vmul.f32 %v2119, %v2121
  %v2123 = vadd.f32 %v2119, %v2122
  %vm2124 = vweird.f32 %v2119
  %v2125 = vsel %vm2124, %v2119, %v2123
  %v2126 = vmul.f32 %v2118, %v2125
  %v2127 = vsub.f32 %v2111, %v2126
  %2129 = vrot.lane.b32.xlu0 %v2127, 127
  %v2130 = vpop.permute.xlu0 %2129
  %2132 = vst.msk [vmem:[%s5] sm:$0xff] %vm2115, %v2130
  // Predicated region
  $region22: #{qnet_forward.7} parent=0 // pred_check
    _
  $region23: #{qnet_forward.7} parent=0 // pred_check_branch
    %2134 = sbr.rel (0) target = $region25
  $region24: #{qnet_forward.7} parent=0 // pred_region
    _
  $region25: #{qnet_forward.7} parent=0 // pred_fallthru
    _
  // Predicated region
  $region26: #{qnet_forward.7} parent=0 // pred_check
    _
  $region27: #{qnet_forward.7} parent=0 // pred_check_branch
    %2136 = sbr.rel (0) target = $region29
  $region28: #{qnet_forward.7} parent=0 // pred_region
    _
  $region29: #{qnet_forward.7} parent=0 // pred_fallthru
    _

</llo_original>
